<compile_context>
chip_gen: v6e
topology: v6e:2x2x1
jax: 0.10.0
libtpu: 0.0.40
codegen_flags: <defaults>
</compile_context>

<pallas_src>
import numpy as np
import jax
import jax.numpy as jnp
from jax.experimental import pallas as pl
from jax.experimental.pallas import tpu as pltpu

# ----------------------------- configuration --------------------------------
B = 2                 # batch folded into rows per grid step (per "board")
E = 8                 # num_entities (KG nodes)
FN = 8                # num_node_feats
FE = 4                # num_edge_feats
H, W = 8, 8
HW = H * W
C = 32                # conv_hidden_size
WNET_HIDDEN = 16      # dgconv['wnet_hidden_size']
WNET_NUM_LAYERS = 1   # dgconv['wnet_num_layers'] (kernel hard-codes 1 hidden layer)
FC = (64, 32)         # fc_hidden_sizes
USE_SG_INTO_KG_SKIP = True

SLAB_WIDTH = 128      # lane-dense slabs

_dims = (C,) + FC

# ------------------- module-style (unfused) parameter table -----------------
PARAM_DEFS = []
for _k in range(1, 5):
    _cin = FN if _k == 1 else C
    PARAM_DEFS += [
        (f"dg{_k}_wnet_w1", (FE, WNET_HIDDEN)),
        (f"dg{_k}_wnet_b1", (1, WNET_HIDDEN)),
        (f"dg{_k}_wnet_w2", (WNET_HIDDEN, 1)),
        (f"dg{_k}_wnet_b2", (1, 1)),
        (f"dg{_k}_w_self", (_cin, C)),
        (f"dg{_k}_w_nbr", (_cin, C)),
        (f"dg{_k}_b", (1, C)),
    ]
for _k in (1, 2):
    PARAM_DEFS += [
        (f"sgc{_k}_w_self", (C, C)),
        (f"sgc{_k}_w_nbr", (C, C)),
        (f"sgc{_k}_w_kg", (C, C)),
        (f"sgc{_k}_b", (1, C)),
    ]
PARAM_DEFS += [("sk_w_sg", (C, C)), ("sk_w_kg", (C, C)), ("sk_b", (1, C))]
for _i in range(len(FC)):
    PARAM_DEFS += [(f"mlp_w{_i}", (_dims[_i], _dims[_i + 1])),
                   (f"mlp_b{_i}", (1, _dims[_i + 1]))]

# ----------------------- packed slab layouts ---------------------------------
# Constant (VMEM-resident, bf16) weight + structure slab.
WSLAB_ENTRIES = [
    ("wnet_w1_all", (FE, 4 * WNET_HIDDEN)),      # [w1_1 | w1_2 | w1_3 | w1_4]
    ("wnet_b1_all", (1, 4 * WNET_HIDDEN)),
    ("wnet_w2_bd", (4 * WNET_HIDDEN, 4)),        # blockdiag(w2_1..w2_4)
    ("wnet_b2_all", (1, 4)),
]
for _k in range(1, 5):
    _cin = FN if _k == 1 else C
    WSLAB_ENTRIES += [(f"dg{_k}_w_ns", (_cin, 2 * C)),   # [W_nbr | W_self]
                      (f"dg{_k}_b", (1, C))]
for _k in (1, 2):
    WSLAB_ENTRIES += [(f"sgc{_k}_w_fused", (2 * C, 2 * C)),  # [[W_nbr|W_self],[0|W_kg]]
                      (f"sgc{_k}_b", (1, C))]
WSLAB_ENTRIES += [("sk_w", (2 * C, C)),                   # [[W_sg],[W_kg]]
                  ("sk_b", (1, C))]
for _i in range(len(FC)):
    _ow = SLAB_WIDTH if _i == len(FC) - 1 else _dims[_i + 1]   # pad last layer to 128 lanes
    WSLAB_ENTRIES += [(f"mlp_w{_i}", (_dims[_i], _ow)),
                      (f"mlp_b{_i}", (1, _ow))]
WSLAB_ENTRIES += [
    ("a_sg_bd", (B * HW, B * HW)),       # block-diag normalized spatial adjacency
    ("src_sel_bd", (B * E * E, B * E)),  # edge -> source-node selector
    ("dst_sum_bd", (B * E, B * E * E)),  # edge -> destination-node summation
    ("mean_mat", (B, B * HW)),           # SpatialReduce('mean') pooling matrix
]

# Per-board dynamic activation slab (pipelined, f32).
ACT_ENTRIES = [
    ("rel_adj", (B * E * E, FE + 1)),    # [rel | adj]  (rel at lane 0)
    ("oh_pe", (B * HW, B * E)),          # block-diag one-hot (cell -> entity)
    ("oh_ep_mean", (B * E, B * HW)),     # pre-normalized mean-pool (entity <- cells)
    ("kg_nf", (B * E, FN)),
]


def _build_layout(entries, pad):
    layout, off = {}, 0
    for name, (r, c) in entries:
        assert c <= SLAB_WIDTH
        layout[name] = (off, (r, c))
        off += ((r + pad - 1) // pad) * pad
    return layout, ((off + pad - 1) // pad) * pad


WSLAB_LAYOUT, WSLAB_ROWS = _build_layout(WSLAB_ENTRIES, 16)   # bf16 sublane tiling
ACT_LAYOUT, ACT_ROWS = _build_layout(ACT_ENTRIES, 8)          # f32 sublane tiling


# --------------------------------- kernel -----------------------------------
def trunk_kernel(act_ref, slab_ref, out_ref):
    def w(name):  # point-of-use static slice from the resident bf16 weight slab
        off, (r, c) = WSLAB_LAYOUT[name]
        return slab_ref[off:off + r, :c]

    def a(name, c0=0, c1=None):  # static slice from the per-board activation slab
        off, (r, c) = ACT_LAYOUT[name]
        return act_ref[off:off + r, c0:(c if c1 is None else c1)]

    def dot(x, y):  # bf16 MXU matmul, f32 accumulate
        return jnp.dot(x.astype(jnp.bfloat16), y.astype(jnp.bfloat16),
                       preferred_element_type=jnp.float32)

    def relu(x):
        return jnp.maximum(x, 0.0)

    rel = a("rel_adj", 0, FE)               # (B*E*E, FE), lane-0 aligned
    adj = a("rel_adj", FE, FE + 1)          # (B*E*E, 1)
    oh_pe = a("oh_pe")                      # (B*HW, B*E)
    oh_ep_mean = a("oh_ep_mean")            # (B*E, B*HW), rows already / cell-counts
    kg_h = a("kg_nf")                       # (B*E, FN)

    # Edge-weight net hoisted & fused across all 4 DynamicGraphConv layers
    # (rel/adj are layer-invariant).
    hmid = jnp.tanh(dot(rel, w("wnet_w1_all")) + w("wnet_b1_all"))   # (BEE, 4*WH) f32
    w_edge = dot(hmid, w("wnet_w2_bd")) + w("wnet_b2_all")           # (BEE, 4)
    aw = adj * w_edge                                                # adj-masked edge weights

    def dgconv(h, k):
        # DynamicGraphConv: out[i] = sum_j adj[i,j]*wnet_k(rel[i,j])*(h[j]@W_nbr)
        #                            + h[i]@W_self + b
        proj = dot(h, w(f"dg{k}_w_ns"))                  # [nbr | self], nbr at lane 0
        h_edges = dot(w("src_sel_bd"), proj[:, :C])      # (BEE, C)
        contrib = aw[:, k - 1:k] * h_edges
        msg = dot(w("dst_sum_bd"), contrib)              # (BE, C)
        return msg + proj[:, C:] + w(f"dg{k}_b")

    def sg_conv(sg_h, kg_h, k):
        # KGSGIntoSGConv, fully fused: [sg_h | oh_pe@kg_h] @ [[W_nbr|W_self],[0|W_kg]]
        kg_gather = dot(oh_pe, kg_h)                                     # (BHW, C)
        fused = dot(jnp.concatenate([sg_h, kg_gather], axis=1),
                    w(f"sgc{k}_w_fused"))                                # (BHW, 2C)
        nbr = dot(w("a_sg_bd"), fused[:, :C])                            # (BHW, C)
        return nbr + fused[:, C:] + w(f"sgc{k}_b")

    def sg_kg_conv(sg_h, kg_h):
        # SGIntoKGConv: per-entity mean pool (pre-normalized matrix) + linear (+ skip)
        pooled = dot(oh_ep_mean, sg_h)                                   # (BE, C)
        out = dot(jnp.concatenate([pooled, kg_h], axis=1), w("sk_w")) + w("sk_b")
        if USE_SG_INTO_KG_SKIP:
            out = out + kg_h
        return out

    kg_h = relu(dgconv(kg_h, 1))
    kg_h = relu(dgconv(kg_h, 2))
    sg_h = dot(oh_pe, kg_h)                  # KGIntoSGPool
    sg_h = relu(sg_conv(sg_h, kg_h, 1))
    kg_h = relu(sg_kg_conv(sg_h, kg_h))
    kg_h = relu(dgconv(kg_h, 3))
    kg_h = relu(dgconv(kg_h, 4))
    sg_h = relu(sg_conv(sg_h, kg_h, 2))

    x = dot(w("mean_mat"), sg_h)             # SpatialReduce('mean') -> (B, C)
    for i in range(len(FC)):
        # TODO(synk): verify whether the reference MLP applies ReLU after the final FC layer.
        x = relu(dot(x, w(f"mlp_w{i}")) + w(f"mlp_b{i}"))

    out_ref[0] = x                           # (B, 128) lane-dense; cols FC[-1]: are zero


# ------------------------------- host glue -----------------------------------
def init_params(key):
    params = {}
    for name, shape in PARAM_DEFS:
        key, sub = jax.random.split(key)
        scale = 1.0 / np.sqrt(max(shape[0], 1))
        params[name] = scale * jax.random.normal(sub, shape, jnp.float32)
    return params


def build_grid_adjacency(h, w):
    a = np.zeros((h * w, h * w), np.float32)
    for y in range(h):
        for x in range(w):
            pidx = y * w + x
            for dy, dx in ((1, 0), (-1, 0), (0, 1), (0, -1)):
                ny, nx = y + dy, x + dx
                if 0 <= ny < h and 0 <= nx < w:
                    a[pidx, ny * w + nx] = 1.0
    a = a / np.maximum(a.sum(axis=1, keepdims=True), 1.0)
    return a


def _block_diag(block, n):
    r, c = block.shape
    out = np.zeros((n * r, n * c), np.float32)
    for b in range(n):
        out[b * r:(b + 1) * r, b * c:(b + 1) * c] = block
    return out


def pack_weight_slab(params, a_sg_np):
    """Fuse weights and pack everything into one (WSLAB_ROWS, 128) bf16 slab."""
    vals = {}
    # wnet fused across the 4 dgconv layers
    vals["wnet_w1_all"] = np.concatenate(
        [np.asarray(params[f"dg{k}_wnet_w1"]) for k in range(1, 5)], axis=1)
    vals["wnet_b1_all"] = np.concatenate(
        [np.asarray(params[f"dg{k}_wnet_b1"]) for k in range(1, 5)], axis=1)
    w2bd = np.zeros((4 * WNET_HIDDEN, 4), np.float32)
    for k in range(1, 5):
        w2bd[(k - 1) * WNET_HIDDEN:k * WNET_HIDDEN, k - 1:k] = np.asarray(params[f"dg{k}_wnet_w2"])
    vals["wnet_w2_bd"] = w2bd
    vals["wnet_b2_all"] = np.concatenate(
        [np.asarray(params[f"dg{k}_wnet_b2"]) for k in range(1, 5)], axis=1)
    # dgconv: [W_nbr | W_self] so the nbr half (consumed by the next matmul) is at lane 0
    for k in range(1, 5):
        vals[f"dg{k}_w_ns"] = np.concatenate(
            [np.asarray(params[f"dg{k}_w_nbr"]), np.asarray(params[f"dg{k}_w_self"])], axis=1)
        vals[f"dg{k}_b"] = np.asarray(params[f"dg{k}_b"])
    # sg_conv: fully fused RHS [[W_nbr | W_self], [0 | W_kg]]
    for k in (1, 2):
        top = np.concatenate([np.asarray(params[f"sgc{k}_w_nbr"]),
                              np.asarray(params[f"sgc{k}_w_self"])], axis=1)
        bot = np.concatenate([np.zeros((C, C), np.float32),
                              np.asarray(params[f"sgc{k}_w_kg"])], axis=1)
        vals[f"sgc{k}_w_fused"] = np.concatenate([top, bot], axis=0)
        vals[f"sgc{k}_b"] = np.asarray(params[f"sgc{k}_b"])
    vals["sk_w"] = np.concatenate(
        [np.asarray(params["sk_w_sg"]), np.asarray(params["sk_w_kg"])], axis=0)
    vals["sk_b"] = np.asarray(params["sk_b"])
    # MLP; last layer zero-padded to 128 output lanes for a lane-dense store
    for i in range(len(FC)):
        w_ = np.asarray(params[f"mlp_w{i}"])
        b_ = np.asarray(params[f"mlp_b{i}"])
        if i == len(FC) - 1:
            wp = np.zeros((w_.shape[0], SLAB_WIDTH), np.float32); wp[:, :w_.shape[1]] = w_
            bp = np.zeros((1, SLAB_WIDTH), np.float32); bp[:, :b_.shape[1]] = b_
            w_, b_ = wp, bp
        vals[f"mlp_w{i}"] = w_
        vals[f"mlp_b{i}"] = b_
    # static structure, block-diagonal over the per-step folded batch
    src_sel = np.tile(np.eye(E, dtype=np.float32), (E, 1))                        # (E*E, E)
    dst_sum = np.kron(np.eye(E, dtype=np.float32), np.ones((1, E), np.float32))   # (E, E*E)
    vals["a_sg_bd"] = _block_diag(a_sg_np, B)
    vals["src_sel_bd"] = _block_diag(src_sel, B)
    vals["dst_sum_bd"] = _block_diag(dst_sum, B)
    vals["mean_mat"] = np.kron(np.eye(B, dtype=np.float32),
                               np.ones((1, HW), np.float32) / HW)

    slab = np.zeros((WSLAB_ROWS, SLAB_WIDTH), np.float32)
    for name, (off, (r, c)) in WSLAB_LAYOUT.items():
        slab[off:off + r, :c] = np.asarray(vals[name], np.float32).reshape(r, c)
    # bf16: halves the resident-slab DMA; matmuls accumulate in f32.
    # (Note: 1/3-style degree scales in a_sg_bd are ~1e-3 relative error in bf16.)
    return jnp.asarray(slab, dtype=jnp.bfloat16)


def build_activations(kg_node_feats, kg_adj, kg_rel, obs):
    """Pack all per-board dynamic inputs into one lane-dense (nb*ACT_ROWS, 128) f32 slab."""
    nb = kg_node_feats.shape[0]
    # compute_sg_kg_adj (scatter_-based one-hot), batch-folded + block-diagonal.
    obs_flat = obs.reshape(nb, B, HW).astype(jnp.int32)
    ids = obs_flat + (jnp.arange(B, dtype=jnp.int32) * E)[None, :, None]
    oh_pe = jax.nn.one_hot(ids.reshape(nb, B * HW), B * E, dtype=jnp.float32)  # (nb, B*HW, B*E)
    counts = jnp.sum(oh_pe, axis=1)                                            # (nb, B*E)
    oh_ep_mean = jnp.swapaxes(oh_pe, 1, 2) / jnp.maximum(counts, 1.0)[..., None]

    kg_nf = kg_node_feats.astype(jnp.float32).reshape(nb, B * E, FN)
    rel_adj = jnp.concatenate(
        [kg_rel.astype(jnp.float32).reshape(nb, B * E * E, FE),   # rel at lane 0
         kg_adj.astype(jnp.float32).reshape(nb, B * E * E, 1)],   # adj at lane FE
        axis=-1)

    act = jnp.zeros((nb, ACT_ROWS, SLAB_WIDTH), jnp.float32)
    for name, val in (("rel_adj", rel_adj), ("oh_pe", oh_pe),
                      ("oh_ep_mean", oh_ep_mean), ("kg_nf", kg_nf)):
        off, (r, c) = ACT_LAYOUT[name]
        act = act.at[:, off:off + r, :c].set(val)
    return act.reshape(nb * ACT_ROWS, SLAB_WIDTH)


def graph_trunk_forward(wslab, batch):
    kg_node_feats, kg_adj, kg_rel, obs = batch      # leading dims (num_boards, B, ...)
    nb = kg_node_feats.shape[0]
    act = build_activations(kg_node_feats, kg_adj, kg_rel, obs)

    out = pl.pallas_call(
        trunk_kernel,
        out_shape=jax.ShapeDtypeStruct((nb, B, SLAB_WIDTH), jnp.float32),
        grid=(nb,),
        in_specs=[
            # per-board activation slab: pipelined across the grid
            pl.BlockSpec((ACT_ROWS, SLAB_WIDTH), lambda g: (g, 0)),
            # constant weight slab: same block every step -> DMA'd once, VMEM-resident
            pl.BlockSpec((WSLAB_ROWS, SLAB_WIDTH), lambda g: (0, 0)),
        ],
        out_specs=pl.BlockSpec((1, B, SLAB_WIDTH), lambda g: (g, 0, 0)),
        compiler_params=pltpu.CompilerParams(
            dimension_semantics=("parallel",),      # v7x: split boards across the 2 TCs
            vmem_limit_bytes=32 * 1024 * 1024),     # explicit for v5e's smaller scoped default
    )(act, wslab)
    return out.reshape(nb * B, SLAB_WIDTH)[:, :FC[-1]]


# ----------------------------------- main ------------------------------------
if __name__ == "__main__":
    NUM_BOARDS = 8
    key = jax.random.PRNGKey(0)
    k1, k2, k3, k4, kp = jax.random.split(key, 5)

    kg_node_feats = jax.random.normal(k1, (NUM_BOARDS, B, E, FN), jnp.float32)
    kg_adj = (jax.random.uniform(k2, (NUM_BOARDS, B, E, E)) > 0.5).astype(jnp.float32)
    kg_rel = jax.random.normal(k3, (NUM_BOARDS, B, E, E, FE), jnp.float32)
    obs = jax.random.randint(k4, (NUM_BOARDS, B, H, W), 0, E, dtype=jnp.int32)

    params = init_params(kp)
    a_sg_np = build_grid_adjacency(H, W)
    wslab = pack_weight_slab(params, a_sg_np)

    out = graph_trunk_forward(wslab, (kg_node_feats, kg_adj, kg_rel, obs))
    out = jax.block_until_ready(out)

    assert out.shape == (NUM_BOARDS * B, FC[-1])
    assert bool(jnp.all(jnp.isfinite(out)))
    print("KERNEL_OK")
</pallas_src>

<mosaic_0001>
module attributes {stable_mosaic.version = 11 : i64} {
  func.func @trunk_kernel(%arg0: i32, %arg1: memref<288x128xf32, #tpu.memory_space<vmem>>, %arg2: memref<944x128xbf16, #tpu.memory_space<vmem>>, %arg3: memref<1x2x128xf32, #tpu.memory_space<vmem>>) attributes {dimension_semantics = [#tpu.dimension_semantics<parallel>], iteration_bounds = array<i64: 8>, scalar_prefetch = 0 : i64, scratch_operands = 0 : i64, tpu.core_type = #tpu.core_type<tc>, window_params = [{transform_indices = @transform_0, window_bounds = array<i64: 288, 128>}, {pipeline_mode = #tpu.pipeline_mode<synchronous>, transform_indices = @transform_1, window_bounds = array<i64: 944, 128>}, {transform_indices = @transform_2, window_bounds = array<i64: 1, 2, 128>}]} {
    %c0 = arith.constant 0 : index
    %c0_0 = arith.constant 0 : index
    %0 = vector.load %arg1[%c0, %c0_0] : memref<288x128xf32, #tpu.memory_space<vmem>>, vector<128x4xf32>
    %c0_1 = arith.constant 0 : index
    %c4 = arith.constant 4 : index
    %1 = vector.load %arg1[%c0_1, %c4] : memref<288x128xf32, #tpu.memory_space<vmem>>, vector<128x1xf32>
    %c128 = arith.constant 128 : index
    %c0_2 = arith.constant 0 : index
    %2 = vector.load %arg1[%c128, %c0_2] : memref<288x128xf32, #tpu.memory_space<vmem>>, vector<128x16xf32>
    %c256 = arith.constant 256 : index
    %c0_3 = arith.constant 0 : index
    %3 = vector.load %arg1[%c256, %c0_3] : memref<288x128xf32, #tpu.memory_space<vmem>>, vector<16x128xf32>
    %c272 = arith.constant 272 : index
    %c0_4 = arith.constant 0 : index
    %4 = vector.load %arg1[%c272, %c0_4] : memref<288x128xf32, #tpu.memory_space<vmem>>, vector<16x8xf32>
    %c0_5 = arith.constant 0 : index
    %c0_6 = arith.constant 0 : index
    %5 = vector.load %arg2[%c0_5, %c0_6] : memref<944x128xbf16, #tpu.memory_space<vmem>>, vector<4x64xbf16>
    %6 = arith.truncf %0 : vector<128x4xf32> to vector<128x4xbf16>
    %cst = arith.constant dense<0.000000e+00> : vector<128x64xf32>
    %7 = tpu.matmul %6, %5, %cst {dimension_numbers = #tpu.dot_dimension_numbers<[1], [0], [0], [1], [0, 0, 1, 1], [], []>} : vector<128x4xbf16>, vector<4x64xbf16>, vector<128x64xf32> -> vector<128x64xf32>
    %c16 = arith.constant 16 : index
    %c0_7 = arith.constant 0 : index
    %8 = vector.load %arg2[%c16, %c0_7] : memref<944x128xbf16, #tpu.memory_space<vmem>>, vector<1x64xbf16>
    %9 = arith.extf %8 : vector<1x64xbf16> to vector<1x64xf32>
    %10 = vector.broadcast %9 : vector<1x64xf32> to vector<128x64xf32>
    %11 = arith.addf %7, %10 : vector<128x64xf32>
    %12 = math.tanh %11 : vector<128x64xf32>
    %c32 = arith.constant 32 : index
    %c0_8 = arith.constant 0 : index
    %13 = vector.load %arg2[%c32, %c0_8] : memref<944x128xbf16, #tpu.memory_space<vmem>>, vector<64x4xbf16>
    %14 = arith.truncf %12 : vector<128x64xf32> to vector<128x64xbf16>
    %cst_9 = arith.constant dense<0.000000e+00> : vector<128x4xf32>
    %15 = tpu.matmul %14, %13, %cst_9 {dimension_numbers = #tpu.dot_dimension_numbers<[1], [0], [0], [1], [0, 0, 1, 1], [], []>} : vector<128x64xbf16>, vector<64x4xbf16>, vector<128x4xf32> -> vector<128x4xf32>
    %c96 = arith.constant 96 : index
    %c0_10 = arith.constant 0 : index
    %16 = vector.load %arg2[%c96, %c0_10] : memref<944x128xbf16, #tpu.memory_space<vmem>>, vector<1x4xbf16>
    %17 = arith.extf %16 : vector<1x4xbf16> to vector<1x4xf32>
    %18 = vector.broadcast %17 : vector<1x4xf32> to vector<128x4xf32>
    %19 = arith.addf %15, %18 : vector<128x4xf32>
    %20 = vector.broadcast %1 : vector<128x1xf32> to vector<128x4xf32>
    %21 = arith.mulf %20, %19 : vector<128x4xf32>
    %c112 = arith.constant 112 : index
    %c0_11 = arith.constant 0 : index
    %22 = vector.load %arg2[%c112, %c0_11] : memref<944x128xbf16, #tpu.memory_space<vmem>>, vector<8x64xbf16>
    %23 = arith.truncf %4 : vector<16x8xf32> to vector<16x8xbf16>
    %cst_12 = arith.constant dense<0.000000e+00> : vector<16x64xf32>
    %24 = tpu.matmul %23, %22, %cst_12 {dimension_numbers = #tpu.dot_dimension_numbers<[1], [0], [0], [1], [0, 0, 1, 1], [], []>} : vector<16x8xbf16>, vector<8x64xbf16>, vector<16x64xf32> -> vector<16x64xf32>
    %c784 = arith.constant 784 : index
    %c0_13 = arith.constant 0 : index
    %25 = vector.load %arg2[%c784, %c0_13] : memref<944x128xbf16, #tpu.memory_space<vmem>>, vector<128x16xbf16>
    %26 = vector.extract_strided_slice %24 {offsets = [0, 0], sizes = [16, 32], strides = [1, 1]} : vector<16x64xf32> to vector<16x32xf32>
    %27 = arith.truncf %26 : vector<16x32xf32> to vector<16x32xbf16>
    %cst_14 = arith.constant dense<0.000000e+00> : vector<128x32xf32>
    %28 = tpu.matmul %25, %27, %cst_14 {dimension_numbers = #tpu.dot_dimension_numbers<[1], [0], [0], [1], [0, 0, 1, 1], [], []>} : vector<128x16xbf16>, vector<16x32xbf16>, vector<128x32xf32> -> vector<128x32xf32>
    %29 = vector.extract_strided_slice %21 {offsets = [0, 0], sizes = [128, 1], strides = [1, 1]} : vector<128x4xf32> to vector<128x1xf32>
    %30 = vector.broadcast %29 : vector<128x1xf32> to vector<128x32xf32>
    %31 = arith.mulf %30, %28 : vector<128x32xf32>
    %c912 = arith.constant 912 : index
    %c0_15 = arith.constant 0 : index
    %32 = vector.load %arg2[%c912, %c0_15] : memref<944x128xbf16, #tpu.memory_space<vmem>>, vector<16x128xbf16>
    %33 = arith.truncf %31 : vector<128x32xf32> to vector<128x32xbf16>
    %cst_16 = arith.constant dense<0.000000e+00> : vector<16x32xf32>
    %34 = tpu.matmul %32, %33, %cst_16 {dimension_numbers = #tpu.dot_dimension_numbers<[1], [0], [0], [1], [0, 0, 1, 1], [], []>} : vector<16x128xbf16>, vector<128x32xbf16>, vector<16x32xf32> -> vector<16x32xf32>
    %35 = vector.extract_strided_slice %24 {offsets = [0, 32], sizes = [16, 32], strides = [1, 1]} : vector<16x64xf32> to vector<16x32xf32>
    %36 = arith.addf %34, %35 : vector<16x32xf32>
    %c128_17 = arith.constant 128 : index
    %c0_18 = arith.constant 0 : index
    %37 = vector.load %arg2[%c128_17, %c0_18] : memref<944x128xbf16, #tpu.memory_space<vmem>>, vector<1x32xbf16>
    %38 = arith.extf %37 : vector<1x32xbf16> to vector<1x32xf32>
    %39 = vector.broadcast %38 : vector<1x32xf32> to vector<16x32xf32>
    %40 = arith.addf %36, %39 : vector<16x32xf32>
    %cst_19 = arith.constant 0.000000e+00 : f32
    %41 = vector.broadcast %cst_19 : f32 to vector<16x32xf32>
    %42 = arith.maximumf %40, %41 : vector<16x32xf32>
    %c144 = arith.constant 144 : index
    %c0_20 = arith.constant 0 : index
    %43 = vector.load %arg2[%c144, %c0_20] : memref<944x128xbf16, #tpu.memory_space<vmem>>, vector<32x64xbf16>
    %44 = arith.truncf %42 : vector<16x32xf32> to vector<16x32xbf16>
    %cst_21 = arith.constant dense<0.000000e+00> : vector<16x64xf32>
    %45 = tpu.matmul %44, %43, %cst_21 {dimension_numbers = #tpu.dot_dimension_numbers<[1], [0], [0], [1], [0, 0, 1, 1], [], []>} : vector<16x32xbf16>, vector<32x64xbf16>, vector<16x64xf32> -> vector<16x64xf32>
    %c784_22 = arith.constant 784 : index
    %c0_23 = arith.constant 0 : index
    %46 = vector.load %arg2[%c784_22, %c0_23] : memref<944x128xbf16, #tpu.memory_space<vmem>>, vector<128x16xbf16>
    %47 = vector.extract_strided_slice %45 {offsets = [0, 0], sizes = [16, 32], strides = [1, 1]} : vector<16x64xf32> to vector<16x32xf32>
    %48 = arith.truncf %47 : vector<16x32xf32> to vector<16x32xbf16>
    %cst_24 = arith.constant dense<0.000000e+00> : vector<128x32xf32>
    %49 = tpu.matmul %46, %48, %cst_24 {dimension_numbers = #tpu.dot_dimension_numbers<[1], [0], [0], [1], [0, 0, 1, 1], [], []>} : vector<128x16xbf16>, vector<16x32xbf16>, vector<128x32xf32> -> vector<128x32xf32>
    %50 = vector.extract_strided_slice %21 {offsets = [0, 1], sizes = [128, 1], strides = [1, 1]} : vector<128x4xf32> to vector<128x1xf32>
    %51 = vector.broadcast %50 : vector<128x1xf32> to vector<128x32xf32>
    %52 = arith.mulf %51, %49 : vector<128x32xf32>
    %c912_25 = arith.constant 912 : index
    %c0_26 = arith.constant 0 : index
    %53 = vector.load %arg2[%c912_25, %c0_26] : memref<944x128xbf16, #tpu.memory_space<vmem>>, vector<16x128xbf16>
    %54 = arith.truncf %52 : vector<128x32xf32> to vector<128x32xbf16>
    %cst_27 = arith.constant dense<0.000000e+00> : vector<16x32xf32>
    %55 = tpu.matmul %53, %54, %cst_27 {dimension_numbers = #tpu.dot_dimension_numbers<[1], [0], [0], [1], [0, 0, 1, 1], [], []>} : vector<16x128xbf16>, vector<128x32xbf16>, vector<16x32xf32> -> vector<16x32xf32>
    %56 = vector.extract_strided_slice %45 {offsets = [0, 32], sizes = [16, 32], strides = [1, 1]} : vector<16x64xf32> to vector<16x32xf32>
    %57 = arith.addf %55, %56 : vector<16x32xf32>
    %c176 = arith.constant 176 : index
    %c0_28 = arith.constant 0 : index
    %58 = vector.load %arg2[%c176, %c0_28] : memref<944x128xbf16, #tpu.memory_space<vmem>>, vector<1x32xbf16>
    %59 = arith.extf %58 : vector<1x32xbf16> to vector<1x32xf32>
    %60 = vector.broadcast %59 : vector<1x32xf32> to vector<16x32xf32>
    %61 = arith.addf %57, %60 : vector<16x32xf32>
    %cst_29 = arith.constant 0.000000e+00 : f32
    %62 = vector.broadcast %cst_29 : f32 to vector<16x32xf32>
    %63 = arith.maximumf %61, %62 : vector<16x32xf32>
    %64 = arith.truncf %2 : vector<128x16xf32> to vector<128x16xbf16>
    %65 = arith.truncf %63 : vector<16x32xf32> to vector<16x32xbf16>
    %cst_30 = arith.constant dense<0.000000e+00> : vector<128x32xf32>
    %66 = tpu.matmul %64, %65, %cst_30 {dimension_numbers = #tpu.dot_dimension_numbers<[1], [0], [0], [1], [0, 0, 1, 1], [], []>} : vector<128x16xbf16>, vector<16x32xbf16>, vector<128x32xf32> -> vector<128x32xf32>
    %67 = arith.truncf %2 : vector<128x16xf32> to vector<128x16xbf16>
    %68 = arith.truncf %63 : vector<16x32xf32> to vector<16x32xbf16>
    %cst_31 = arith.constant dense<0.000000e+00> : vector<128x32xf32>
    %69 = tpu.matmul %67, %68, %cst_31 {dimension_numbers = #tpu.dot_dimension_numbers<[1], [0], [0], [1], [0, 0, 1, 1], [], []>} : vector<128x16xbf16>, vector<16x32xbf16>, vector<128x32xf32> -> vector<128x32xf32>
    %70 = tpu.concatenate %66, %69 in 1 : vector<128x32xf32>, vector<128x32xf32> -> vector<128x64xf32>
    %c288 = arith.constant 288 : index
    %c0_32 = arith.constant 0 : index
    %71 = vector.load %arg2[%c288, %c0_32] : memref<944x128xbf16, #tpu.memory_space<vmem>>, vector<64x64xbf16>
    %72 = arith.truncf %70 : vector<128x64xf32> to vector<128x64xbf16>
    %cst_33 = arith.constant dense<0.000000e+00> : vector<128x64xf32>
    %73 = tpu.matmul %72, %71, %cst_33 {dimension_numbers = #tpu.dot_dimension_numbers<[1], [0], [0], [1], [0, 0, 1, 1], [], []>} : vector<128x64xbf16>, vector<64x64xbf16>, vector<128x64xf32> -> vector<128x64xf32>
    %c656 = arith.constant 656 : index
    %c0_34 = arith.constant 0 : index
    %74 = vector.load %arg2[%c656, %c0_34] : memref<944x128xbf16, #tpu.memory_space<vmem>>, vector<128x128xbf16>
    %75 = vector.extract_strided_slice %73 {offsets = [0, 0], sizes = [128, 32], strides = [1, 1]} : vector<128x64xf32> to vector<128x32xf32>
    %76 = arith.truncf %75 : vector<128x32xf32> to vector<128x32xbf16>
    %cst_35 = arith.constant dense<0.000000e+00> : vector<128x32xf32>
    %77 = tpu.matmul %74, %76, %cst_35 {dimension_numbers = #tpu.dot_dimension_numbers<[1], [0], [0], [1], [0, 0, 1, 1], [], []>} : vector<128x128xbf16>, vector<128x32xbf16>, vector<128x32xf32> -> vector<128x32xf32>
    %78 = vector.extract_strided_slice %73 {offsets = [0, 32], sizes = [128, 32], strides = [1, 1]} : vector<128x64xf32> to vector<128x32xf32>
    %79 = arith.addf %77, %78 : vector<128x32xf32>
    %c352 = arith.constant 352 : index
    %c0_36 = arith.constant 0 : index
    %80 = vector.load %arg2[%c352, %c0_36] : memref<944x128xbf16, #tpu.memory_space<vmem>>, vector<1x32xbf16>
    %81 = arith.extf %80 : vector<1x32xbf16> to vector<1x32xf32>
    %82 = vector.broadcast %81 : vector<1x32xf32> to vector<128x32xf32>
    %83 = arith.addf %79, %82 : vector<128x32xf32>
    %cst_37 = arith.constant 0.000000e+00 : f32
    %84 = vector.broadcast %cst_37 : f32 to vector<128x32xf32>
    %85 = arith.maximumf %83, %84 : vector<128x32xf32>
    %86 = arith.truncf %3 : vector<16x128xf32> to vector<16x128xbf16>
    %87 = arith.truncf %85 : vector<128x32xf32> to vector<128x32xbf16>
    %cst_38 = arith.constant dense<0.000000e+00> : vector<16x32xf32>
    %88 = tpu.matmul %86, %87, %cst_38 {dimension_numbers = #tpu.dot_dimension_numbers<[1], [0], [0], [1], [0, 0, 1, 1], [], []>} : vector<16x128xbf16>, vector<128x32xbf16>, vector<16x32xf32> -> vector<16x32xf32>
    %89 = tpu.concatenate %88, %63 in 1 : vector<16x32xf32>, vector<16x32xf32> -> vector<16x64xf32>
    %c448 = arith.constant 448 : index
    %c0_39 = arith.constant 0 : index
    %90 = vector.load %arg2[%c448, %c0_39] : memref<944x128xbf16, #tpu.memory_space<vmem>>, vector<64x32xbf16>
    %91 = arith.truncf %89 : vector<16x64xf32> to vector<16x64xbf16>
    %cst_40 = arith.constant dense<0.000000e+00> : vector<16x32xf32>
    %92 = tpu.matmul %91, %90, %cst_40 {dimension_numbers = #tpu.dot_dimension_numbers<[1], [0], [0], [1], [0, 0, 1, 1], [], []>} : vector<16x64xbf16>, vector<64x32xbf16>, vector<16x32xf32> -> vector<16x32xf32>
    %c512 = arith.constant 512 : index
    %c0_41 = arith.constant 0 : index
    %93 = vector.load %arg2[%c512, %c0_41] : memref<944x128xbf16, #tpu.memory_space<vmem>>, vector<1x32xbf16>
    %94 = arith.extf %93 : vector<1x32xbf16> to vector<1x32xf32>
    %95 = vector.broadcast %94 : vector<1x32xf32> to vector<16x32xf32>
    %96 = arith.addf %92, %95 : vector<16x32xf32>
    %97 = arith.addf %96, %63 : vector<16x32xf32>
    %cst_42 = arith.constant 0.000000e+00 : f32
    %98 = vector.broadcast %cst_42 : f32 to vector<16x32xf32>
    %99 = arith.maximumf %97, %98 : vector<16x32xf32>
    %c192 = arith.constant 192 : index
    %c0_43 = arith.constant 0 : index
    %100 = vector.load %arg2[%c192, %c0_43] : memref<944x128xbf16, #tpu.memory_space<vmem>>, vector<32x64xbf16>
    %101 = arith.truncf %99 : vector<16x32xf32> to vector<16x32xbf16>
    %cst_44 = arith.constant dense<0.000000e+00> : vector<16x64xf32>
    %102 = tpu.matmul %101, %100, %cst_44 {dimension_numbers = #tpu.dot_dimension_numbers<[1], [0], [0], [1], [0, 0, 1, 1], [], []>} : vector<16x32xbf16>, vector<32x64xbf16>, vector<16x64xf32> -> vector<16x64xf32>
    %c784_45 = arith.constant 784 : index
    %c0_46 = arith.constant 0 : index
    %103 = vector.load %arg2[%c784_45, %c0_46] : memref<944x128xbf16, #tpu.memory_space<vmem>>, vector<128x16xbf16>
    %104 = vector.extract_strided_slice %102 {offsets = [0, 0], sizes = [16, 32], strides = [1, 1]} : vector<16x64xf32> to vector<16x32xf32>
    %105 = arith.truncf %104 : vector<16x32xf32> to vector<16x32xbf16>
    %cst_47 = arith.constant dense<0.000000e+00> : vector<128x32xf32>
    %106 = tpu.matmul %103, %105, %cst_47 {dimension_numbers = #tpu.dot_dimension_numbers<[1], [0], [0], [1], [0, 0, 1, 1], [], []>} : vector<128x16xbf16>, vector<16x32xbf16>, vector<128x32xf32> -> vector<128x32xf32>
    %107 = vector.extract_strided_slice %21 {offsets = [0, 2], sizes = [128, 1], strides = [1, 1]} : vector<128x4xf32> to vector<128x1xf32>
    %108 = vector.broadcast %107 : vector<128x1xf32> to vector<128x32xf32>
    %109 = arith.mulf %108, %106 : vector<128x32xf32>
    %c912_48 = arith.constant 912 : index
    %c0_49 = arith.constant 0 : index
    %110 = vector.load %arg2[%c912_48, %c0_49] : memref<944x128xbf16, #tpu.memory_space<vmem>>, vector<16x128xbf16>
    %111 = arith.truncf %109 : vector<128x32xf32> to vector<128x32xbf16>
    %cst_50 = arith.constant dense<0.000000e+00> : vector<16x32xf32>
    %112 = tpu.matmul %110, %111, %cst_50 {dimension_numbers = #tpu.dot_dimension_numbers<[1], [0], [0], [1], [0, 0, 1, 1], [], []>} : vector<16x128xbf16>, vector<128x32xbf16>, vector<16x32xf32> -> vector<16x32xf32>
    %113 = vector.extract_strided_slice %102 {offsets = [0, 32], sizes = [16, 32], strides = [1, 1]} : vector<16x64xf32> to vector<16x32xf32>
    %114 = arith.addf %112, %113 : vector<16x32xf32>
    %c224 = arith.constant 224 : index
    %c0_51 = arith.constant 0 : index
    %115 = vector.load %arg2[%c224, %c0_51] : memref<944x128xbf16, #tpu.memory_space<vmem>>, vector<1x32xbf16>
    %116 = arith.extf %115 : vector<1x32xbf16> to vector<1x32xf32>
    %117 = vector.broadcast %116 : vector<1x32xf32> to vector<16x32xf32>
    %118 = arith.addf %114, %117 : vector<16x32xf32>
    %cst_52 = arith.constant 0.000000e+00 : f32
    %119 = vector.broadcast %cst_52 : f32 to vector<16x32xf32>
    %120 = arith.maximumf %118, %119 : vector<16x32xf32>
    %c240 = arith.constant 240 : index
    %c0_53 = arith.constant 0 : index
    %121 = vector.load %arg2[%c240, %c0_53] : memref<944x128xbf16, #tpu.memory_space<vmem>>, vector<32x64xbf16>
    %122 = arith.truncf %120 : vector<16x32xf32> to vector<16x32xbf16>
    %cst_54 = arith.constant dense<0.000000e+00> : vector<16x64xf32>
    %123 = tpu.matmul %122, %121, %cst_54 {dimension_numbers = #tpu.dot_dimension_numbers<[1], [0], [0], [1], [0, 0, 1, 1], [], []>} : vector<16x32xbf16>, vector<32x64xbf16>, vector<16x64xf32> -> vector<16x64xf32>
    %c784_55 = arith.constant 784 : index
    %c0_56 = arith.constant 0 : index
    %124 = vector.load %arg2[%c784_55, %c0_56] : memref<944x128xbf16, #tpu.memory_space<vmem>>, vector<128x16xbf16>
    %125 = vector.extract_strided_slice %123 {offsets = [0, 0], sizes = [16, 32], strides = [1, 1]} : vector<16x64xf32> to vector<16x32xf32>
    %126 = arith.truncf %125 : vector<16x32xf32> to vector<16x32xbf16>
    %cst_57 = arith.constant dense<0.000000e+00> : vector<128x32xf32>
    %127 = tpu.matmul %124, %126, %cst_57 {dimension_numbers = #tpu.dot_dimension_numbers<[1], [0], [0], [1], [0, 0, 1, 1], [], []>} : vector<128x16xbf16>, vector<16x32xbf16>, vector<128x32xf32> -> vector<128x32xf32>
    %128 = vector.extract_strided_slice %21 {offsets = [0, 3], sizes = [128, 1], strides = [1, 1]} : vector<128x4xf32> to vector<128x1xf32>
    %129 = vector.broadcast %128 : vector<128x1xf32> to vector<128x32xf32>
    %130 = arith.mulf %129, %127 : vector<128x32xf32>
    %c912_58 = arith.constant 912 : index
    %c0_59 = arith.constant 0 : index
    %131 = vector.load %arg2[%c912_58, %c0_59] : memref<944x128xbf16, #tpu.memory_space<vmem>>, vector<16x128xbf16>
    %132 = arith.truncf %130 : vector<128x32xf32> to vector<128x32xbf16>
    %cst_60 = arith.constant dense<0.000000e+00> : vector<16x32xf32>
    %133 = tpu.matmul %131, %132, %cst_60 {dimension_numbers = #tpu.dot_dimension_numbers<[1], [0], [0], [1], [0, 0, 1, 1], [], []>} : vector<16x128xbf16>, vector<128x32xbf16>, vector<16x32xf32> -> vector<16x32xf32>
    %134 = vector.extract_strided_slice %123 {offsets = [0, 32], sizes = [16, 32], strides = [1, 1]} : vector<16x64xf32> to vector<16x32xf32>
    %135 = arith.addf %133, %134 : vector<16x32xf32>
    %c272_61 = arith.constant 272 : index
    %c0_62 = arith.constant 0 : index
    %136 = vector.load %arg2[%c272_61, %c0_62] : memref<944x128xbf16, #tpu.memory_space<vmem>>, vector<1x32xbf16>
    %137 = arith.extf %136 : vector<1x32xbf16> to vector<1x32xf32>
    %138 = vector.broadcast %137 : vector<1x32xf32> to vector<16x32xf32>
    %139 = arith.addf %135, %138 : vector<16x32xf32>
    %cst_63 = arith.constant 0.000000e+00 : f32
    %140 = vector.broadcast %cst_63 : f32 to vector<16x32xf32>
    %141 = arith.maximumf %139, %140 : vector<16x32xf32>
    %142 = arith.truncf %2 : vector<128x16xf32> to vector<128x16xbf16>
    %143 = arith.truncf %141 : vector<16x32xf32> to vector<16x32xbf16>
    %cst_64 = arith.constant dense<0.000000e+00> : vector<128x32xf32>
    %144 = tpu.matmul %142, %143, %cst_64 {dimension_numbers = #tpu.dot_dimension_numbers<[1], [0], [0], [1], [0, 0, 1, 1], [], []>} : vector<128x16xbf16>, vector<16x32xbf16>, vector<128x32xf32> -> vector<128x32xf32>
    %145 = tpu.concatenate %85, %144 in 1 : vector<128x32xf32>, vector<128x32xf32> -> vector<128x64xf32>
    %c368 = arith.constant 368 : index
    %c0_65 = arith.constant 0 : index
    %146 = vector.load %arg2[%c368, %c0_65] : memref<944x128xbf16, #tpu.memory_space<vmem>>, vector<64x64xbf16>
    %147 = arith.truncf %145 : vector<128x64xf32> to vector<128x64xbf16>
    %cst_66 = arith.constant dense<0.000000e+00> : vector<128x64xf32>
    %148 = tpu.matmul %147, %146, %cst_66 {dimension_numbers = #tpu.dot_dimension_numbers<[1], [0], [0], [1], [0, 0, 1, 1], [], []>} : vector<128x64xbf16>, vector<64x64xbf16>, vector<128x64xf32> -> vector<128x64xf32>
    %c656_67 = arith.constant 656 : index
    %c0_68 = arith.constant 0 : index
    %149 = vector.load %arg2[%c656_67, %c0_68] : memref<944x128xbf16, #tpu.memory_space<vmem>>, vector<128x128xbf16>
    %150 = vector.extract_strided_slice %148 {offsets = [0, 0], sizes = [128, 32], strides = [1, 1]} : vector<128x64xf32> to vector<128x32xf32>
    %151 = arith.truncf %150 : vector<128x32xf32> to vector<128x32xbf16>
    %cst_69 = arith.constant dense<0.000000e+00> : vector<128x32xf32>
    %152 = tpu.matmul %149, %151, %cst_69 {dimension_numbers = #tpu.dot_dimension_numbers<[1], [0], [0], [1], [0, 0, 1, 1], [], []>} : vector<128x128xbf16>, vector<128x32xbf16>, vector<128x32xf32> -> vector<128x32xf32>
    %153 = vector.extract_strided_slice %148 {offsets = [0, 32], sizes = [128, 32], strides = [1, 1]} : vector<128x64xf32> to vector<128x32xf32>
    %154 = arith.addf %152, %153 : vector<128x32xf32>
    %c432 = arith.constant 432 : index
    %c0_70 = arith.constant 0 : index
    %155 = vector.load %arg2[%c432, %c0_70] : memref<944x128xbf16, #tpu.memory_space<vmem>>, vector<1x32xbf16>
    %156 = arith.extf %155 : vector<1x32xbf16> to vector<1x32xf32>
    %157 = vector.broadcast %156 : vector<1x32xf32> to vector<128x32xf32>
    %158 = arith.addf %154, %157 : vector<128x32xf32>
    %cst_71 = arith.constant 0.000000e+00 : f32
    %159 = vector.broadcast %cst_71 : f32 to vector<128x32xf32>
    %160 = arith.maximumf %158, %159 : vector<128x32xf32>
    %c928 = arith.constant 928 : index
    %c0_72 = arith.constant 0 : index
    %161 = vector.load %arg2[%c928, %c0_72] : memref<944x128xbf16, #tpu.memory_space<vmem>>, vector<2x128xbf16>
    %162 = arith.truncf %160 : vector<128x32xf32> to vector<128x32xbf16>
    %cst_73 = arith.constant dense<0.000000e+00> : vector<2x32xf32>
    %163 = tpu.matmul %161, %162, %cst_73 {dimension_numbers = #tpu.dot_dimension_numbers<[1], [0], [0], [1], [0, 0, 1, 1], [], []>} : vector<2x128xbf16>, vector<128x32xbf16>, vector<2x32xf32> -> vector<2x32xf32>
    %c528 = arith.constant 528 : index
    %c0_74 = arith.constant 0 : index
    %164 = vector.load %arg2[%c528, %c0_74] : memref<944x128xbf16, #tpu.memory_space<vmem>>, vector<32x64xbf16>
    %165 = arith.truncf %163 : vector<2x32xf32> to vector<2x32xbf16>
    %cst_75 = arith.constant dense<0.000000e+00> : vector<2x64xf32>
    %166 = tpu.matmul %165, %164, %cst_75 {dimension_numbers = #tpu.dot_dimension_numbers<[1], [0], [0], [1], [0, 0, 1, 1], [], []>} : vector<2x32xbf16>, vector<32x64xbf16>, vector<2x64xf32> -> vector<2x64xf32>
    %c560 = arith.constant 560 : index
    %c0_76 = arith.constant 0 : index
    %167 = vector.load %arg2[%c560, %c0_76] : memref<944x128xbf16, #tpu.memory_space<vmem>>, vector<1x64xbf16>
    %168 = arith.extf %167 : vector<1x64xbf16> to vector<1x64xf32>
    %169 = vector.broadcast %168 : vector<1x64xf32> to vector<2x64xf32>
    %170 = arith.addf %166, %169 : vector<2x64xf32>
    %cst_77 = arith.constant 0.000000e+00 : f32
    %171 = vector.broadcast %cst_77 : f32 to vector<2x64xf32>
    %172 = arith.maximumf %170, %171 : vector<2x64xf32>
    %c576 = arith.constant 576 : index
    %c0_78 = arith.constant 0 : index
    %173 = vector.load %arg2[%c576, %c0_78] : memref<944x128xbf16, #tpu.memory_space<vmem>>, vector<64x128xbf16>
    %174 = arith.truncf %172 : vector<2x64xf32> to vector<2x64xbf16>
    %cst_79 = arith.constant dense<0.000000e+00> : vector<2x128xf32>
    %175 = tpu.matmul %174, %173, %cst_79 {dimension_numbers = #tpu.dot_dimension_numbers<[1], [0], [0], [1], [0, 0, 1, 1], [], []>} : vector<2x64xbf16>, vector<64x128xbf16>, vector<2x128xf32> -> vector<2x128xf32>
    %c640 = arith.constant 640 : index
    %c0_80 = arith.constant 0 : index
    %176 = vector.load %arg2[%c640, %c0_80] : memref<944x128xbf16, #tpu.memory_space<vmem>>, vector<1x128xbf16>
    %177 = arith.extf %176 : vector<1x128xbf16> to vector<1x128xf32>
    %178 = vector.broadcast %177 : vector<1x128xf32> to vector<2x128xf32>
    %179 = arith.addf %175, %178 : vector<2x128xf32>
    %cst_81 = arith.constant 0.000000e+00 : f32
    %180 = vector.broadcast %cst_81 : f32 to vector<2x128xf32>
    %181 = arith.maximumf %179, %180 : vector<2x128xf32>
    %c0_82 = arith.constant 0 : index
    %c0_83 = arith.constant 0 : index
    %c0_84 = arith.constant 0 : index
    %182 = vector.load %arg3[%c0_82, %c0_83, %c0_84] : memref<1x2x128xf32, #tpu.memory_space<vmem>>, vector<1x2x128xf32>
    %183 = vector.shape_cast %182 : vector<1x2x128xf32> to vector<2x128xf32>
    %184 = vector.shape_cast %181 : vector<2x128xf32> to vector<1x2x128xf32>
    tpu.vector_store %arg3[%c0_82, %c0_83, %c0_84], %184 {strides = array<i32>} : memref<1x2x128xf32, #tpu.memory_space<vmem>>, vector<1x2x128xf32>,
    return
  }
  func.func @transform_0(%arg0: i32) -> (i32, i32) {
    %c0_i32 = arith.constant 0 : i32
    %c0_i32_0 = arith.constant 0 : i32
    return %arg0, %c0_i32 : i32, i32
  }
  func.func @transform_1(%arg0: i32) -> (i32, i32) {
    %c0_i32 = arith.constant 0 : i32
    %c0_i32_0 = arith.constant 0 : i32
    %c0_i32_1 = arith.constant 0 : i32
    return %c0_i32, %c0_i32_0 : i32, i32
  }
  func.func @transform_2(%arg0: i32) -> (i32, i32, i32) {
    %c0_i32 = arith.constant 0 : i32
    %c0_i32_0 = arith.constant 0 : i32
    %c0_i32_1 = arith.constant 0 : i32
    return %arg0, %c0_i32, %c0_i32_0 : i32, i32, i32
  }
}

</mosaic_0001>

<llo_original>
// kernel: tpu_custom_call.1
$region0: #{tpu_custom_call.1}
  #allocation0 [shape = 'u32[]', space=smem, size = 0x4, offset = 0x4, fixed_abs, tag = 'smem constant byte address 0x4 - core index']
  #allocation1 [shape = 'u32[144,128]{1,0:T(1,128)}', space=vmem, size = 0x12000, scoped, tag = 'internal scratch']
  %s0 = inlined_call_operand.hbm [shape: f32[2304,128], index: 0, kind: input, shape index: {}]
  %s1 = inlined_call_operand.hbm [shape: bf16[944,128], index: 1, kind: input, shape index: {}]
  %s2 = inlined_call_operand.hbm [shape: f32[8,2,128], index: 2, kind: output, shape index: {}]
  %s3 = sld [smem:[#allocation0]]
  $region49: #{tpu_custom_call.1} parent=0
    _
  %s5 = ssub.s32 1, %s3
  %s6 = scalar_select 0, %s5, %s3
  $region1: #{tpu_custom_call.1} parent=0
    #allocation2 [shape = 'u8[294912]{0}', space=vmem, size = 0x48000, scoped, tag = 'input window, operand 0']
    #allocation3 [shape = 's32[2]{0}', space=sflag, size = 0x8, scoped, tag = 'scoped memory for tpu_custom_call.1']
    #allocation4 [shape = 's32[2]{0}', space=sflag, size = 0x8, scoped, tag = 'scoped memory for tpu_custom_call.1']
    #allocation5 [shape = 'u8[241664]{0}', space=vmem, size = 0x3b000, scoped, tag = 'input window, operand 1, single buffered']
    #allocation6 [shape = 's32[1]{0}', space=sflag, size = 0x4, scoped, tag = 'scoped memory for tpu_custom_call.1']
    #allocation7 [shape = 'u8[2048]{0}', space=vmem, size = 0x800, scoped, tag = 'output window, operand 0']
    %7 = vsyncpa [#allocation3], 0
    %s8 = scalar_lea.sflag [#allocation3], 1
    %9 = vsyncpa %s8, 0
    %10 = vsyncpa [#allocation6], 0
    %11 = vsyncpa [#allocation4], 0
    %s12 = scalar_lea.sflag [#allocation4], 1
    %13 = vsyncpa %s12, 0
    loop: start=0, step=1, limit=10
    $region2: #{tpu_custom_call.1} parent=1 // loop_pre_header
      _
    $region3: #{tpu_custom_call.1} parent=1 // loop_header
      %s15 = sphi 0, %s19
      %p16 = scmp.ge.s32.totalorder %s15, 10
      %s25 = sphi 0, %s27
      %s28 = sphi 0, %s25
      %s29 = sphi 0, %s28
      %s45 = sphi 0, %s29
      %s49 = sphi 0, %s49
      %s51 = sphi 0, %s49
      %s52 = sphi 0, %s51
      %s66 = sphi 0, %s52
      %s72 = sphi 0, %s74
      %s75 = sphi 0, %s72
      %s76 = sphi 0, %s75
      %s92 = sphi 0, %s76
    $region4: #{tpu_custom_call.1} parent=1 // loop_header_branch
      %18 = sbr.rel (%p16) target = $region8
    $region5: #{tpu_custom_call.1} parent=1 // loop_body
      %s20 = ssub.s32 %s15, 1
      %s21 = ssub.s32 %s15, 2
      %s22 = sadd.s32 %s15, 1
      %s23 = ssub.s32 %s15, %s22
      %p24 = scmp.eq.s32.totalorder %s23, 0
      %s26 = sadd.s32 %s25, 1
      %s27 = scalar_select %p24, %s25, %s26
      %p30 = pneg %p24
      %p31 = scmp.eq.s32.totalorder %s15, 7
      %p32 = por %p30, %p31
      %p33 = scmp.ne.s32.totalorder %s25, %s28
      %p34 = scmp.eq.s32.totalorder %s15, 0
      %p35 = por %p33, %p34
      %p36 = scmp.ne.s32.totalorder %s25, %s28
      %p37 = scmp.eq.s32.totalorder %s20, 7
      %p38 = por %p36, %p37
      %p39 = scmp.ne.s32.totalorder %s28, %s29
      %p40 = scmp.eq.s32.totalorder %s20, 0
      %p41 = por %p39, %p40
      %p42 = scmp.ne.s32.totalorder %s28, %s29
      %p43 = scmp.eq.s32.totalorder %s21, 7
      %p44 = por %p42, %p43
      %p46 = scmp.ne.s32.totalorder %s29, %s45
      %p47 = scmp.eq.s32.totalorder %s21, 0
      %p48 = por %p46, %p47
      %s50 = sadd.s32 %s49, 1
      %p53 = scmp.eq.s32.totalorder %s15, 7
      %p54 = scmp.ne.s32.totalorder %s49, %s51
      %p55 = scmp.eq.s32.totalorder %s15, 0
      %p56 = por %p54, %p55
      %p57 = scmp.ne.s32.totalorder %s49, %s51
      %p58 = scmp.eq.s32.totalorder %s20, 7
      %p59 = por %p57, %p58
      %p60 = scmp.ne.s32.totalorder %s51, %s52
      %p61 = scmp.eq.s32.totalorder %s20, 0
      %p62 = por %p60, %p61
      %p63 = scmp.ne.s32.totalorder %s51, %s52
      %p64 = scmp.eq.s32.totalorder %s21, 7
      %p65 = por %p63, %p64
      %p67 = scmp.ne.s32.totalorder %s52, %s66
      %p68 = scmp.eq.s32.totalorder %s21, 0
      %p69 = por %p67, %p68
      %s70 = ssub.s32 %s15, %s22
      %p71 = scmp.eq.s32.totalorder %s70, 0
      %s73 = sadd.s32 %s72, 1
      %s74 = scalar_select %p71, %s72, %s73
      %p77 = pneg %p71
      %p78 = scmp.eq.s32.totalorder %s15, 7
      %p79 = por %p77, %p78
      %p80 = scmp.ne.s32.totalorder %s72, %s75
      %p81 = scmp.eq.s32.totalorder %s15, 0
      %p82 = por %p80, %p81
      %p83 = scmp.ne.s32.totalorder %s72, %s75
      %p84 = scmp.eq.s32.totalorder %s20, 7
      %p85 = por %p83, %p84
      %p86 = scmp.ne.s32.totalorder %s75, %s76
      %p87 = scmp.eq.s32.totalorder %s20, 0
      %p88 = por %p86, %p87
      %p89 = scmp.ne.s32.totalorder %s75, %s76
      %p90 = scmp.eq.s32.totalorder %s21, 7
      %p91 = por %p89, %p90
      %p93 = scmp.ne.s32.totalorder %s76, %s92
      %p94 = scmp.eq.s32.totalorder %s21, 0
      %p95 = por %p93, %p94
      %p96 = scmp.le.s32.totalorder 1, %s15
      %p97 = scmp.lt.s32.totalorder %s15, 9
      %p98 = pnand %p96, %p97
      %p99 = pneg %p98
      // Predicated region
      $region9: #{tpu_custom_call.1} parent=5 // pred_check
        _
      $region10: #{tpu_custom_call.1} parent=5 // pred_check_branch
        %101 = sbr.rel (%p98) target = $region12
      $region11: #{tpu_custom_call.1} parent=5 // pred_region
        %s102 = ssub.s32 %s15, 1
        // Predicated region
        $region13: #{tpu_custom_call.1} parent=11 // pred_check
          %p103 = pneg %p62
        $region14: #{tpu_custom_call.1} parent=11 // pred_check_branch
          %105 = sbr.rel (%p103) target = $region16
        $region15: #{tpu_custom_call.1} parent=11 // pred_region
          %s107 = ssub.s32 7552, 7552
          %108 = vsyncadd [#allocation6], %s107
          %s109 = sshll.u32 [#allocation5], 4
          %s110 = int_to_ptr.vmem [resolvable:$true] %s109
          %115 = dma.hbm_to_vmem [thread:$0]  %s1, 7552, %s110, [#allocation6], 64, 64, 4
        $region16: #{tpu_custom_call.1} parent=11 // pred_fallthru
          _
      $region12: #{tpu_custom_call.1} parent=5 // pred_fallthru
        _
      %p116 = scmp.lt.s32.totalorder %s15, 8
      // Predicated region
      $region17: #{tpu_custom_call.1} parent=5 // pred_check
        %p117 = pneg %p116
      $region18: #{tpu_custom_call.1} parent=5 // pred_check_branch
        %119 = sbr.rel (%p117) target = $region20
      $region19: #{tpu_custom_call.1} parent=5 // pred_region
        // Predicated region
        $region21: #{tpu_custom_call.1} parent=19 // pred_check
          %p120 = pneg %p35
        $region22: #{tpu_custom_call.1} parent=19 // pred_check_branch
          %122 = sbr.rel (%p120) target = $region24
        $region23: #{tpu_custom_call.1} parent=19 // pred_region
          %s123 = sand.u32 %s25, 1
          %s124 = scalar_lea.sflag [#allocation3], %s123
          %s125 = sand.u32 %s25, 1
          %s126 = smul.addr %s125, 288
          %s127 = scalar_lea.vmem [#allocation2], %s126
          %s128 = smul.u32 36, %s15
          %s130 = ssub.s32 4608, 4608
          %131 = vsyncadd %s124, %s130
          %s132 = smul.addr %s128, 128
          %s133 = scalar_lea.hbm %s0, %s132
          %s134 = sshll.u32 %s127, 4
          %s135 = int_to_ptr.vmem [resolvable:$true] %s134
          %140 = dma.hbm_to_vmem [thread:$0]  %s133, 4608, %s135, %s124, 128, 128, 8
        $region24: #{tpu_custom_call.1} parent=19 // pred_fallthru
          _
      $region20: #{tpu_custom_call.1} parent=5 // pred_fallthru
        _
      %p141 = scmp.le.s32.totalorder 1, %s15
      %p142 = scmp.lt.s32.totalorder %s15, 9
      %p143 = pnand %p141, %p142
      %p144 = pneg %p143
      // Predicated region
      $region25: #{tpu_custom_call.1} parent=5 // pred_check
        _
      $region26: #{tpu_custom_call.1} parent=5 // pred_check_branch
        %146 = sbr.rel (%p143) target = $region28
      $region27: #{tpu_custom_call.1} parent=5 // pred_region
        %s147 = ssub.s32 %s15, 1
        %s148 = sand.u32 %s28, 1
        %s149 = scalar_lea.sflag [#allocation3], %s148
        %s150 = sand.u32 %s28, 1
        %s151 = smul.addr %s150, 288
        %s152 = scalar_lea.vmem [#allocation2], %s151
        // Predicated region
        $region29: #{tpu_custom_call.1} parent=27 // pred_check
          %p153 = pneg %p41
        $region30: #{tpu_custom_call.1} parent=27 // pred_check_branch
          %155 = sbr.rel (%p153) target = $region32
        $region31: #{tpu_custom_call.1} parent=27 // pred_region
          %156 = dma.done %s149, 4608
        $region32: #{tpu_custom_call.1} parent=27 // pred_fallthru
          _
        // Predicated region
        $region33: #{tpu_custom_call.1} parent=27 // pred_check
          %p157 = pneg %p62
        $region34: #{tpu_custom_call.1} parent=27 // pred_check_branch
          %159 = sbr.rel (%p157) target = $region36
        $region35: #{tpu_custom_call.1} parent=27 // pred_region
          %160 = dma.done [#allocation6], 7552
        $region36: #{tpu_custom_call.1} parent=27 // pred_fallthru
          _
        %s161 = sand.u32 %s28, 1
        %s162 = scalar_lea.sflag [#allocation3], %s161
        %s163 = sand.u32 %s28, 1
        %s164 = smul.addr %s163, 288
        %s165 = scalar_lea.vmem [#allocation2], %s164
        %p166 = pneg %p41
        %p167 = pneg %p38
        %p168 = pneg %p62
        %p169 = pneg %p59
        %p170 = pneg %p88
        %p171 = pneg %p85
        %s172 = sand.u32 %s75, 1
        %s173 = scalar_lea.sflag [#allocation4], %s172
        %s174 = sand.u32 %s75, 1
        %s175 = smul.addr %s174, 2
        %s176 = scalar_lea.vmem [#allocation7], %s175
        %s177 = smul.u32 36, %s20
        %v179 = vld [vmem:[%s152] sm:$0xff]
        %v180 = vld [vmem:[%s152 + $0x8] sm:$0xff]
        %v181 = vld [vmem:[%s152 + $0x10] sm:$0xff]
        %v182 = vld [vmem:[%s152 + $0x18] sm:$0xff]
        %v183 = vld [vmem:[%s152 + $0x20] sm:$0xff]
        %v184 = vld [vmem:[%s152 + $0x28] sm:$0xff]
        %v185 = vld [vmem:[%s152 + $0x30] sm:$0xff]
        %v186 = vld [vmem:[%s152 + $0x38] sm:$0xff]
        %v187 = vld [vmem:[%s152 + $0x40] sm:$0xff]
        %v188 = vld [vmem:[%s152 + $0x48] sm:$0xff]
        %v189 = vld [vmem:[%s152 + $0x50] sm:$0xff]
        %v190 = vld [vmem:[%s152 + $0x58] sm:$0xff]
        %v191 = vld [vmem:[%s152 + $0x60] sm:$0xff]
        %v192 = vld [vmem:[%s152 + $0x68] sm:$0xff]
        %v193 = vld [vmem:[%s152 + $0x70] sm:$0xff]
        %v194 = vld [vmem:[%s152 + $0x78] sm:$0xff]
        %v195 = vld [vmem:[%s152 + $0x80] sm:$0xff]
        %v196 = vld [vmem:[%s152 + $0x88] sm:$0xff]
        %v197 = vld [vmem:[%s152 + $0x90] sm:$0xff]
        %v198 = vld [vmem:[%s152 + $0x98] sm:$0xff]
        %v199 = vld [vmem:[%s152 + $0xa0] sm:$0xff]
        %v200 = vld [vmem:[%s152 + $0xa8] sm:$0xff]
        %v201 = vld [vmem:[%s152 + $0xb0] sm:$0xff]
        %v202 = vld [vmem:[%s152 + $0xb8] sm:$0xff]
        %v203 = vld [vmem:[%s152 + $0xc0] sm:$0xff]
        %v204 = vld [vmem:[%s152 + $0xc8] sm:$0xff]
        %v205 = vld [vmem:[%s152 + $0xd0] sm:$0xff]
        %v206 = vld [vmem:[%s152 + $0xd8] sm:$0xff]
        %v207 = vld [vmem:[%s152 + $0xe0] sm:$0xff]
        %v208 = vld [vmem:[%s152 + $0xe8] sm:$0xff]
        %v209 = vld [vmem:[%s152 + $0xf0] sm:$0xff]
        %v210 = vld [vmem:[%s152 + $0xf8] sm:$0xff]
        %v211 = vld [vmem:[%s152 + $0x100] sm:$0xff]
        %v212 = vld [vmem:[%s152 + $0x108] sm:$0xff]
        %v213 = vld [vmem:[%s152 + $0x110] sm:$0xff]
        %v214 = vld [vmem:[%s152 + $0x118] sm:$0xff]
        %v215 = vld [vmem:[#allocation5] sm:$0x3]
        %v216 = vpack.c.bf16 %v180, %v179
        %v217 = vpack.c.bf16 %v182, %v181
        %v218 = vpack.c.bf16 %v184, %v183
        %v219 = vpack.c.bf16 %v186, %v185
        %v220 = vpack.c.bf16 %v188, %v187
        %v221 = vpack.c.bf16 %v190, %v189
        %v222 = vpack.c.bf16 %v192, %v191
        %v223 = vpack.c.bf16 %v194, %v193
        %v224 = vld [vmem:[#allocation5 + $0x8] sm:$0x1]
        %v225 = vunpack.c.l.bf16 %v224
        %v226 = vlaneseq
        %v227 = vshrl.u32 %v226, 7
        %v228 = vsub.s32 0, %v227
        %v229 = vrot.slane %v225, %v228
        %vm230 = vcmask 31744
        %v232 = vsel %vm230, %v216, 0
        %v235 = vsel %vm230, %v217, 0
        %v238 = vsel %vm230, %v218, 0
        %v241 = vsel %vm230, %v219, 0
        %v244 = vsel %vm230, %v220, 0
        %v247 = vsel %vm230, %v221, 0
        %v250 = vsel %vm230, %v222, 0
        %v253 = vsel %vm230, %v223, 0
        %vm255 = vcmask 1041408
        %v257 = vsel %vm255, %v215, 0
        %259 = vmatprep.subr.bf16.mxu0 0
        %260 = vmatpush1.bf16.msra.mxu0 0
        %261 = vmatprep.subr.bf16.mxu0 0
        %262 = vmatpush1.bf16.msra.mxu0 0
        %263 = vmatprep.subr.bf16.mxu0 0
        %264 = vmatpush1.bf16.msra.mxu0 0
        %265 = vmatprep.subr.bf16.mxu0 0
        %266 = vmatpush1.bf16.msra.mxu0 0
        %267 = vmatprep.subr.bf16.mxu0 0
        %268 = vmatpush1.bf16.msra.mxu0 0
        %269 = vmatprep.subr.bf16.mxu0 0
        %270 = vmatpush1.bf16.msra.mxu0 0
        %271 = vmatprep.subr.bf16.mxu0 0
        %272 = vmatpush1.bf16.msra.mxu0 0
        %273 = vmatprep.subr.bf16.mxu0 0
        %274 = vmatpush1.bf16.msra.mxu0 %v257
        %275 = vmatprep.subr.bf16.mxu0 0
        %276 = vmatpush2.bf16.msra.mxu0 0
        %277 = vmatprep.subr.bf16.mxu0 0
        %278 = vmatpush2.bf16.msra.mxu0 0
        %279 = vmatprep.subr.bf16.mxu0 0
        %280 = vmatpush2.bf16.msra.mxu0 0
        %281 = vmatprep.subr.bf16.mxu0 0
        %282 = vmatpush2.bf16.msra.mxu0 0
        %283 = vmatprep.subr.bf16.mxu0 0
        %284 = vmatpush2.bf16.msra.mxu0 0
        %285 = vmatprep.subr.bf16.mxu0 0
        %286 = vmatpush2.bf16.msra.mxu0 0
        %287 = vmatprep.subr.bf16.mxu0 0
        %288 = vmatpush2.bf16.msra.mxu0 0
        %289 = vmatprep.subr.bf16.mxu0 0
        %290 = vmatpush2.bf16.msra.mxu0 0
        %291 = vmatprep.mubr.bf16.mxu0 0
        %292 = vmatmul.mubr.bf16.gmra.mxu0 %v232
        %v293 = vpop.f32.mrf.mxu0
        %v294 = vadd.f32 %v229, %v293
        %v295 = vpop.f32.mrf.mxu0
        %v296 = vpop.f32.mrf.mxu0
        %v297 = vadd.f32 %v229, %v296
        %v298 = vpop.f32.mrf.mxu0
        %299 = vmatprep.mubr.bf16.mxu0 0
        %300 = vmatmul.mubr.bf16.gmra.mxu0 %v235
        %v301 = vpop.f32.mrf.mxu0
        %v302 = vadd.f32 %v229, %v301
        %v303 = vpop.f32.mrf.mxu0
        %v304 = vpop.f32.mrf.mxu0
        %v305 = vadd.f32 %v229, %v304
        %v306 = vpop.f32.mrf.mxu0
        %307 = vmatprep.mubr.bf16.mxu0 0
        %308 = vmatmul.mubr.bf16.gmra.mxu0 %v238
        %v309 = vpop.f32.mrf.mxu0
        %v310 = vadd.f32 %v229, %v309
        %v311 = vpop.f32.mrf.mxu0
        %v312 = vpop.f32.mrf.mxu0
        %v313 = vadd.f32 %v229, %v312
        %v314 = vpop.f32.mrf.mxu0
        %315 = vmatprep.mubr.bf16.mxu0 0
        %316 = vmatmul.mubr.bf16.gmra.mxu0 %v241
        %v317 = vpop.f32.mrf.mxu0
        %v318 = vadd.f32 %v229, %v317
        %v319 = vpop.f32.mrf.mxu0
        %v320 = vpop.f32.mrf.mxu0
        %v321 = vadd.f32 %v229, %v320
        %v322 = vpop.f32.mrf.mxu0
        %323 = vmatprep.mubr.bf16.mxu0 0
        %324 = vmatmul.mubr.bf16.gmra.mxu0 %v244
        %v325 = vpop.f32.mrf.mxu0
        %v326 = vadd.f32 %v229, %v325
        %v327 = vpop.f32.mrf.mxu0
        %v328 = vpop.f32.mrf.mxu0
        %v329 = vadd.f32 %v229, %v328
        %v330 = vpop.f32.mrf.mxu0
        %331 = vmatprep.mubr.bf16.mxu0 0
        %332 = vmatmul.mubr.bf16.gmra.mxu0 %v247
        %v333 = vpop.f32.mrf.mxu0
        %v334 = vadd.f32 %v229, %v333
        %v335 = vpop.f32.mrf.mxu0
        %v336 = vpop.f32.mrf.mxu0
        %v337 = vadd.f32 %v229, %v336
        %v338 = vpop.f32.mrf.mxu0
        %339 = vmatprep.mubr.bf16.mxu0 0
        %340 = vmatmul.mubr.bf16.gmra.mxu0 %v250
        %v341 = vpop.f32.mrf.mxu0
        %v342 = vadd.f32 %v229, %v341
        %v343 = vpop.f32.mrf.mxu0
        %v344 = vpop.f32.mrf.mxu0
        %v345 = vadd.f32 %v229, %v344
        %v346 = vpop.f32.mrf.mxu0
        %347 = vmatprep.mubr.bf16.mxu0 0
        %348 = vmatmul.mubr.bf16.gmra.mxu0 %v253
        %v349 = vpop.f32.mrf.mxu0
        %v350 = vadd.f32 %v229, %v349
        %v351 = vpop.f32.mrf.mxu0
        %v352 = vpop.f32.mrf.mxu0
        %v353 = vadd.f32 %v229, %v352
        %v354 = vpop.f32.mrf.mxu0
        %355 = vdwg.mxu0
        %v356 = vtanh.pop %v294
        %v357 = vtanh.pop %v297
        %v358 = vtanh.pop %v302
        %v359 = vtanh.pop %v305
        %v360 = vtanh.pop %v310
        %v361 = vtanh.pop %v313
        %v362 = vtanh.pop %v318
        %v363 = vtanh.pop %v321
        %v364 = vtanh.pop %v326
        %v365 = vtanh.pop %v329
        %v366 = vtanh.pop %v334
        %v367 = vtanh.pop %v337
        %v368 = vtanh.pop %v342
        %v369 = vtanh.pop %v345
        %v370 = vtanh.pop %v350
        %v371 = vtanh.pop %v353
        %v372 = vld [vmem:[#allocation5 + $0x10] sm:$0xf]
        %v373 = vld [vmem:[#allocation5 + $0x14] sm:$0xf]
        %v374 = vld [vmem:[#allocation5 + $0x18] sm:$0xf]
        %v375 = vld [vmem:[#allocation5 + $0x1c] sm:$0xf]
        %v376 = vld [vmem:[#allocation5 + $0x20] sm:$0xf]
        %v377 = vld [vmem:[#allocation5 + $0x24] sm:$0xf]
        %v378 = vld [vmem:[#allocation5 + $0x28] sm:$0xf]
        %v379 = vld [vmem:[#allocation5 + $0x2c] sm:$0xf]
        %v380 = vpack.c.bf16 %v357, %v356
        %v381 = vpack.c.bf16 %v359, %v358
        %v382 = vpack.c.bf16 %v361, %v360
        %v383 = vpack.c.bf16 %v363, %v362
        %v384 = vpack.c.bf16 %v365, %v364
        %v385 = vpack.c.bf16 %v367, %v366
        %v386 = vpack.c.bf16 %v369, %v368
        %v387 = vpack.c.bf16 %v371, %v370
        %v388 = vld [vmem:[#allocation5 + $0x30] sm:$0x1]
        %v389 = vunpack.c.l.bf16 %v388
        %v390 = vlaneseq
        %v391 = vshrl.u32 %v390, 7
        %v392 = vsub.s32 0, %v391
        %v393 = vrot.slane %v389, %v392
        %v402 = vunpack.c.l.b16 %v372
        %v403 = vunpack.c.l.b16 %v373
        %v404 = vunpack.c.l.b16 %v374
        %v405 = vunpack.c.l.b16 %v375
        %v406 = vunpack.c.l.b16 %v376
        %v407 = vunpack.c.l.b16 %v377
        %v408 = vunpack.c.l.b16 %v378
        %v409 = vunpack.c.l.b16 %v379
        %v410 = vpack.c.b16 %v403, %v402
        %v411 = vpack.c.b16 %v405, %v404
        %v412 = vpack.c.b16 %v407, %v406
        %v413 = vpack.c.b16 %v409, %v408
        %vm418 = vcmask 523264
        %v420 = vsel %vm418, %v380, 0
        %v423 = vsel %vm418, %v381, 0
        %v426 = vsel %vm418, %v382, 0
        %v429 = vsel %vm418, %v383, 0
        %v432 = vsel %vm418, %v384, 0
        %v435 = vsel %vm418, %v385, 0
        %v438 = vsel %vm418, %v386, 0
        %v441 = vsel %vm418, %v387, 0
        %443 = vmatprep.subr.bf16.mxu0 0
        %444 = vmatpush1.bf16.msra.mxu0 0
        %445 = vmatprep.subr.bf16.mxu0 0
        %446 = vmatpush1.bf16.msra.mxu0 0
        %447 = vmatprep.subr.bf16.mxu0 0
        %448 = vmatpush1.bf16.msra.mxu0 0
        %449 = vmatprep.subr.bf16.mxu0 0
        %450 = vmatpush1.bf16.msra.mxu0 0
        %451 = vmatprep.subr.bf16.mxu0 0
        %452 = vmatpush1.bf16.msra.mxu0 %v413
        %453 = vmatprep.subr.bf16.mxu0 0
        %454 = vmatpush1.bf16.msra.mxu0 %v412
        %455 = vmatprep.subr.bf16.mxu0 0
        %456 = vmatpush1.bf16.msra.mxu0 %v411
        %457 = vmatprep.subr.bf16.mxu0 0
        %458 = vmatpush1.bf16.msra.mxu0 %v410
        %459 = vmatprep.subr.bf16.mxu0 0
        %460 = vmatpush2.bf16.msra.mxu0 0
        %461 = vmatprep.subr.bf16.mxu0 0
        %462 = vmatpush2.bf16.msra.mxu0 0
        %463 = vmatprep.subr.bf16.mxu0 0
        %464 = vmatpush2.bf16.msra.mxu0 0
        %465 = vmatprep.subr.bf16.mxu0 0
        %466 = vmatpush2.bf16.msra.mxu0 0
        %467 = vmatprep.subr.bf16.mxu0 0
        %468 = vmatpush2.bf16.msra.mxu0 0
        %469 = vmatprep.subr.bf16.mxu0 0
        %470 = vmatpush2.bf16.msra.mxu0 0
        %471 = vmatprep.subr.bf16.mxu0 0
        %472 = vmatpush2.bf16.msra.mxu0 0
        %473 = vmatprep.subr.bf16.mxu0 0
        %474 = vmatpush2.bf16.msra.mxu0 0
        %475 = vmatprep.mubr.bf16.mxu0 0
        %476 = vmatmul.mubr.bf16.gmra.mxu0 %v420
        %v477 = vpop.f32.mrf.mxu0
        %v478 = vadd.f32 %v393, %v477
        %v479 = vpop.f32.mrf.mxu0
        %v480 = vpop.f32.mrf.mxu0
        %v481 = vadd.f32 %v393, %v480
        %v482 = vpop.f32.mrf.mxu0
        %483 = vmatprep.mubr.bf16.mxu0 0
        %484 = vmatmul.mubr.bf16.gmra.mxu0 %v423
        %v485 = vpop.f32.mrf.mxu0
        %v486 = vadd.f32 %v393, %v485
        %v487 = vpop.f32.mrf.mxu0
        %v488 = vpop.f32.mrf.mxu0
        %v489 = vadd.f32 %v393, %v488
        %v490 = vpop.f32.mrf.mxu0
        %491 = vmatprep.mubr.bf16.mxu0 0
        %492 = vmatmul.mubr.bf16.gmra.mxu0 %v426
        %v493 = vpop.f32.mrf.mxu0
        %v494 = vadd.f32 %v393, %v493
        %v495 = vpop.f32.mrf.mxu0
        %v496 = vpop.f32.mrf.mxu0
        %v497 = vadd.f32 %v393, %v496
        %v498 = vpop.f32.mrf.mxu0
        %499 = vmatprep.mubr.bf16.mxu0 0
        %500 = vmatmul.mubr.bf16.gmra.mxu0 %v429
        %v501 = vpop.f32.mrf.mxu0
        %v502 = vadd.f32 %v393, %v501
        %v503 = vpop.f32.mrf.mxu0
        %v504 = vpop.f32.mrf.mxu0
        %v505 = vadd.f32 %v393, %v504
        %v506 = vpop.f32.mrf.mxu0
        %507 = vmatprep.mubr.bf16.mxu0 0
        %508 = vmatmul.mubr.bf16.gmra.mxu0 %v432
        %v509 = vpop.f32.mrf.mxu0
        %v510 = vadd.f32 %v393, %v509
        %v511 = vpop.f32.mrf.mxu0
        %v512 = vpop.f32.mrf.mxu0
        %v513 = vadd.f32 %v393, %v512
        %v514 = vpop.f32.mrf.mxu0
        %515 = vmatprep.mubr.bf16.mxu0 0
        %516 = vmatmul.mubr.bf16.gmra.mxu0 %v435
        %v517 = vpop.f32.mrf.mxu0
        %v518 = vadd.f32 %v393, %v517
        %v519 = vpop.f32.mrf.mxu0
        %v520 = vpop.f32.mrf.mxu0
        %v521 = vadd.f32 %v393, %v520
        %v522 = vpop.f32.mrf.mxu0
        %523 = vmatprep.mubr.bf16.mxu0 0
        %524 = vmatmul.mubr.bf16.gmra.mxu0 %v438
        %v525 = vpop.f32.mrf.mxu0
        %v526 = vadd.f32 %v393, %v525
        %v527 = vpop.f32.mrf.mxu0
        %v528 = vpop.f32.mrf.mxu0
        %v529 = vadd.f32 %v393, %v528
        %v530 = vpop.f32.mrf.mxu0
        %531 = vmatprep.mubr.bf16.mxu0 0
        %532 = vmatmul.mubr.bf16.gmra.mxu0 %v441
        %v533 = vpop.f32.mrf.mxu0
        %v534 = vadd.f32 %v393, %v533
        %v535 = vpop.f32.mrf.mxu0
        %v536 = vpop.f32.mrf.mxu0
        %v537 = vadd.f32 %v393, %v536
        %v538 = vpop.f32.mrf.mxu0
        %539 = vdwg.mxu0
        %541 = vset.pattern.permute.xlu0 4
        %542 = vperm.xlu0 %541, %v179
        %v543 = vpop.permute.xlu0 %542
        %546 = vset.pattern.permute.xlu0 4
        %547 = vperm.xlu0 %546, %v180
        %v548 = vpop.permute.xlu0 %547
        %551 = vset.pattern.permute.xlu0 4
        %552 = vperm.xlu0 %551, %v181
        %v553 = vpop.permute.xlu0 %552
        %556 = vset.pattern.permute.xlu0 4
        %557 = vperm.xlu0 %556, %v182
        %v558 = vpop.permute.xlu0 %557
        %561 = vset.pattern.permute.xlu0 4
        %562 = vperm.xlu0 %561, %v183
        %v563 = vpop.permute.xlu0 %562
        %566 = vset.pattern.permute.xlu0 4
        %567 = vperm.xlu0 %566, %v184
        %v568 = vpop.permute.xlu0 %567
        %571 = vset.pattern.permute.xlu0 4
        %572 = vperm.xlu0 %571, %v185
        %v573 = vpop.permute.xlu0 %572
        %576 = vset.pattern.permute.xlu0 4
        %577 = vperm.xlu0 %576, %v186
        %v578 = vpop.permute.xlu0 %577
        %581 = vset.pattern.permute.xlu0 4
        %582 = vperm.xlu0 %581, %v187
        %v583 = vpop.permute.xlu0 %582
        %586 = vset.pattern.permute.xlu0 4
        %587 = vperm.xlu0 %586, %v188
        %v588 = vpop.permute.xlu0 %587
        %591 = vset.pattern.permute.xlu0 4
        %592 = vperm.xlu0 %591, %v189
        %v593 = vpop.permute.xlu0 %592
        %596 = vset.pattern.permute.xlu0 4
        %597 = vperm.xlu0 %596, %v190
        %v598 = vpop.permute.xlu0 %597
        %601 = vset.pattern.permute.xlu0 4
        %602 = vperm.xlu0 %601, %v191
        %v603 = vpop.permute.xlu0 %602
        %606 = vset.pattern.permute.xlu0 4
        %607 = vperm.xlu0 %606, %v192
        %v608 = vpop.permute.xlu0 %607
        %611 = vset.pattern.permute.xlu0 4
        %612 = vperm.xlu0 %611, %v193
        %v613 = vpop.permute.xlu0 %612
        %616 = vset.pattern.permute.xlu0 4
        %617 = vperm.xlu0 %616, %v194
        %v618 = vpop.permute.xlu0 %617
        %v620 = vmul.f32 %v543, %v478
        %v621 = vmul.f32 %v548, %v481
        %v622 = vmul.f32 %v553, %v486
        %v623 = vmul.f32 %v558, %v489
        %v624 = vmul.f32 %v563, %v494
        %v625 = vmul.f32 %v568, %v497
        %v626 = vmul.f32 %v573, %v502
        %v627 = vmul.f32 %v578, %v505
        %v628 = vmul.f32 %v583, %v510
        %v629 = vmul.f32 %v588, %v513
        %v630 = vmul.f32 %v593, %v518
        %v631 = vmul.f32 %v598, %v521
        %v632 = vmul.f32 %v603, %v526
        %v633 = vmul.f32 %v608, %v529
        %v634 = vmul.f32 %v613, %v534
        %v635 = vmul.f32 %v618, %v537
        %v636 = vld [vmem:[#allocation5 + $0x38] sm:$0xf]
        %v637 = vpack.c.bf16 %v214, %v213
        %vm638 = vcmask 64512
        %v640 = vsel %vm638, %v637, 0
        %vm642 = vcmask 1043456
        %v644 = vsel %vm642, %v636, 0
        %646 = vmatprep.subr.bf16.mxu0 0
        %647 = vmatpush1.bf16.msra.mxu0 0
        %648 = vmatprep.subr.bf16.mxu0 0
        %649 = vmatpush1.bf16.msra.mxu0 0
        %650 = vmatprep.subr.bf16.mxu0 0
        %651 = vmatpush1.bf16.msra.mxu0 0
        %652 = vmatprep.subr.bf16.mxu0 0
        %653 = vmatpush1.bf16.msra.mxu0 0
        %654 = vmatprep.subr.bf16.mxu0 0
        %655 = vmatpush1.bf16.msra.mxu0 0
        %656 = vmatprep.subr.bf16.mxu0 0
        %657 = vmatpush1.bf16.msra.mxu0 0
        %658 = vmatprep.subr.bf16.mxu0 0
        %659 = vmatpush1.bf16.msra.mxu0 0
        %660 = vmatprep.subr.bf16.mxu0 0
        %661 = vmatpush1.bf16.msra.mxu0 %v644
        %662 = vmatprep.subr.bf16.mxu0 0
        %663 = vmatpush2.bf16.msra.mxu0 0
        %664 = vmatprep.subr.bf16.mxu0 0
        %665 = vmatpush2.bf16.msra.mxu0 0
        %666 = vmatprep.subr.bf16.mxu0 0
        %667 = vmatpush2.bf16.msra.mxu0 0
        %668 = vmatprep.subr.bf16.mxu0 0
        %669 = vmatpush2.bf16.msra.mxu0 0
        %670 = vmatprep.subr.bf16.mxu0 0
        %671 = vmatpush2.bf16.msra.mxu0 0
        %672 = vmatprep.subr.bf16.mxu0 0
        %673 = vmatpush2.bf16.msra.mxu0 0
        %674 = vmatprep.subr.bf16.mxu0 0
        %675 = vmatpush2.bf16.msra.mxu0 0
        %676 = vmatprep.subr.bf16.mxu0 0
        %677 = vmatpush2.bf16.msra.mxu0 0
        %678 = vmatprep.mubr.bf16.mxu0 0
        %679 = vmatmul.mubr.bf16.gmra.mxu0 %v640
        %v680 = vpop.f32.mrf.mxu0
        %v681 = vadd.f32 0.0, %v680
        %v682 = vpop.f32.mrf.mxu0
        %v683 = vpop.f32.mrf.mxu0
        %v684 = vadd.f32 0.0, %v683
        %v685 = vpop.f32.mrf.mxu0
        %686 = vdwg.mxu0
        %v687 = vld [vmem:[#allocation5 + $0x188] sm:$0xf]
        %v688 = vld [vmem:[#allocation5 + $0x18c] sm:$0xf]
        %v689 = vld [vmem:[#allocation5 + $0x190] sm:$0xf]
        %v690 = vld [vmem:[#allocation5 + $0x194] sm:$0xf]
        %v691 = vld [vmem:[#allocation5 + $0x198] sm:$0xf]
        %v692 = vld [vmem:[#allocation5 + $0x19c] sm:$0xf]
        %v693 = vld [vmem:[#allocation5 + $0x1a0] sm:$0xf]
        %v694 = vld [vmem:[#allocation5 + $0x1a4] sm:$0xf]
        %v695 = vld [vmem:[#allocation5 + $0x1a8] sm:$0xf]
        %v696 = vld [vmem:[#allocation5 + $0x1ac] sm:$0xf]
        %v697 = vld [vmem:[#allocation5 + $0x1b0] sm:$0xf]
        %v698 = vld [vmem:[#allocation5 + $0x1b4] sm:$0xf]
        %v699 = vld [vmem:[#allocation5 + $0x1b8] sm:$0xf]
        %v700 = vld [vmem:[#allocation5 + $0x1bc] sm:$0xf]
        %v701 = vld [vmem:[#allocation5 + $0x1c0] sm:$0xf]
        %v702 = vld [vmem:[#allocation5 + $0x1c4] sm:$0xf]
        %v703 = vpack.c.bf16 %v684, %v681
        %v720 = vunpack.c.l.b16 %v687
        %v721 = vunpack.c.l.b16 %v688
        %v722 = vunpack.c.l.b16 %v689
        %v723 = vunpack.c.l.b16 %v690
        %v724 = vunpack.c.l.b16 %v691
        %v725 = vunpack.c.l.b16 %v692
        %v726 = vunpack.c.l.b16 %v693
        %v727 = vunpack.c.l.b16 %v694
        %v728 = vunpack.c.l.b16 %v695
        %v729 = vunpack.c.l.b16 %v696
        %v730 = vunpack.c.l.b16 %v697
        %v731 = vunpack.c.l.b16 %v698
        %v732 = vunpack.c.l.b16 %v699
        %v733 = vunpack.c.l.b16 %v700
        %v734 = vunpack.c.l.b16 %v701
        %v735 = vunpack.c.l.b16 %v702
        %v736 = vpack.c.b16 %v721, %v720
        %v737 = vpack.c.b16 %v723, %v722
        %v738 = vpack.c.b16 %v725, %v724
        %v739 = vpack.c.b16 %v727, %v726
        %v740 = vpack.c.b16 %v729, %v728
        %v741 = vpack.c.b16 %v731, %v730
        %v742 = vpack.c.b16 %v733, %v732
        %v743 = vpack.c.b16 %v735, %v734
        %vm744 = vcmask 130048
        %v746 = vsel %vm744, %v736, 0
        %v749 = vsel %vm744, %v737, 0
        %v752 = vsel %vm744, %v738, 0
        %v755 = vsel %vm744, %v739, 0
        %v758 = vsel %vm744, %v740, 0
        %v761 = vsel %vm744, %v741, 0
        %v764 = vsel %vm744, %v742, 0
        %v767 = vsel %vm744, %v743, 0
        %769 = vmatprep.subr.bf16.mxu0 0
        %770 = vmatpush1.bf16.msra.mxu0 0
        %771 = vmatprep.subr.bf16.mxu0 0
        %772 = vmatpush1.bf16.msra.mxu0 0
        %773 = vmatprep.subr.bf16.mxu0 0
        %774 = vmatpush1.bf16.msra.mxu0 0
        %775 = vmatprep.subr.bf16.mxu0 0
        %776 = vmatpush1.bf16.msra.mxu0 0
        %777 = vmatprep.subr.bf16.mxu0 0
        %778 = vmatpush1.bf16.msra.mxu0 0
        %779 = vmatprep.subr.bf16.mxu0 0
        %780 = vmatpush1.bf16.msra.mxu0 0
        %781 = vmatprep.subr.bf16.mxu0 0
        %782 = vmatpush1.bf16.msra.mxu0 0
        %783 = vmatprep.subr.bf16.mxu0 0
        %784 = vmatpush1.bf16.msra.mxu0 %v703
        %785 = vmatprep.subr.bf16.mxu0 0
        %786 = vmatpush2.bf16.msra.mxu0 0
        %787 = vmatprep.subr.bf16.mxu0 0
        %788 = vmatpush2.bf16.msra.mxu0 0
        %789 = vmatprep.subr.bf16.mxu0 0
        %790 = vmatpush2.bf16.msra.mxu0 0
        %791 = vmatprep.subr.bf16.mxu0 0
        %792 = vmatpush2.bf16.msra.mxu0 0
        %793 = vmatprep.subr.bf16.mxu0 0
        %794 = vmatpush2.bf16.msra.mxu0 0
        %795 = vmatprep.subr.bf16.mxu0 0
        %796 = vmatpush2.bf16.msra.mxu0 0
        %797 = vmatprep.subr.bf16.mxu0 0
        %798 = vmatpush2.bf16.msra.mxu0 0
        %799 = vmatprep.subr.bf16.mxu0 0
        %800 = vmatpush2.bf16.msra.mxu0 0
        %801 = vmatprep.mubr.bf16.mxu0 0
        %802 = vmatmul.mubr.bf16.gmra.mxu0 %v746
        %v803 = vpop.f32.mrf.mxu0
        %v804 = vadd.f32 0.0, %v803
        %v805 = vpop.f32.mrf.mxu0
        %v806 = vpop.f32.mrf.mxu0
        %v807 = vadd.f32 0.0, %v806
        %v808 = vpop.f32.mrf.mxu0
        %809 = vmatprep.mubr.bf16.mxu0 0
        %810 = vmatmul.mubr.bf16.gmra.mxu0 %v749
        %v811 = vpop.f32.mrf.mxu0
        %v812 = vadd.f32 0.0, %v811
        %v813 = vpop.f32.mrf.mxu0
        %v814 = vpop.f32.mrf.mxu0
        %v815 = vadd.f32 0.0, %v814
        %v816 = vpop.f32.mrf.mxu0
        %817 = vmatprep.mubr.bf16.mxu0 0
        %818 = vmatmul.mubr.bf16.gmra.mxu0 %v752
        %v819 = vpop.f32.mrf.mxu0
        %v820 = vadd.f32 0.0, %v819
        %v821 = vpop.f32.mrf.mxu0
        %v822 = vpop.f32.mrf.mxu0
        %v823 = vadd.f32 0.0, %v822
        %v824 = vpop.f32.mrf.mxu0
        %825 = vmatprep.mubr.bf16.mxu0 0
        %826 = vmatmul.mubr.bf16.gmra.mxu0 %v755
        %v827 = vpop.f32.mrf.mxu0
        %v828 = vadd.f32 0.0, %v827
        %v829 = vpop.f32.mrf.mxu0
        %v830 = vpop.f32.mrf.mxu0
        %v831 = vadd.f32 0.0, %v830
        %v832 = vpop.f32.mrf.mxu0
        %833 = vmatprep.mubr.bf16.mxu0 0
        %834 = vmatmul.mubr.bf16.gmra.mxu0 %v758
        %v835 = vpop.f32.mrf.mxu0
        %v836 = vadd.f32 0.0, %v835
        %v837 = vpop.f32.mrf.mxu0
        %v838 = vpop.f32.mrf.mxu0
        %v839 = vadd.f32 0.0, %v838
        %v840 = vpop.f32.mrf.mxu0
        %841 = vmatprep.mubr.bf16.mxu0 0
        %842 = vmatmul.mubr.bf16.gmra.mxu0 %v761
        %v843 = vpop.f32.mrf.mxu0
        %v844 = vadd.f32 0.0, %v843
        %v845 = vpop.f32.mrf.mxu0
        %v846 = vpop.f32.mrf.mxu0
        %v847 = vadd.f32 0.0, %v846
        %v848 = vpop.f32.mrf.mxu0
        %849 = vmatprep.mubr.bf16.mxu0 0
        %850 = vmatmul.mubr.bf16.gmra.mxu0 %v764
        %v851 = vpop.f32.mrf.mxu0
        %v852 = vadd.f32 0.0, %v851
        %v853 = vpop.f32.mrf.mxu0
        %v854 = vpop.f32.mrf.mxu0
        %v855 = vadd.f32 0.0, %v854
        %v856 = vpop.f32.mrf.mxu0
        %857 = vmatprep.mubr.bf16.mxu0 0
        %858 = vmatmul.mubr.bf16.gmra.mxu0 %v767
        %v859 = vpop.f32.mrf.mxu0
        %v860 = vadd.f32 0.0, %v859
        %v861 = vpop.f32.mrf.mxu0
        %v862 = vpop.f32.mrf.mxu0
        %v863 = vadd.f32 0.0, %v862
        %v864 = vpop.f32.mrf.mxu0
        %865 = vdwg.mxu0
        %867 = vset.pattern.permute.xlu0 0
        %868 = vperm.xlu0 %867, %v620
        %v869 = vpop.permute.xlu0 %868
        %872 = vset.pattern.permute.xlu0 0
        %873 = vperm.xlu0 %872, %v621
        %v874 = vpop.permute.xlu0 %873
        %877 = vset.pattern.permute.xlu0 0
        %878 = vperm.xlu0 %877, %v622
        %v879 = vpop.permute.xlu0 %878
        %882 = vset.pattern.permute.xlu0 0
        %883 = vperm.xlu0 %882, %v623
        %v884 = vpop.permute.xlu0 %883
        %887 = vset.pattern.permute.xlu0 0
        %888 = vperm.xlu0 %887, %v624
        %v889 = vpop.permute.xlu0 %888
        %892 = vset.pattern.permute.xlu0 0
        %893 = vperm.xlu0 %892, %v625
        %v894 = vpop.permute.xlu0 %893
        %897 = vset.pattern.permute.xlu0 0
        %898 = vperm.xlu0 %897, %v626
        %v899 = vpop.permute.xlu0 %898
        %902 = vset.pattern.permute.xlu0 0
        %903 = vperm.xlu0 %902, %v627
        %v904 = vpop.permute.xlu0 %903
        %907 = vset.pattern.permute.xlu0 0
        %908 = vperm.xlu0 %907, %v628
        %v909 = vpop.permute.xlu0 %908
        %912 = vset.pattern.permute.xlu0 0
        %913 = vperm.xlu0 %912, %v629
        %v914 = vpop.permute.xlu0 %913
        %917 = vset.pattern.permute.xlu0 0
        %918 = vperm.xlu0 %917, %v630
        %v919 = vpop.permute.xlu0 %918
        %922 = vset.pattern.permute.xlu0 0
        %923 = vperm.xlu0 %922, %v631
        %v924 = vpop.permute.xlu0 %923
        %927 = vset.pattern.permute.xlu0 0
        %928 = vperm.xlu0 %927, %v632
        %v929 = vpop.permute.xlu0 %928
        %932 = vset.pattern.permute.xlu0 0
        %933 = vperm.xlu0 %932, %v633
        %v934 = vpop.permute.xlu0 %933
        %937 = vset.pattern.permute.xlu0 0
        %938 = vperm.xlu0 %937, %v634
        %v939 = vpop.permute.xlu0 %938
        %942 = vset.pattern.permute.xlu0 0
        %943 = vperm.xlu0 %942, %v635
        %v944 = vpop.permute.xlu0 %943
        %v946 = vmul.f32 %v869, %v804
        %v947 = vmul.f32 %v874, %v807
        %v948 = vmul.f32 %v879, %v812
        %v949 = vmul.f32 %v884, %v815
        %v950 = vmul.f32 %v889, %v820
        %v951 = vmul.f32 %v894, %v823
        %v952 = vmul.f32 %v899, %v828
        %v953 = vmul.f32 %v904, %v831
        %v954 = vmul.f32 %v909, %v836
        %v955 = vmul.f32 %v914, %v839
        %v956 = vmul.f32 %v919, %v844
        %v957 = vmul.f32 %v924, %v847
        %v958 = vmul.f32 %v929, %v852
        %v959 = vmul.f32 %v934, %v855
        %v960 = vmul.f32 %v939, %v860
        %v961 = vmul.f32 %v944, %v863
        %v962 = vld [vmem:[#allocation5 + $0x1c8] sm:$0xf]
        %v963 = vld [vmem:[#allocation5 + $0x1cc] sm:$0xf]
        %v964 = vpack.c.bf16 %v947, %v946
        %v965 = vpack.c.bf16 %v949, %v948
        %v966 = vpack.c.bf16 %v951, %v950
        %v967 = vpack.c.bf16 %v953, %v952
        %v968 = vpack.c.bf16 %v955, %v954
        %v969 = vpack.c.bf16 %v957, %v956
        %v970 = vpack.c.bf16 %v959, %v958
        %v971 = vpack.c.bf16 %v961, %v960
        %v974 = vunpack.c.l.b16 %v962
        %v975 = vunpack.c.l.b16 %v963
        %v976 = vpack.c.b16 %v975, %v974
        %980 = vrot.lane.b32.xlu0 %v681, 96
        %v981 = vpop.permute.xlu0 %980
        %982 = vrot.lane.b32.xlu0 %v684, 96
        %v983 = vpop.permute.xlu0 %982
        %986 = vmatprep.subr.bf16.mxu0 0
        %987 = vmatpush1.bf16.msra.mxu0 %v971
        %988 = vmatprep.subr.bf16.mxu0 0
        %989 = vmatpush1.bf16.msra.mxu0 %v970
        %990 = vmatprep.subr.bf16.mxu0 0
        %991 = vmatpush1.bf16.msra.mxu0 %v969
        %992 = vmatprep.subr.bf16.mxu0 0
        %993 = vmatpush1.bf16.msra.mxu0 %v968
        %994 = vmatprep.subr.bf16.mxu0 0
        %995 = vmatpush1.bf16.msra.mxu0 %v967
        %996 = vmatprep.subr.bf16.mxu0 0
        %997 = vmatpush1.bf16.msra.mxu0 %v966
        %998 = vmatprep.subr.bf16.mxu0 0
        %999 = vmatpush1.bf16.msra.mxu0 %v965
        %1000 = vmatprep.subr.bf16.mxu0 0
        %1001 = vmatpush1.bf16.msra.mxu0 %v964
        %1002 = vmatprep.subr.bf16.mxu0 0
        %1003 = vmatpush2.bf16.msra.mxu0 0
        %1004 = vmatprep.subr.bf16.mxu0 0
        %1005 = vmatpush2.bf16.msra.mxu0 0
        %1006 = vmatprep.subr.bf16.mxu0 0
        %1007 = vmatpush2.bf16.msra.mxu0 0
        %1008 = vmatprep.subr.bf16.mxu0 0
        %1009 = vmatpush2.bf16.msra.mxu0 0
        %1010 = vmatprep.subr.bf16.mxu0 0
        %1011 = vmatpush2.bf16.msra.mxu0 0
        %1012 = vmatprep.subr.bf16.mxu0 0
        %1013 = vmatpush2.bf16.msra.mxu0 0
        %1014 = vmatprep.subr.bf16.mxu0 0
        %1015 = vmatpush2.bf16.msra.mxu0 0
        %1016 = vmatprep.subr.bf16.mxu0 0
        %1017 = vmatpush2.bf16.msra.mxu0 0
        %1018 = vmatprep.mubr.bf16.mxu0 0
        %1019 = vmatmul.mubr.bf16.gmra.mxu0 %v976
        %v1020 = vpop.f32.mrf.mxu0
        %v1021 = vadd.f32 %v981, %v1020
        %v1022 = vpop.f32.mrf.mxu0
        %v1023 = vpop.f32.mrf.mxu0
        %v1024 = vadd.f32 %v983, %v1023
        %v1025 = vpop.f32.mrf.mxu0
        %1026 = vdwg.mxu0
        %v1027 = vld [vmem:[#allocation5 + $0x40] sm:$0x1]
        %v1028 = vunpack.c.l.bf16 %v1027
        %v1029 = vlaneseq
        %v1030 = vshrl.u32 %v1029, 7
        %v1031 = vsub.s32 0, %v1030
        %v1032 = vrot.slane %v1028, %v1031
        %v1033 = vadd.f32 %v1021, %v1032
        %v1034 = vadd.f32 %v1024, %v1032
        %v1035 = vmax.f32 %v1033, 0.0
        %v1036 = vmax.f32 %v1034, 0.0
        %v1037 = vld [vmem:[#allocation5 + $0x48] sm:$0xf]
        %v1038 = vld [vmem:[#allocation5 + $0x4c] sm:$0xf]
        %v1039 = vld [vmem:[#allocation5 + $0x50] sm:$0xf]
        %v1040 = vld [vmem:[#allocation5 + $0x54] sm:$0xf]
        %v1041 = vpack.c.bf16 %v1036, %v1035
        %v1046 = vunpack.c.l.b16 %v1037
        %v1047 = vunpack.c.l.b16 %v1038
        %v1048 = vunpack.c.l.b16 %v1039
        %v1049 = vunpack.c.l.b16 %v1040
        %v1050 = vpack.c.b16 %v1047, %v1046
        %v1051 = vpack.c.b16 %v1049, %v1048
        %vm1054 = vcmask 261120
        %v1056 = vsel %vm1054, %v1041, 0
        %1058 = vmatprep.subr.bf16.mxu0 0
        %1059 = vmatpush1.bf16.msra.mxu0 0
        %1060 = vmatprep.subr.bf16.mxu0 0
        %1061 = vmatpush1.bf16.msra.mxu0 0
        %1062 = vmatprep.subr.bf16.mxu0 0
        %1063 = vmatpush1.bf16.msra.mxu0 0
        %1064 = vmatprep.subr.bf16.mxu0 0
        %1065 = vmatpush1.bf16.msra.mxu0 0
        %1066 = vmatprep.subr.bf16.mxu0 0
        %1067 = vmatpush1.bf16.msra.mxu0 0
        %1068 = vmatprep.subr.bf16.mxu0 0
        %1069 = vmatpush1.bf16.msra.mxu0 0
        %1070 = vmatprep.subr.bf16.mxu0 0
        %1071 = vmatpush1.bf16.msra.mxu0 %v1051
        %1072 = vmatprep.subr.bf16.mxu0 0
        %1073 = vmatpush1.bf16.msra.mxu0 %v1050
        %1074 = vmatprep.subr.bf16.mxu0 0
        %1075 = vmatpush2.bf16.msra.mxu0 0
        %1076 = vmatprep.subr.bf16.mxu0 0
        %1077 = vmatpush2.bf16.msra.mxu0 0
        %1078 = vmatprep.subr.bf16.mxu0 0
        %1079 = vmatpush2.bf16.msra.mxu0 0
        %1080 = vmatprep.subr.bf16.mxu0 0
        %1081 = vmatpush2.bf16.msra.mxu0 0
        %1082 = vmatprep.subr.bf16.mxu0 0
        %1083 = vmatpush2.bf16.msra.mxu0 0
        %1084 = vmatprep.subr.bf16.mxu0 0
        %1085 = vmatpush2.bf16.msra.mxu0 0
        %1086 = vmatprep.subr.bf16.mxu0 0
        %1087 = vmatpush2.bf16.msra.mxu0 0
        %1088 = vmatprep.subr.bf16.mxu0 0
        %1089 = vmatpush2.bf16.msra.mxu0 0
        %1090 = vmatprep.mubr.bf16.mxu0 0
        %1091 = vmatmul.mubr.bf16.gmra.mxu0 %v1056
        %v1092 = vpop.f32.mrf.mxu0
        %v1093 = vadd.f32 0.0, %v1092
        %v1094 = vpop.f32.mrf.mxu0
        %v1095 = vpop.f32.mrf.mxu0
        %v1096 = vadd.f32 0.0, %v1095
        %v1097 = vpop.f32.mrf.mxu0
        %1098 = vdwg.mxu0
        %v1099 = vpack.c.bf16 %v1096, %v1093
        %1100 = vmatprep.subr.bf16.mxu0 0
        %1101 = vmatpush1.bf16.msra.mxu0 0
        %1102 = vmatprep.subr.bf16.mxu0 0
        %1103 = vmatpush1.bf16.msra.mxu0 0
        %1104 = vmatprep.subr.bf16.mxu0 0
        %1105 = vmatpush1.bf16.msra.mxu0 0
        %1106 = vmatprep.subr.bf16.mxu0 0
        %1107 = vmatpush1.bf16.msra.mxu0 0
        %1108 = vmatprep.subr.bf16.mxu0 0
        %1109 = vmatpush1.bf16.msra.mxu0 0
        %1110 = vmatprep.subr.bf16.mxu0 0
        %1111 = vmatpush1.bf16.msra.mxu0 0
        %1112 = vmatprep.subr.bf16.mxu0 0
        %1113 = vmatpush1.bf16.msra.mxu0 0
        %1114 = vmatprep.subr.bf16.mxu0 0
        %1115 = vmatpush1.bf16.msra.mxu0 %v1099
        %1116 = vmatprep.subr.bf16.mxu0 0
        %1117 = vmatpush2.bf16.msra.mxu0 0
        %1118 = vmatprep.subr.bf16.mxu0 0
        %1119 = vmatpush2.bf16.msra.mxu0 0
        %1120 = vmatprep.subr.bf16.mxu0 0
        %1121 = vmatpush2.bf16.msra.mxu0 0
        %1122 = vmatprep.subr.bf16.mxu0 0
        %1123 = vmatpush2.bf16.msra.mxu0 0
        %1124 = vmatprep.subr.bf16.mxu0 0
        %1125 = vmatpush2.bf16.msra.mxu0 0
        %1126 = vmatprep.subr.bf16.mxu0 0
        %1127 = vmatpush2.bf16.msra.mxu0 0
        %1128 = vmatprep.subr.bf16.mxu0 0
        %1129 = vmatpush2.bf16.msra.mxu0 0
        %1130 = vmatprep.subr.bf16.mxu0 0
        %1131 = vmatpush2.bf16.msra.mxu0 0
        %1132 = vmatprep.mubr.bf16.mxu0 0
        %1133 = vmatmul.mubr.bf16.gmra.mxu0 %v746
        %v1134 = vpop.f32.mrf.mxu0
        %v1135 = vadd.f32 0.0, %v1134
        %v1136 = vpop.f32.mrf.mxu0
        %v1137 = vpop.f32.mrf.mxu0
        %v1138 = vadd.f32 0.0, %v1137
        %v1139 = vpop.f32.mrf.mxu0
        %1140 = vmatprep.mubr.bf16.mxu0 0
        %1141 = vmatmul.mubr.bf16.gmra.mxu0 %v749
        %v1142 = vpop.f32.mrf.mxu0
        %v1143 = vadd.f32 0.0, %v1142
        %v1144 = vpop.f32.mrf.mxu0
        %v1145 = vpop.f32.mrf.mxu0
        %v1146 = vadd.f32 0.0, %v1145
        %v1147 = vpop.f32.mrf.mxu0
        %1148 = vmatprep.mubr.bf16.mxu0 0
        %1149 = vmatmul.mubr.bf16.gmra.mxu0 %v752
        %v1150 = vpop.f32.mrf.mxu0
        %v1151 = vadd.f32 0.0, %v1150
        %v1152 = vpop.f32.mrf.mxu0
        %v1153 = vpop.f32.mrf.mxu0
        %v1154 = vadd.f32 0.0, %v1153
        %v1155 = vpop.f32.mrf.mxu0
        %1156 = vmatprep.mubr.bf16.mxu0 0
        %1157 = vmatmul.mubr.bf16.gmra.mxu0 %v755
        %v1158 = vpop.f32.mrf.mxu0
        %v1159 = vadd.f32 0.0, %v1158
        %v1160 = vpop.f32.mrf.mxu0
        %v1161 = vpop.f32.mrf.mxu0
        %v1162 = vadd.f32 0.0, %v1161
        %v1163 = vpop.f32.mrf.mxu0
        %1164 = vmatprep.mubr.bf16.mxu0 0
        %1165 = vmatmul.mubr.bf16.gmra.mxu0 %v758
        %v1166 = vpop.f32.mrf.mxu0
        %v1167 = vadd.f32 0.0, %v1166
        %v1168 = vpop.f32.mrf.mxu0
        %v1169 = vpop.f32.mrf.mxu0
        %v1170 = vadd.f32 0.0, %v1169
        %v1171 = vpop.f32.mrf.mxu0
        %1172 = vmatprep.mubr.bf16.mxu0 0
        %1173 = vmatmul.mubr.bf16.gmra.mxu0 %v761
        %v1174 = vpop.f32.mrf.mxu0
        %v1175 = vadd.f32 0.0, %v1174
        %v1176 = vpop.f32.mrf.mxu0
        %v1177 = vpop.f32.mrf.mxu0
        %v1178 = vadd.f32 0.0, %v1177
        %v1179 = vpop.f32.mrf.mxu0
        %1180 = vmatprep.mubr.bf16.mxu0 0
        %1181 = vmatmul.mubr.bf16.gmra.mxu0 %v764
        %v1182 = vpop.f32.mrf.mxu0
        %v1183 = vadd.f32 0.0, %v1182
        %v1184 = vpop.f32.mrf.mxu0
        %v1185 = vpop.f32.mrf.mxu0
        %v1186 = vadd.f32 0.0, %v1185
        %v1187 = vpop.f32.mrf.mxu0
        %1188 = vmatprep.mubr.bf16.mxu0 0
        %1189 = vmatmul.mubr.bf16.gmra.mxu0 %v767
        %v1190 = vpop.f32.mrf.mxu0
        %v1191 = vadd.f32 0.0, %v1190
        %v1192 = vpop.f32.mrf.mxu0
        %v1193 = vpop.f32.mrf.mxu0
        %v1194 = vadd.f32 0.0, %v1193
        %v1195 = vpop.f32.mrf.mxu0
        %1196 = vdwg.mxu0
        %1197 = vset.pattern.permute.xlu0 1
        %1198 = vperm.xlu0 %1197, %v620
        %v1199 = vpop.permute.xlu0 %1198
        %1201 = vset.pattern.permute.xlu0 1
        %1202 = vperm.xlu0 %1201, %v621
        %v1203 = vpop.permute.xlu0 %1202
        %1205 = vset.pattern.permute.xlu0 1
        %1206 = vperm.xlu0 %1205, %v622
        %v1207 = vpop.permute.xlu0 %1206
        %1209 = vset.pattern.permute.xlu0 1
        %1210 = vperm.xlu0 %1209, %v623
        %v1211 = vpop.permute.xlu0 %1210
        %1213 = vset.pattern.permute.xlu0 1
        %1214 = vperm.xlu0 %1213, %v624
        %v1215 = vpop.permute.xlu0 %1214
        %1217 = vset.pattern.permute.xlu0 1
        %1218 = vperm.xlu0 %1217, %v625
        %v1219 = vpop.permute.xlu0 %1218
        %1221 = vset.pattern.permute.xlu0 1
        %1222 = vperm.xlu0 %1221, %v626
        %v1223 = vpop.permute.xlu0 %1222
        %1225 = vset.pattern.permute.xlu0 1
        %1226 = vperm.xlu0 %1225, %v627
        %v1227 = vpop.permute.xlu0 %1226
        %1229 = vset.pattern.permute.xlu0 1
        %1230 = vperm.xlu0 %1229, %v628
        %v1231 = vpop.permute.xlu0 %1230
        %1233 = vset.pattern.permute.xlu0 1
        %1234 = vperm.xlu0 %1233, %v629
        %v1235 = vpop.permute.xlu0 %1234
        %1237 = vset.pattern.permute.xlu0 1
        %1238 = vperm.xlu0 %1237, %v630
        %v1239 = vpop.permute.xlu0 %1238
        %1241 = vset.pattern.permute.xlu0 1
        %1242 = vperm.xlu0 %1241, %v631
        %v1243 = vpop.permute.xlu0 %1242
        %1245 = vset.pattern.permute.xlu0 1
        %1246 = vperm.xlu0 %1245, %v632
        %v1247 = vpop.permute.xlu0 %1246
        %1249 = vset.pattern.permute.xlu0 1
        %1250 = vperm.xlu0 %1249, %v633
        %v1251 = vpop.permute.xlu0 %1250
        %1253 = vset.pattern.permute.xlu0 1
        %1254 = vperm.xlu0 %1253, %v634
        %v1255 = vpop.permute.xlu0 %1254
        %1257 = vset.pattern.permute.xlu0 1
        %1258 = vperm.xlu0 %1257, %v635
        %v1259 = vpop.permute.xlu0 %1258
        %v1261 = vmul.f32 %v1199, %v1135
        %v1262 = vmul.f32 %v1203, %v1138
        %v1263 = vmul.f32 %v1207, %v1143
        %v1264 = vmul.f32 %v1211, %v1146
        %v1265 = vmul.f32 %v1215, %v1151
        %v1266 = vmul.f32 %v1219, %v1154
        %v1267 = vmul.f32 %v1223, %v1159
        %v1268 = vmul.f32 %v1227, %v1162
        %v1269 = vmul.f32 %v1231, %v1167
        %v1270 = vmul.f32 %v1235, %v1170
        %v1271 = vmul.f32 %v1239, %v1175
        %v1272 = vmul.f32 %v1243, %v1178
        %v1273 = vmul.f32 %v1247, %v1183
        %v1274 = vmul.f32 %v1251, %v1186
        %v1275 = vmul.f32 %v1255, %v1191
        %v1276 = vmul.f32 %v1259, %v1194
        %v1277 = vpack.c.bf16 %v1262, %v1261
        %v1278 = vpack.c.bf16 %v1264, %v1263
        %v1279 = vpack.c.bf16 %v1266, %v1265
        %v1280 = vpack.c.bf16 %v1268, %v1267
        %v1281 = vpack.c.bf16 %v1270, %v1269
        %v1282 = vpack.c.bf16 %v1272, %v1271
        %v1283 = vpack.c.bf16 %v1274, %v1273
        %v1284 = vpack.c.bf16 %v1276, %v1275
        %1287 = vrot.lane.b32.xlu0 %v1093, 96
        %v1288 = vpop.permute.xlu0 %1287
        %1289 = vrot.lane.b32.xlu0 %v1096, 96
        %v1290 = vpop.permute.xlu0 %1289
        %1293 = vmatprep.subr.bf16.mxu0 0
        %1294 = vmatpush1.bf16.msra.mxu0 %v1284
        %1295 = vmatprep.subr.bf16.mxu0 0
        %1296 = vmatpush1.bf16.msra.mxu0 %v1283
        %1297 = vmatprep.subr.bf16.mxu0 0
        %1298 = vmatpush1.bf16.msra.mxu0 %v1282
        %1299 = vmatprep.subr.bf16.mxu0 0
        %1300 = vmatpush1.bf16.msra.mxu0 %v1281
        %1301 = vmatprep.subr.bf16.mxu0 0
        %1302 = vmatpush1.bf16.msra.mxu0 %v1280
        %1303 = vmatprep.subr.bf16.mxu0 0
        %1304 = vmatpush1.bf16.msra.mxu0 %v1279
        %1305 = vmatprep.subr.bf16.mxu0 0
        %1306 = vmatpush1.bf16.msra.mxu0 %v1278
        %1307 = vmatprep.subr.bf16.mxu0 0
        %1308 = vmatpush1.bf16.msra.mxu0 %v1277
        %1309 = vmatprep.subr.bf16.mxu0 0
        %1310 = vmatpush2.bf16.msra.mxu0 0
        %1311 = vmatprep.subr.bf16.mxu0 0
        %1312 = vmatpush2.bf16.msra.mxu0 0
        %1313 = vmatprep.subr.bf16.mxu0 0
        %1314 = vmatpush2.bf16.msra.mxu0 0
        %1315 = vmatprep.subr.bf16.mxu0 0
        %1316 = vmatpush2.bf16.msra.mxu0 0
        %1317 = vmatprep.subr.bf16.mxu0 0
        %1318 = vmatpush2.bf16.msra.mxu0 0
        %1319 = vmatprep.subr.bf16.mxu0 0
        %1320 = vmatpush2.bf16.msra.mxu0 0
        %1321 = vmatprep.subr.bf16.mxu0 0
        %1322 = vmatpush2.bf16.msra.mxu0 0
        %1323 = vmatprep.subr.bf16.mxu0 0
        %1324 = vmatpush2.bf16.msra.mxu0 0
        %1325 = vmatprep.mubr.bf16.mxu0 0
        %1326 = vmatmul.mubr.bf16.gmra.mxu0 %v976
        %v1327 = vpop.f32.mrf.mxu0
        %v1328 = vadd.f32 %v1288, %v1327
        %v1329 = vpop.f32.mrf.mxu0
        %v1330 = vpop.f32.mrf.mxu0
        %v1331 = vadd.f32 %v1290, %v1330
        %v1332 = vpop.f32.mrf.mxu0
        %1333 = vdwg.mxu0
        %v1334 = vld [vmem:[#allocation5 + $0x58] sm:$0x1]
        %v1335 = vunpack.c.l.bf16 %v1334
        %v1336 = vlaneseq
        %v1337 = vshrl.u32 %v1336, 7
        %v1338 = vsub.s32 0, %v1337
        %v1339 = vrot.slane %v1335, %v1338
        %v1340 = vadd.f32 %v1328, %v1339
        %v1341 = vadd.f32 %v1331, %v1339
        %v1342 = vmax.f32 %v1340, 0.0
        %v1343 = vmax.f32 %v1341, 0.0
        %v1344 = vpack.c.bf16 %v196, %v195
        %v1345 = vpack.c.bf16 %v198, %v197
        %v1346 = vpack.c.bf16 %v200, %v199
        %v1347 = vpack.c.bf16 %v202, %v201
        %v1348 = vpack.c.bf16 %v204, %v203
        %v1349 = vpack.c.bf16 %v206, %v205
        %v1350 = vpack.c.bf16 %v208, %v207
        %v1351 = vpack.c.bf16 %v210, %v209
        %v1352 = vpack.c.bf16 %v1343, %v1342
        %v1354 = vsel %vm744, %v1344, 0
        %v1357 = vsel %vm744, %v1345, 0
        %v1360 = vsel %vm744, %v1346, 0
        %v1363 = vsel %vm744, %v1347, 0
        %v1366 = vsel %vm744, %v1348, 0
        %v1369 = vsel %vm744, %v1349, 0
        %v1372 = vsel %vm744, %v1350, 0
        %v1375 = vsel %vm744, %v1351, 0
        %1377 = vmatprep.subr.bf16.mxu0 0
        %1378 = vmatpush1.bf16.msra.mxu0 0
        %1379 = vmatprep.subr.bf16.mxu0 0
        %1380 = vmatpush1.bf16.msra.mxu0 0
        %1381 = vmatprep.subr.bf16.mxu0 0
        %1382 = vmatpush1.bf16.msra.mxu0 0
        %1383 = vmatprep.subr.bf16.mxu0 0
        %1384 = vmatpush1.bf16.msra.mxu0 0
        %1385 = vmatprep.subr.bf16.mxu0 0
        %1386 = vmatpush1.bf16.msra.mxu0 0
        %1387 = vmatprep.subr.bf16.mxu0 0
        %1388 = vmatpush1.bf16.msra.mxu0 0
        %1389 = vmatprep.subr.bf16.mxu0 0
        %1390 = vmatpush1.bf16.msra.mxu0 0
        %1391 = vmatprep.subr.bf16.mxu0 0
        %1392 = vmatpush1.bf16.msra.mxu0 %v1352
        %1393 = vmatprep.subr.bf16.mxu0 0
        %1394 = vmatpush2.bf16.msra.mxu0 0
        %1395 = vmatprep.subr.bf16.mxu0 0
        %1396 = vmatpush2.bf16.msra.mxu0 0
        %1397 = vmatprep.subr.bf16.mxu0 0
        %1398 = vmatpush2.bf16.msra.mxu0 0
        %1399 = vmatprep.subr.bf16.mxu0 0
        %1400 = vmatpush2.bf16.msra.mxu0 0
        %1401 = vmatprep.subr.bf16.mxu0 0
        %1402 = vmatpush2.bf16.msra.mxu0 0
        %1403 = vmatprep.subr.bf16.mxu0 0
        %1404 = vmatpush2.bf16.msra.mxu0 0
        %1405 = vmatprep.subr.bf16.mxu0 0
        %1406 = vmatpush2.bf16.msra.mxu0 0
        %1407 = vmatprep.subr.bf16.mxu0 0
        %1408 = vmatpush2.bf16.msra.mxu0 0
        %1409 = vmatprep.mubr.bf16.mxu0 0
        %1410 = vmatmul.mubr.bf16.gmra.mxu0 %v1354
        %v1411 = vpop.f32.mrf.mxu0
        %v1412 = vadd.f32 0.0, %v1411
        %v1413 = vpop.f32.mrf.mxu0
        %v1414 = vpop.f32.mrf.mxu0
        %v1415 = vadd.f32 0.0, %v1414
        %v1416 = vpop.f32.mrf.mxu0
        %1417 = vmatprep.mubr.bf16.mxu0 0
        %1418 = vmatmul.mubr.bf16.gmra.mxu0 %v1357
        %v1419 = vpop.f32.mrf.mxu0
        %v1420 = vadd.f32 0.0, %v1419
        %v1421 = vpop.f32.mrf.mxu0
        %v1422 = vpop.f32.mrf.mxu0
        %v1423 = vadd.f32 0.0, %v1422
        %v1424 = vpop.f32.mrf.mxu0
        %1425 = vmatprep.mubr.bf16.mxu0 0
        %1426 = vmatmul.mubr.bf16.gmra.mxu0 %v1360
        %v1427 = vpop.f32.mrf.mxu0
        %v1428 = vadd.f32 0.0, %v1427
        %v1429 = vpop.f32.mrf.mxu0
        %v1430 = vpop.f32.mrf.mxu0
        %v1431 = vadd.f32 0.0, %v1430
        %v1432 = vpop.f32.mrf.mxu0
        %1433 = vmatprep.mubr.bf16.mxu0 0
        %1434 = vmatmul.mubr.bf16.gmra.mxu0 %v1363
        %v1435 = vpop.f32.mrf.mxu0
        %v1436 = vadd.f32 0.0, %v1435
        %v1437 = vpop.f32.mrf.mxu0
        %v1438 = vpop.f32.mrf.mxu0
        %v1439 = vadd.f32 0.0, %v1438
        %v1440 = vpop.f32.mrf.mxu0
        %1441 = vmatprep.mubr.bf16.mxu0 0
        %1442 = vmatmul.mubr.bf16.gmra.mxu0 %v1366
        %v1443 = vpop.f32.mrf.mxu0
        %v1444 = vadd.f32 0.0, %v1443
        %v1445 = vpop.f32.mrf.mxu0
        %v1446 = vpop.f32.mrf.mxu0
        %v1447 = vadd.f32 0.0, %v1446
        %v1448 = vpop.f32.mrf.mxu0
        %1449 = vmatprep.mubr.bf16.mxu0 0
        %1450 = vmatmul.mubr.bf16.gmra.mxu0 %v1369
        %v1451 = vpop.f32.mrf.mxu0
        %v1452 = vadd.f32 0.0, %v1451
        %v1453 = vpop.f32.mrf.mxu0
        %v1454 = vpop.f32.mrf.mxu0
        %v1455 = vadd.f32 0.0, %v1454
        %v1456 = vpop.f32.mrf.mxu0
        %1457 = vmatprep.mubr.bf16.mxu0 0
        %1458 = vmatmul.mubr.bf16.gmra.mxu0 %v1372
        %v1459 = vpop.f32.mrf.mxu0
        %v1460 = vadd.f32 0.0, %v1459
        %v1461 = vpop.f32.mrf.mxu0
        %v1462 = vpop.f32.mrf.mxu0
        %v1463 = vadd.f32 0.0, %v1462
        %v1464 = vpop.f32.mrf.mxu0
        %1465 = vmatprep.mubr.bf16.mxu0 0
        %1466 = vmatmul.mubr.bf16.gmra.mxu0 %v1375
        %v1467 = vpop.f32.mrf.mxu0
        %v1468 = vadd.f32 0.0, %v1467
        %v1469 = vpop.f32.mrf.mxu0
        %v1470 = vpop.f32.mrf.mxu0
        %v1471 = vadd.f32 0.0, %v1470
        %v1472 = vpop.f32.mrf.mxu0
        %1473 = vdwg.mxu0
        %1490 = vrot.lane.b32.xlu0 %v1412, 32
        %v1491 = vpop.permute.xlu0 %1490
        %1492 = vrot.lane.b32.xlu0 %v1415, 32
        %v1493 = vpop.permute.xlu0 %1492
        %1494 = vrot.lane.b32.xlu0 %v1420, 32
        %v1495 = vpop.permute.xlu0 %1494
        %1496 = vrot.lane.b32.xlu0 %v1423, 32
        %v1497 = vpop.permute.xlu0 %1496
        %1498 = vrot.lane.b32.xlu0 %v1428, 32
        %v1499 = vpop.permute.xlu0 %1498
        %1500 = vrot.lane.b32.xlu0 %v1431, 32
        %v1501 = vpop.permute.xlu0 %1500
        %1502 = vrot.lane.b32.xlu0 %v1436, 32
        %v1503 = vpop.permute.xlu0 %1502
        %1504 = vrot.lane.b32.xlu0 %v1439, 32
        %v1505 = vpop.permute.xlu0 %1504
        %1506 = vrot.lane.b32.xlu0 %v1444, 32
        %v1507 = vpop.permute.xlu0 %1506
        %1508 = vrot.lane.b32.xlu0 %v1447, 32
        %v1509 = vpop.permute.xlu0 %1508
        %1510 = vrot.lane.b32.xlu0 %v1452, 32
        %v1511 = vpop.permute.xlu0 %1510
        %1512 = vrot.lane.b32.xlu0 %v1455, 32
        %v1513 = vpop.permute.xlu0 %1512
        %1514 = vrot.lane.b32.xlu0 %v1460, 32
        %v1515 = vpop.permute.xlu0 %1514
        %1516 = vrot.lane.b32.xlu0 %v1463, 32
        %v1517 = vpop.permute.xlu0 %1516
        %1518 = vrot.lane.b32.xlu0 %v1468, 32
        %v1519 = vpop.permute.xlu0 %1518
        %1520 = vrot.lane.b32.xlu0 %v1471, 32
        %v1521 = vpop.permute.xlu0 %1520
        %v1538 = vsel %vm1054, %v1412, %v1491
        %v1539 = vsel %vm1054, %v1415, %v1493
        %v1540 = vsel %vm1054, %v1420, %v1495
        %v1541 = vsel %vm1054, %v1423, %v1497
        %v1542 = vsel %vm1054, %v1428, %v1499
        %v1543 = vsel %vm1054, %v1431, %v1501
        %v1544 = vsel %vm1054, %v1436, %v1503
        %v1545 = vsel %vm1054, %v1439, %v1505
        %v1546 = vsel %vm1054, %v1444, %v1507
        %v1547 = vsel %vm1054, %v1447, %v1509
        %v1548 = vsel %vm1054, %v1452, %v1511
        %v1549 = vsel %vm1054, %v1455, %v1513
        %v1550 = vsel %vm1054, %v1460, %v1515
        %v1551 = vsel %vm1054, %v1463, %v1517
        %v1552 = vsel %vm1054, %v1468, %v1519
        %v1553 = vsel %vm1054, %v1471, %v1521
        %v1554 = vld [vmem:[#allocation5 + $0x90] sm:$0xf]
        %v1555 = vld [vmem:[#allocation5 + $0x94] sm:$0xf]
        %v1556 = vld [vmem:[#allocation5 + $0x98] sm:$0xf]
        %v1557 = vld [vmem:[#allocation5 + $0x9c] sm:$0xf]
        %v1558 = vld [vmem:[#allocation5 + $0xa0] sm:$0xf]
        %v1559 = vld [vmem:[#allocation5 + $0xa4] sm:$0xf]
        %v1560 = vld [vmem:[#allocation5 + $0xa8] sm:$0xf]
        %v1561 = vld [vmem:[#allocation5 + $0xac] sm:$0xf]
        %v1562 = vpack.c.bf16 %v1539, %v1538
        %v1563 = vpack.c.bf16 %v1541, %v1540
        %v1564 = vpack.c.bf16 %v1543, %v1542
        %v1565 = vpack.c.bf16 %v1545, %v1544
        %v1566 = vpack.c.bf16 %v1547, %v1546
        %v1567 = vpack.c.bf16 %v1549, %v1548
        %v1568 = vpack.c.bf16 %v1551, %v1550
        %v1569 = vpack.c.bf16 %v1553, %v1552
        %v1578 = vunpack.c.l.b16 %v1554
        %v1579 = vunpack.c.l.b16 %v1555
        %v1580 = vunpack.c.l.b16 %v1556
        %v1581 = vunpack.c.l.b16 %v1557
        %v1582 = vunpack.c.l.b16 %v1558
        %v1583 = vunpack.c.l.b16 %v1559
        %v1584 = vunpack.c.l.b16 %v1560
        %v1585 = vunpack.c.l.b16 %v1561
        %v1586 = vpack.c.b16 %v1579, %v1578
        %v1587 = vpack.c.b16 %v1581, %v1580
        %v1588 = vpack.c.b16 %v1583, %v1582
        %v1589 = vpack.c.b16 %v1585, %v1584
        %v1595 = vsel %vm418, %v1562, 0
        %v1598 = vsel %vm418, %v1563, 0
        %v1601 = vsel %vm418, %v1564, 0
        %v1604 = vsel %vm418, %v1565, 0
        %v1607 = vsel %vm418, %v1566, 0
        %v1610 = vsel %vm418, %v1567, 0
        %v1613 = vsel %vm418, %v1568, 0
        %v1616 = vsel %vm418, %v1569, 0
        %1618 = vmatprep.subr.bf16.mxu0 0
        %1619 = vmatpush1.bf16.msra.mxu0 0
        %1620 = vmatprep.subr.bf16.mxu0 0
        %1621 = vmatpush1.bf16.msra.mxu0 0
        %1622 = vmatprep.subr.bf16.mxu0 0
        %1623 = vmatpush1.bf16.msra.mxu0 0
        %1624 = vmatprep.subr.bf16.mxu0 0
        %1625 = vmatpush1.bf16.msra.mxu0 0
        %1626 = vmatprep.subr.bf16.mxu0 0
        %1627 = vmatpush1.bf16.msra.mxu0 %v1589
        %1628 = vmatprep.subr.bf16.mxu0 0
        %1629 = vmatpush1.bf16.msra.mxu0 %v1588
        %1630 = vmatprep.subr.bf16.mxu0 0
        %1631 = vmatpush1.bf16.msra.mxu0 %v1587
        %1632 = vmatprep.subr.bf16.mxu0 0
        %1633 = vmatpush1.bf16.msra.mxu0 %v1586
        %1634 = vmatprep.subr.bf16.mxu0 0
        %1635 = vmatpush2.bf16.msra.mxu0 0
        %1636 = vmatprep.subr.bf16.mxu0 0
        %1637 = vmatpush2.bf16.msra.mxu0 0
        %1638 = vmatprep.subr.bf16.mxu0 0
        %1639 = vmatpush2.bf16.msra.mxu0 0
        %1640 = vmatprep.subr.bf16.mxu0 0
        %1641 = vmatpush2.bf16.msra.mxu0 0
        %1642 = vmatprep.subr.bf16.mxu0 0
        %1643 = vmatpush2.bf16.msra.mxu0 0
        %1644 = vmatprep.subr.bf16.mxu0 0
        %1645 = vmatpush2.bf16.msra.mxu0 0
        %1646 = vmatprep.subr.bf16.mxu0 0
        %1647 = vmatpush2.bf16.msra.mxu0 0
        %1648 = vmatprep.subr.bf16.mxu0 0
        %1649 = vmatpush2.bf16.msra.mxu0 0
        %1650 = vmatprep.mubr.bf16.mxu0 0
        %1651 = vmatmul.mubr.bf16.gmra.mxu0 %v1595
        %v1652 = vpop.f32.mrf.mxu0
        %v1653 = vadd.f32 0.0, %v1652
        %v1654 = vpop.f32.mrf.mxu0
        %v1655 = vpop.f32.mrf.mxu0
        %v1656 = vadd.f32 0.0, %v1655
        %v1657 = vpop.f32.mrf.mxu0
        %1658 = vmatprep.mubr.bf16.mxu0 0
        %1659 = vmatmul.mubr.bf16.gmra.mxu0 %v1598
        %v1660 = vpop.f32.mrf.mxu0
        %v1661 = vadd.f32 0.0, %v1660
        %v1662 = vpop.f32.mrf.mxu0
        %v1663 = vpop.f32.mrf.mxu0
        %v1664 = vadd.f32 0.0, %v1663
        %v1665 = vpop.f32.mrf.mxu0
        %1666 = vmatprep.mubr.bf16.mxu0 0
        %1667 = vmatmul.mubr.bf16.gmra.mxu0 %v1601
        %v1668 = vpop.f32.mrf.mxu0
        %v1669 = vadd.f32 0.0, %v1668
        %v1670 = vpop.f32.mrf.mxu0
        %v1671 = vpop.f32.mrf.mxu0
        %v1672 = vadd.f32 0.0, %v1671
        %v1673 = vpop.f32.mrf.mxu0
        %1674 = vmatprep.mubr.bf16.mxu0 0
        %1675 = vmatmul.mubr.bf16.gmra.mxu0 %v1604
        %v1676 = vpop.f32.mrf.mxu0
        %v1677 = vadd.f32 0.0, %v1676
        %v1678 = vpop.f32.mrf.mxu0
        %v1679 = vpop.f32.mrf.mxu0
        %v1680 = vadd.f32 0.0, %v1679
        %v1681 = vpop.f32.mrf.mxu0
        %1682 = vmatprep.mubr.bf16.mxu0 0
        %1683 = vmatmul.mubr.bf16.gmra.mxu0 %v1607
        %v1684 = vpop.f32.mrf.mxu0
        %v1685 = vadd.f32 0.0, %v1684
        %v1686 = vpop.f32.mrf.mxu0
        %v1687 = vpop.f32.mrf.mxu0
        %v1688 = vadd.f32 0.0, %v1687
        %v1689 = vpop.f32.mrf.mxu0
        %1690 = vmatprep.mubr.bf16.mxu0 0
        %1691 = vmatmul.mubr.bf16.gmra.mxu0 %v1610
        %v1692 = vpop.f32.mrf.mxu0
        %v1693 = vadd.f32 0.0, %v1692
        %v1694 = vpop.f32.mrf.mxu0
        %v1695 = vpop.f32.mrf.mxu0
        %v1696 = vadd.f32 0.0, %v1695
        %v1697 = vpop.f32.mrf.mxu0
        %1698 = vmatprep.mubr.bf16.mxu0 0
        %1699 = vmatmul.mubr.bf16.gmra.mxu0 %v1613
        %v1700 = vpop.f32.mrf.mxu0
        %v1701 = vadd.f32 0.0, %v1700
        %v1702 = vpop.f32.mrf.mxu0
        %v1703 = vpop.f32.mrf.mxu0
        %v1704 = vadd.f32 0.0, %v1703
        %v1705 = vpop.f32.mrf.mxu0
        %1706 = vmatprep.mubr.bf16.mxu0 0
        %1707 = vmatmul.mubr.bf16.gmra.mxu0 %v1616
        %v1708 = vpop.f32.mrf.mxu0
        %v1709 = vadd.f32 0.0, %v1708
        %v1710 = vpop.f32.mrf.mxu0
        %v1711 = vpop.f32.mrf.mxu0
        %v1712 = vadd.f32 0.0, %v1711
        %v1713 = vpop.f32.mrf.mxu0
        %1714 = vdwg.mxu0
        %v1715 = vld [vmem:[#allocation5 + $0x148] sm:$0xf]
        %v1716 = vld [vmem:[#allocation5 + $0x14c] sm:$0xf]
        %v1717 = vld [vmem:[#allocation5 + $0x150] sm:$0xf]
        %v1718 = vld [vmem:[#allocation5 + $0x154] sm:$0xf]
        %v1719 = vld [vmem:[#allocation5 + $0x158] sm:$0xf]
        %v1720 = vld [vmem:[#allocation5 + $0x15c] sm:$0xf]
        %v1721 = vld [vmem:[#allocation5 + $0x160] sm:$0xf]
        %v1722 = vld [vmem:[#allocation5 + $0x164] sm:$0xf]
        %v1723 = vld [vmem:[#allocation5 + $0x168] sm:$0xf]
        %v1724 = vld [vmem:[#allocation5 + $0x16c] sm:$0xf]
        %v1725 = vld [vmem:[#allocation5 + $0x170] sm:$0xf]
        %v1726 = vld [vmem:[#allocation5 + $0x174] sm:$0xf]
        %v1727 = vld [vmem:[#allocation5 + $0x178] sm:$0xf]
        %v1728 = vld [vmem:[#allocation5 + $0x17c] sm:$0xf]
        %v1729 = vld [vmem:[#allocation5 + $0x180] sm:$0xf]
        %v1730 = vld [vmem:[#allocation5 + $0x184] sm:$0xf]
        %v1731 = vpack.c.bf16 %v1656, %v1653
        %v1732 = vpack.c.bf16 %v1664, %v1661
        %v1733 = vpack.c.bf16 %v1672, %v1669
        %v1734 = vpack.c.bf16 %v1680, %v1677
        %v1735 = vpack.c.bf16 %v1688, %v1685
        %v1736 = vpack.c.bf16 %v1696, %v1693
        %v1737 = vpack.c.bf16 %v1704, %v1701
        %v1738 = vpack.c.bf16 %v1712, %v1709
        %v1755 = vunpack.c.l.b16 %v1715
        %v1756 = vunpack.c.l.b16 %v1716
        %v1757 = vunpack.c.l.b16 %v1717
        %v1758 = vunpack.c.l.b16 %v1718
        %v1759 = vunpack.c.l.b16 %v1719
        %v1760 = vunpack.c.l.b16 %v1720
        %v1761 = vunpack.c.l.b16 %v1721
        %v1762 = vunpack.c.l.b16 %v1722
        %v1763 = vunpack.c.l.b16 %v1723
        %v1764 = vunpack.c.l.b16 %v1724
        %v1765 = vunpack.c.l.b16 %v1725
        %v1766 = vunpack.c.l.b16 %v1726
        %v1767 = vunpack.c.l.b16 %v1727
        %v1768 = vunpack.c.l.b16 %v1728
        %v1769 = vunpack.c.l.b16 %v1729
        %v1770 = vunpack.c.l.b16 %v1730
        %v1771 = vpack.c.b16 %v1756, %v1755
        %v1772 = vpack.c.b16 %v1758, %v1757
        %v1773 = vpack.c.b16 %v1760, %v1759
        %v1774 = vpack.c.b16 %v1762, %v1761
        %v1775 = vpack.c.b16 %v1764, %v1763
        %v1776 = vpack.c.b16 %v1766, %v1765
        %v1777 = vpack.c.b16 %v1768, %v1767
        %v1778 = vpack.c.b16 %v1770, %v1769
        %1803 = vrot.lane.b32.xlu0 %v1653, 96
        %v1804 = vpop.permute.xlu0 %1803
        %1805 = vrot.lane.b32.xlu0 %v1656, 96
        %v1806 = vpop.permute.xlu0 %1805
        %1807 = vrot.lane.b32.xlu0 %v1661, 96
        %v1808 = vpop.permute.xlu0 %1807
        %1809 = vrot.lane.b32.xlu0 %v1664, 96
        %v1810 = vpop.permute.xlu0 %1809
        %1811 = vrot.lane.b32.xlu0 %v1669, 96
        %v1812 = vpop.permute.xlu0 %1811
        %1813 = vrot.lane.b32.xlu0 %v1672, 96
        %v1814 = vpop.permute.xlu0 %1813
        %1815 = vrot.lane.b32.xlu0 %v1677, 96
        %v1816 = vpop.permute.xlu0 %1815
        %1817 = vrot.lane.b32.xlu0 %v1680, 96
        %v1818 = vpop.permute.xlu0 %1817
        %1819 = vrot.lane.b32.xlu0 %v1685, 96
        %v1820 = vpop.permute.xlu0 %1819
        %1821 = vrot.lane.b32.xlu0 %v1688, 96
        %v1822 = vpop.permute.xlu0 %1821
        %1823 = vrot.lane.b32.xlu0 %v1693, 96
        %v1824 = vpop.permute.xlu0 %1823
        %1825 = vrot.lane.b32.xlu0 %v1696, 96
        %v1826 = vpop.permute.xlu0 %1825
        %1827 = vrot.lane.b32.xlu0 %v1701, 96
        %v1828 = vpop.permute.xlu0 %1827
        %1829 = vrot.lane.b32.xlu0 %v1704, 96
        %v1830 = vpop.permute.xlu0 %1829
        %1831 = vrot.lane.b32.xlu0 %v1709, 96
        %v1832 = vpop.permute.xlu0 %1831
        %1833 = vrot.lane.b32.xlu0 %v1712, 96
        %v1834 = vpop.permute.xlu0 %1833
        %1851 = vmatprep.subr.bf16.mxu0 0
        %1852 = vmatpush1.bf16.msra.mxu0 %v1738
        %1853 = vmatprep.subr.bf16.mxu0 0
        %1854 = vmatpush1.bf16.msra.mxu0 %v1737
        %1855 = vmatprep.subr.bf16.mxu0 0
        %1856 = vmatpush1.bf16.msra.mxu0 %v1736
        %1857 = vmatprep.subr.bf16.mxu0 0
        %1858 = vmatpush1.bf16.msra.mxu0 %v1735
        %1859 = vmatprep.subr.bf16.mxu0 0
        %1860 = vmatpush1.bf16.msra.mxu0 %v1734
        %1861 = vmatprep.subr.bf16.mxu0 0
        %1862 = vmatpush1.bf16.msra.mxu0 %v1733
        %1863 = vmatprep.subr.bf16.mxu0 0
        %1864 = vmatpush1.bf16.msra.mxu0 %v1732
        %1865 = vmatprep.subr.bf16.mxu0 0
        %1866 = vmatpush1.bf16.msra.mxu0 %v1731
        %1867 = vmatprep.subr.bf16.mxu0 0
        %1868 = vmatpush2.bf16.msra.mxu0 0
        %1869 = vmatprep.subr.bf16.mxu0 0
        %1870 = vmatpush2.bf16.msra.mxu0 0
        %1871 = vmatprep.subr.bf16.mxu0 0
        %1872 = vmatpush2.bf16.msra.mxu0 0
        %1873 = vmatprep.subr.bf16.mxu0 0
        %1874 = vmatpush2.bf16.msra.mxu0 0
        %1875 = vmatprep.subr.bf16.mxu0 0
        %1876 = vmatpush2.bf16.msra.mxu0 0
        %1877 = vmatprep.subr.bf16.mxu0 0
        %1878 = vmatpush2.bf16.msra.mxu0 0
        %1879 = vmatprep.subr.bf16.mxu0 0
        %1880 = vmatpush2.bf16.msra.mxu0 0
        %1881 = vmatprep.subr.bf16.mxu0 0
        %1882 = vmatpush2.bf16.msra.mxu0 0
        %1883 = vmatprep.mubr.bf16.mxu0 0
        %1884 = vmatmul.mubr.bf16.gmra.mxu0 %v1771
        %v1885 = vpop.f32.mrf.mxu0
        %v1886 = vadd.f32 %v1804, %v1885
        %v1887 = vpop.f32.mrf.mxu0
        %v1888 = vpop.f32.mrf.mxu0
        %v1889 = vadd.f32 %v1806, %v1888
        %v1890 = vpop.f32.mrf.mxu0
        %1891 = vmatprep.mubr.bf16.mxu0 0
        %1892 = vmatmul.mubr.bf16.gmra.mxu0 %v1772
        %v1893 = vpop.f32.mrf.mxu0
        %v1894 = vadd.f32 %v1808, %v1893
        %v1895 = vpop.f32.mrf.mxu0
        %v1896 = vpop.f32.mrf.mxu0
        %v1897 = vadd.f32 %v1810, %v1896
        %v1898 = vpop.f32.mrf.mxu0
        %1899 = vmatprep.mubr.bf16.mxu0 0
        %1900 = vmatmul.mubr.bf16.gmra.mxu0 %v1773
        %v1901 = vpop.f32.mrf.mxu0
        %v1902 = vadd.f32 %v1812, %v1901
        %v1903 = vpop.f32.mrf.mxu0
        %v1904 = vpop.f32.mrf.mxu0
        %v1905 = vadd.f32 %v1814, %v1904
        %v1906 = vpop.f32.mrf.mxu0
        %1907 = vmatprep.mubr.bf16.mxu0 0
        %1908 = vmatmul.mubr.bf16.gmra.mxu0 %v1774
        %v1909 = vpop.f32.mrf.mxu0
        %v1910 = vadd.f32 %v1816, %v1909
        %v1911 = vpop.f32.mrf.mxu0
        %v1912 = vpop.f32.mrf.mxu0
        %v1913 = vadd.f32 %v1818, %v1912
        %v1914 = vpop.f32.mrf.mxu0
        %1915 = vmatprep.mubr.bf16.mxu0 0
        %1916 = vmatmul.mubr.bf16.gmra.mxu0 %v1775
        %v1917 = vpop.f32.mrf.mxu0
        %v1918 = vadd.f32 %v1820, %v1917
        %v1919 = vpop.f32.mrf.mxu0
        %v1920 = vpop.f32.mrf.mxu0
        %v1921 = vadd.f32 %v1822, %v1920
        %v1922 = vpop.f32.mrf.mxu0
        %1923 = vmatprep.mubr.bf16.mxu0 0
        %1924 = vmatmul.mubr.bf16.gmra.mxu0 %v1776
        %v1925 = vpop.f32.mrf.mxu0
        %v1926 = vadd.f32 %v1824, %v1925
        %v1927 = vpop.f32.mrf.mxu0
        %v1928 = vpop.f32.mrf.mxu0
        %v1929 = vadd.f32 %v1826, %v1928
        %v1930 = vpop.f32.mrf.mxu0
        %1931 = vmatprep.mubr.bf16.mxu0 0
        %1932 = vmatmul.mubr.bf16.gmra.mxu0 %v1777
        %v1933 = vpop.f32.mrf.mxu0
        %v1934 = vadd.f32 %v1828, %v1933
        %v1935 = vpop.f32.mrf.mxu0
        %v1936 = vpop.f32.mrf.mxu0
        %v1937 = vadd.f32 %v1830, %v1936
        %v1938 = vpop.f32.mrf.mxu0
        %1939 = vmatprep.mubr.bf16.mxu0 0
        %1940 = vmatmul.mubr.bf16.gmra.mxu0 %v1778
        %v1941 = vpop.f32.mrf.mxu0
        %v1942 = vadd.f32 %v1832, %v1941
        %v1943 = vpop.f32.mrf.mxu0
        %v1944 = vpop.f32.mrf.mxu0
        %v1945 = vadd.f32 %v1834, %v1944
        %v1946 = vpop.f32.mrf.mxu0
        %1947 = vdwg.mxu0
        %v1948 = vld [vmem:[#allocation5 + $0xb0] sm:$0x1]
        %v1949 = vunpack.c.l.bf16 %v1948
        %v1950 = vlaneseq
        %v1951 = vshrl.u32 %v1950, 7
        %v1952 = vsub.s32 0, %v1951
        %v1953 = vrot.slane %v1949, %v1952
        %v1954 = vadd.f32 %v1886, %v1953
        %v1955 = vadd.f32 %v1889, %v1953
        %v1956 = vadd.f32 %v1894, %v1953
        %v1957 = vadd.f32 %v1897, %v1953
        %v1958 = vadd.f32 %v1902, %v1953
        %v1959 = vadd.f32 %v1905, %v1953
        %v1960 = vadd.f32 %v1910, %v1953
        %v1961 = vadd.f32 %v1913, %v1953
        %v1962 = vadd.f32 %v1918, %v1953
        %v1963 = vadd.f32 %v1921, %v1953
        %v1964 = vadd.f32 %v1926, %v1953
        %v1965 = vadd.f32 %v1929, %v1953
        %v1966 = vadd.f32 %v1934, %v1953
        %v1967 = vadd.f32 %v1937, %v1953
        %v1968 = vadd.f32 %v1942, %v1953
        %v1969 = vadd.f32 %v1945, %v1953
        %v1970 = vmax.f32 %v1954, 0.0
        %v1971 = vmax.f32 %v1955, 0.0
        %v1972 = vmax.f32 %v1956, 0.0
        %v1973 = vmax.f32 %v1957, 0.0
        %v1974 = vmax.f32 %v1958, 0.0
        %v1975 = vmax.f32 %v1959, 0.0
        %v1976 = vmax.f32 %v1960, 0.0
        %v1977 = vmax.f32 %v1961, 0.0
        %v1978 = vmax.f32 %v1962, 0.0
        %v1979 = vmax.f32 %v1963, 0.0
        %v1980 = vmax.f32 %v1964, 0.0
        %v1981 = vmax.f32 %v1965, 0.0
        %v1982 = vmax.f32 %v1966, 0.0
        %v1983 = vmax.f32 %v1967, 0.0
        %v1984 = vmax.f32 %v1968, 0.0
        %v1985 = vmax.f32 %v1969, 0.0
        %v1986 = vpack.c.bf16 %v212, %v211
        %v1987 = vpack.c.bf16 %v1971, %v1970
        %v1988 = vpack.c.bf16 %v1973, %v1972
        %v1989 = vpack.c.bf16 %v1975, %v1974
        %v1990 = vpack.c.bf16 %v1977, %v1976
        %v1991 = vpack.c.bf16 %v1979, %v1978
        %v1992 = vpack.c.bf16 %v1981, %v1980
        %v1993 = vpack.c.bf16 %v1983, %v1982
        %v1994 = vpack.c.bf16 %v1985, %v1984
        %1995 = vmatprep.subr.bf16.mxu0 0
        %1996 = vmatpush1.bf16.msra.mxu0 %v1994
        %1997 = vmatprep.subr.bf16.mxu0 0
        %1998 = vmatpush1.bf16.msra.mxu0 %v1993
        %1999 = vmatprep.subr.bf16.mxu0 0
        %2000 = vmatpush1.bf16.msra.mxu0 %v1992
        %2001 = vmatprep.subr.bf16.mxu0 0
        %2002 = vmatpush1.bf16.msra.mxu0 %v1991
        %2003 = vmatprep.subr.bf16.mxu0 0
        %2004 = vmatpush1.bf16.msra.mxu0 %v1990
        %2005 = vmatprep.subr.bf16.mxu0 0
        %2006 = vmatpush1.bf16.msra.mxu0 %v1989
        %2007 = vmatprep.subr.bf16.mxu0 0
        %2008 = vmatpush1.bf16.msra.mxu0 %v1988
        %2009 = vmatprep.subr.bf16.mxu0 0
        %2010 = vmatpush1.bf16.msra.mxu0 %v1987
        %2011 = vmatprep.subr.bf16.mxu0 0
        %2012 = vmatpush2.bf16.msra.mxu0 0
        %2013 = vmatprep.subr.bf16.mxu0 0
        %2014 = vmatpush2.bf16.msra.mxu0 0
        %2015 = vmatprep.subr.bf16.mxu0 0
        %2016 = vmatpush2.bf16.msra.mxu0 0
        %2017 = vmatprep.subr.bf16.mxu0 0
        %2018 = vmatpush2.bf16.msra.mxu0 0
        %2019 = vmatprep.subr.bf16.mxu0 0
        %2020 = vmatpush2.bf16.msra.mxu0 0
        %2021 = vmatprep.subr.bf16.mxu0 0
        %2022 = vmatpush2.bf16.msra.mxu0 0
        %2023 = vmatprep.subr.bf16.mxu0 0
        %2024 = vmatpush2.bf16.msra.mxu0 0
        %2025 = vmatprep.subr.bf16.mxu0 0
        %2026 = vmatpush2.bf16.msra.mxu0 0
        %2027 = vmatprep.mubr.bf16.mxu0 0
        %2028 = vmatmul.mubr.bf16.gmra.mxu0 %v1986
        %v2029 = vpop.f32.mrf.mxu0
        %v2030 = vadd.f32 0.0, %v2029
        %v2031 = vpop.f32.mrf.mxu0
        %v2032 = vpop.f32.mrf.mxu0
        %v2033 = vadd.f32 0.0, %v2032
        %v2034 = vpop.f32.mrf.mxu0
        %2035 = vdwg.mxu0
        %2038 = vrot.lane.b32.xlu0 %v1342, 32
        %v2039 = vpop.permute.xlu0 %2038
        %2040 = vrot.lane.b32.xlu0 %v1343, 32
        %v2041 = vpop.permute.xlu0 %2040
        %v2044 = vsel %vm1054, %v2030, %v2039
        %v2045 = vsel %vm1054, %v2033, %v2041
        %v2046 = vld [vmem:[#allocation5 + $0xe0] sm:$0xf]
        %v2047 = vld [vmem:[#allocation5 + $0xe4] sm:$0xf]
        %v2048 = vld [vmem:[#allocation5 + $0xe8] sm:$0xf]
        %v2049 = vld [vmem:[#allocation5 + $0xec] sm:$0xf]
        %v2050 = vld [vmem:[#allocation5 + $0xf0] sm:$0xf]
        %v2051 = vld [vmem:[#allocation5 + $0xf4] sm:$0xf]
        %v2052 = vld [vmem:[#allocation5 + $0xf8] sm:$0xf]
        %v2053 = vld [vmem:[#allocation5 + $0xfc] sm:$0xf]
        %v2054 = vpack.c.bf16 %v2045, %v2044
        %v2055 = vld [vmem:[#allocation5 + $0x100] sm:$0x1]
        %v2056 = vunpack.c.l.bf16 %v2055
        %v2057 = vlaneseq
        %v2058 = vshrl.u32 %v2057, 7
        %v2059 = vsub.s32 0, %v2058
        %v2060 = vrot.slane %v2056, %v2059
        %v2069 = vunpack.c.l.b16 %v2046
        %v2070 = vunpack.c.l.b16 %v2047
        %v2071 = vunpack.c.l.b16 %v2048
        %v2072 = vunpack.c.l.b16 %v2049
        %v2073 = vunpack.c.l.b16 %v2050
        %v2074 = vunpack.c.l.b16 %v2051
        %v2075 = vunpack.c.l.b16 %v2052
        %v2076 = vunpack.c.l.b16 %v2053
        %v2077 = vpack.c.b16 %v2070, %v2069
        %v2078 = vpack.c.b16 %v2072, %v2071
        %v2079 = vpack.c.b16 %v2074, %v2073
        %v2080 = vpack.c.b16 %v2076, %v2075
        %v2086 = vsel %vm418, %v2054, 0
        %2088 = vmatprep.subr.bf16.mxu0 0
        %2089 = vmatpush1.bf16.msra.mxu0 0
        %2090 = vmatprep.subr.bf16.mxu0 0
        %2091 = vmatpush1.bf16.msra.mxu0 0
        %2092 = vmatprep.subr.bf16.mxu0 0
        %2093 = vmatpush1.bf16.msra.mxu0 0
        %2094 = vmatprep.subr.bf16.mxu0 0
        %2095 = vmatpush1.bf16.msra.mxu0 0
        %2096 = vmatprep.subr.bf16.mxu0 0
        %2097 = vmatpush1.bf16.msra.mxu0 %v2080
        %2098 = vmatprep.subr.bf16.mxu0 0
        %2099 = vmatpush1.bf16.msra.mxu0 %v2079
        %2100 = vmatprep.subr.bf16.mxu0 0
        %2101 = vmatpush1.bf16.msra.mxu0 %v2078
        %2102 = vmatprep.subr.bf16.mxu0 0
        %2103 = vmatpush1.bf16.msra.mxu0 %v2077
        %2104 = vmatprep.subr.bf16.mxu0 0
        %2105 = vmatpush2.bf16.msra.mxu0 0
        %2106 = vmatprep.subr.bf16.mxu0 0
        %2107 = vmatpush2.bf16.msra.mxu0 0
        %2108 = vmatprep.subr.bf16.mxu0 0
        %2109 = vmatpush2.bf16.msra.mxu0 0
        %2110 = vmatprep.subr.bf16.mxu0 0
        %2111 = vmatpush2.bf16.msra.mxu0 0
        %2112 = vmatprep.subr.bf16.mxu0 0
        %2113 = vmatpush2.bf16.msra.mxu0 0
        %2114 = vmatprep.subr.bf16.mxu0 0
        %2115 = vmatpush2.bf16.msra.mxu0 0
        %2116 = vmatprep.subr.bf16.mxu0 0
        %2117 = vmatpush2.bf16.msra.mxu0 0
        %2118 = vmatprep.subr.bf16.mxu0 0
        %2119 = vmatpush2.bf16.msra.mxu0 0
        %2120 = vmatprep.mubr.bf16.mxu0 0
        %2121 = vmatmul.mubr.bf16.gmra.mxu0 %v2086
        %v2122 = vpop.f32.mrf.mxu0
        %v2123 = vadd.f32 %v2060, %v2122
        %v2124 = vpop.f32.mrf.mxu0
        %v2125 = vpop.f32.mrf.mxu0
        %v2126 = vadd.f32 %v2060, %v2125
        %v2127 = vpop.f32.mrf.mxu0
        %2128 = vdwg.mxu0
        %v2129 = vadd.f32 %v2123, %v1342
        %v2130 = vadd.f32 %v2126, %v1343
        %v2131 = vmax.f32 %v2129, 0.0
        %v2132 = vmax.f32 %v2130, 0.0
        %v2133 = vld [vmem:[#allocation5 + $0x60] sm:$0xf]
        %v2134 = vld [vmem:[#allocation5 + $0x64] sm:$0xf]
        %v2135 = vld [vmem:[#allocation5 + $0x68] sm:$0xf]
        %v2136 = vld [vmem:[#allocation5 + $0x6c] sm:$0xf]
        %v2137 = vpack.c.bf16 %v2132, %v2131
        %v2142 = vunpack.c.l.b16 %v2133
        %v2143 = vunpack.c.l.b16 %v2134
        %v2144 = vunpack.c.l.b16 %v2135
        %v2145 = vunpack.c.l.b16 %v2136
        %v2146 = vpack.c.b16 %v2143, %v2142
        %v2147 = vpack.c.b16 %v2145, %v2144
        %v2151 = vsel %vm1054, %v2137, 0
        %2153 = vmatprep.subr.bf16.mxu0 0
        %2154 = vmatpush1.bf16.msra.mxu0 0
        %2155 = vmatprep.subr.bf16.mxu0 0
        %2156 = vmatpush1.bf16.msra.mxu0 0
        %2157 = vmatprep.subr.bf16.mxu0 0
        %2158 = vmatpush1.bf16.msra.mxu0 0
        %2159 = vmatprep.subr.bf16.mxu0 0
        %2160 = vmatpush1.bf16.msra.mxu0 0
        %2161 = vmatprep.subr.bf16.mxu0 0
        %2162 = vmatpush1.bf16.msra.mxu0 0
        %2163 = vmatprep.subr.bf16.mxu0 0
        %2164 = vmatpush1.bf16.msra.mxu0 0
        %2165 = vmatprep.subr.bf16.mxu0 0
        %2166 = vmatpush1.bf16.msra.mxu0 %v2147
        %2167 = vmatprep.subr.bf16.mxu0 0
        %2168 = vmatpush1.bf16.msra.mxu0 %v2146
        %2169 = vmatprep.subr.bf16.mxu0 0
        %2170 = vmatpush2.bf16.msra.mxu0 0
        %2171 = vmatprep.subr.bf16.mxu0 0
        %2172 = vmatpush2.bf16.msra.mxu0 0
        %2173 = vmatprep.subr.bf16.mxu0 0
        %2174 = vmatpush2.bf16.msra.mxu0 0
        %2175 = vmatprep.subr.bf16.mxu0 0
        %2176 = vmatpush2.bf16.msra.mxu0 0
        %2177 = vmatprep.subr.bf16.mxu0 0
        %2178 = vmatpush2.bf16.msra.mxu0 0
        %2179 = vmatprep.subr.bf16.mxu0 0
        %2180 = vmatpush2.bf16.msra.mxu0 0
        %2181 = vmatprep.subr.bf16.mxu0 0
        %2182 = vmatpush2.bf16.msra.mxu0 0
        %2183 = vmatprep.subr.bf16.mxu0 0
        %2184 = vmatpush2.bf16.msra.mxu0 0
        %2185 = vmatprep.mubr.bf16.mxu0 0
        %2186 = vmatmul.mubr.bf16.gmra.mxu0 %v2151
        %v2187 = vpop.f32.mrf.mxu0
        %v2188 = vadd.f32 0.0, %v2187
        %v2189 = vpop.f32.mrf.mxu0
        %v2190 = vpop.f32.mrf.mxu0
        %v2191 = vadd.f32 0.0, %v2190
        %v2192 = vpop.f32.mrf.mxu0
        %2193 = vdwg.mxu0
        %v2194 = vpack.c.bf16 %v2191, %v2188
        %2195 = vmatprep.subr.bf16.mxu0 0
        %2196 = vmatpush1.bf16.msra.mxu0 0
        %2197 = vmatprep.subr.bf16.mxu0 0
        %2198 = vmatpush1.bf16.msra.mxu0 0
        %2199 = vmatprep.subr.bf16.mxu0 0
        %2200 = vmatpush1.bf16.msra.mxu0 0
        %2201 = vmatprep.subr.bf16.mxu0 0
        %2202 = vmatpush1.bf16.msra.mxu0 0
        %2203 = vmatprep.subr.bf16.mxu0 0
        %2204 = vmatpush1.bf16.msra.mxu0 0
        %2205 = vmatprep.subr.bf16.mxu0 0
        %2206 = vmatpush1.bf16.msra.mxu0 0
        %2207 = vmatprep.subr.bf16.mxu0 0
        %2208 = vmatpush1.bf16.msra.mxu0 0
        %2209 = vmatprep.subr.bf16.mxu0 0
        %2210 = vmatpush1.bf16.msra.mxu0 %v2194
        %2211 = vmatprep.subr.bf16.mxu0 0
        %2212 = vmatpush2.bf16.msra.mxu0 0
        %2213 = vmatprep.subr.bf16.mxu0 0
        %2214 = vmatpush2.bf16.msra.mxu0 0
        %2215 = vmatprep.subr.bf16.mxu0 0
        %2216 = vmatpush2.bf16.msra.mxu0 0
        %2217 = vmatprep.subr.bf16.mxu0 0
        %2218 = vmatpush2.bf16.msra.mxu0 0
        %2219 = vmatprep.subr.bf16.mxu0 0
        %2220 = vmatpush2.bf16.msra.mxu0 0
        %2221 = vmatprep.subr.bf16.mxu0 0
        %2222 = vmatpush2.bf16.msra.mxu0 0
        %2223 = vmatprep.subr.bf16.mxu0 0
        %2224 = vmatpush2.bf16.msra.mxu0 0
        %2225 = vmatprep.subr.bf16.mxu0 0
        %2226 = vmatpush2.bf16.msra.mxu0 0
        %2227 = vmatprep.mubr.bf16.mxu0 0
        %2228 = vmatmul.mubr.bf16.gmra.mxu0 %v746
        %v2229 = vpop.f32.mrf.mxu0
        %v2230 = vadd.f32 0.0, %v2229
        %v2231 = vpop.f32.mrf.mxu0
        %v2232 = vpop.f32.mrf.mxu0
        %v2233 = vadd.f32 0.0, %v2232
        %v2234 = vpop.f32.mrf.mxu0
        %2235 = vmatprep.mubr.bf16.mxu0 0
        %2236 = vmatmul.mubr.bf16.gmra.mxu0 %v749
        %v2237 = vpop.f32.mrf.mxu0
        %v2238 = vadd.f32 0.0, %v2237
        %v2239 = vpop.f32.mrf.mxu0
        %v2240 = vpop.f32.mrf.mxu0
        %v2241 = vadd.f32 0.0, %v2240
        %v2242 = vpop.f32.mrf.mxu0
        %2243 = vmatprep.mubr.bf16.mxu0 0
        %2244 = vmatmul.mubr.bf16.gmra.mxu0 %v752
        %v2245 = vpop.f32.mrf.mxu0
        %v2246 = vadd.f32 0.0, %v2245
        %v2247 = vpop.f32.mrf.mxu0
        %v2248 = vpop.f32.mrf.mxu0
        %v2249 = vadd.f32 0.0, %v2248
        %v2250 = vpop.f32.mrf.mxu0
        %2251 = vmatprep.mubr.bf16.mxu0 0
        %2252 = vmatmul.mubr.bf16.gmra.mxu0 %v755
        %v2253 = vpop.f32.mrf.mxu0
        %v2254 = vadd.f32 0.0, %v2253
        %v2255 = vpop.f32.mrf.mxu0
        %v2256 = vpop.f32.mrf.mxu0
        %v2257 = vadd.f32 0.0, %v2256
        %v2258 = vpop.f32.mrf.mxu0
        %2259 = vmatprep.mubr.bf16.mxu0 0
        %2260 = vmatmul.mubr.bf16.gmra.mxu0 %v758
        %v2261 = vpop.f32.mrf.mxu0
        %v2262 = vadd.f32 0.0, %v2261
        %v2263 = vpop.f32.mrf.mxu0
        %v2264 = vpop.f32.mrf.mxu0
        %v2265 = vadd.f32 0.0, %v2264
        %v2266 = vpop.f32.mrf.mxu0
        %2267 = vmatprep.mubr.bf16.mxu0 0
        %2268 = vmatmul.mubr.bf16.gmra.mxu0 %v761
        %v2269 = vpop.f32.mrf.mxu0
        %v2270 = vadd.f32 0.0, %v2269
        %v2271 = vpop.f32.mrf.mxu0
        %v2272 = vpop.f32.mrf.mxu0
        %v2273 = vadd.f32 0.0, %v2272
        %v2274 = vpop.f32.mrf.mxu0
        %2275 = vmatprep.mubr.bf16.mxu0 0
        %2276 = vmatmul.mubr.bf16.gmra.mxu0 %v764
        %v2277 = vpop.f32.mrf.mxu0
        %v2278 = vadd.f32 0.0, %v2277
        %v2279 = vpop.f32.mrf.mxu0
        %v2280 = vpop.f32.mrf.mxu0
        %v2281 = vadd.f32 0.0, %v2280
        %v2282 = vpop.f32.mrf.mxu0
        %2283 = vmatprep.mubr.bf16.mxu0 0
        %2284 = vmatmul.mubr.bf16.gmra.mxu0 %v767
        %v2285 = vpop.f32.mrf.mxu0
        %v2286 = vadd.f32 0.0, %v2285
        %v2287 = vpop.f32.mrf.mxu0
        %v2288 = vpop.f32.mrf.mxu0
        %v2289 = vadd.f32 0.0, %v2288
        %v2290 = vpop.f32.mrf.mxu0
        %2291 = vdwg.mxu0
        %2292 = vset.pattern.permute.xlu0 2
        %2293 = vperm.xlu0 %2292, %v620
        %v2294 = vpop.permute.xlu0 %2293
        %2296 = vset.pattern.permute.xlu0 2
        %2297 = vperm.xlu0 %2296, %v621
        %v2298 = vpop.permute.xlu0 %2297
        %2300 = vset.pattern.permute.xlu0 2
        %2301 = vperm.xlu0 %2300, %v622
        %v2302 = vpop.permute.xlu0 %2301
        %2304 = vset.pattern.permute.xlu0 2
        %2305 = vperm.xlu0 %2304, %v623
        %v2306 = vpop.permute.xlu0 %2305
        %2308 = vset.pattern.permute.xlu0 2
        %2309 = vperm.xlu0 %2308, %v624
        %v2310 = vpop.permute.xlu0 %2309
        %2312 = vset.pattern.permute.xlu0 2
        %2313 = vperm.xlu0 %2312, %v625
        %v2314 = vpop.permute.xlu0 %2313
        %2316 = vset.pattern.permute.xlu0 2
        %2317 = vperm.xlu0 %2316, %v626
        %v2318 = vpop.permute.xlu0 %2317
        %2320 = vset.pattern.permute.xlu0 2
        %2321 = vperm.xlu0 %2320, %v627
        %v2322 = vpop.permute.xlu0 %2321
        %2324 = vset.pattern.permute.xlu0 2
        %2325 = vperm.xlu0 %2324, %v628
        %v2326 = vpop.permute.xlu0 %2325
        %2328 = vset.pattern.permute.xlu0 2
        %2329 = vperm.xlu0 %2328, %v629
        %v2330 = vpop.permute.xlu0 %2329
        %2332 = vset.pattern.permute.xlu0 2
        %2333 = vperm.xlu0 %2332, %v630
        %v2334 = vpop.permute.xlu0 %2333
        %2336 = vset.pattern.permute.xlu0 2
        %2337 = vperm.xlu0 %2336, %v631
        %v2338 = vpop.permute.xlu0 %2337
        %2340 = vset.pattern.permute.xlu0 2
        %2341 = vperm.xlu0 %2340, %v632
        %v2342 = vpop.permute.xlu0 %2341
        %2344 = vset.pattern.permute.xlu0 2
        %2345 = vperm.xlu0 %2344, %v633
        %v2346 = vpop.permute.xlu0 %2345
        %2348 = vset.pattern.permute.xlu0 2
        %2349 = vperm.xlu0 %2348, %v634
        %v2350 = vpop.permute.xlu0 %2349
        %2352 = vset.pattern.permute.xlu0 2
        %2353 = vperm.xlu0 %2352, %v635
        %v2354 = vpop.permute.xlu0 %2353
        %v2356 = vmul.f32 %v2294, %v2230
        %v2357 = vmul.f32 %v2298, %v2233
        %v2358 = vmul.f32 %v2302, %v2238
        %v2359 = vmul.f32 %v2306, %v2241
        %v2360 = vmul.f32 %v2310, %v2246
        %v2361 = vmul.f32 %v2314, %v2249
        %v2362 = vmul.f32 %v2318, %v2254
        %v2363 = vmul.f32 %v2322, %v2257
        %v2364 = vmul.f32 %v2326, %v2262
        %v2365 = vmul.f32 %v2330, %v2265
        %v2366 = vmul.f32 %v2334, %v2270
        %v2367 = vmul.f32 %v2338, %v2273
        %v2368 = vmul.f32 %v2342, %v2278
        %v2369 = vmul.f32 %v2346, %v2281
        %v2370 = vmul.f32 %v2350, %v2286
        %v2371 = vmul.f32 %v2354, %v2289
        %v2372 = vpack.c.bf16 %v2357, %v2356
        %v2373 = vpack.c.bf16 %v2359, %v2358
        %v2374 = vpack.c.bf16 %v2361, %v2360
        %v2375 = vpack.c.bf16 %v2363, %v2362
        %v2376 = vpack.c.bf16 %v2365, %v2364
        %v2377 = vpack.c.bf16 %v2367, %v2366
        %v2378 = vpack.c.bf16 %v2369, %v2368
        %v2379 = vpack.c.bf16 %v2371, %v2370
        %2382 = vrot.lane.b32.xlu0 %v2188, 96
        %v2383 = vpop.permute.xlu0 %2382
        %2384 = vrot.lane.b32.xlu0 %v2191, 96
        %v2385 = vpop.permute.xlu0 %2384
        %2388 = vmatprep.subr.bf16.mxu0 0
        %2389 = vmatpush1.bf16.msra.mxu0 %v2379
        %2390 = vmatprep.subr.bf16.mxu0 0
        %2391 = vmatpush1.bf16.msra.mxu0 %v2378
        %2392 = vmatprep.subr.bf16.mxu0 0
        %2393 = vmatpush1.bf16.msra.mxu0 %v2377
        %2394 = vmatprep.subr.bf16.mxu0 0
        %2395 = vmatpush1.bf16.msra.mxu0 %v2376
        %2396 = vmatprep.subr.bf16.mxu0 0
        %2397 = vmatpush1.bf16.msra.mxu0 %v2375
        %2398 = vmatprep.subr.bf16.mxu0 0
        %2399 = vmatpush1.bf16.msra.mxu0 %v2374
        %2400 = vmatprep.subr.bf16.mxu0 0
        %2401 = vmatpush1.bf16.msra.mxu0 %v2373
        %2402 = vmatprep.subr.bf16.mxu0 0
        %2403 = vmatpush1.bf16.msra.mxu0 %v2372
        %2404 = vmatprep.subr.bf16.mxu0 0
        %2405 = vmatpush2.bf16.msra.mxu0 0
        %2406 = vmatprep.subr.bf16.mxu0 0
        %2407 = vmatpush2.bf16.msra.mxu0 0
        %2408 = vmatprep.subr.bf16.mxu0 0
        %2409 = vmatpush2.bf16.msra.mxu0 0
        %2410 = vmatprep.subr.bf16.mxu0 0
        %2411 = vmatpush2.bf16.msra.mxu0 0
        %2412 = vmatprep.subr.bf16.mxu0 0
        %2413 = vmatpush2.bf16.msra.mxu0 0
        %2414 = vmatprep.subr.bf16.mxu0 0
        %2415 = vmatpush2.bf16.msra.mxu0 0
        %2416 = vmatprep.subr.bf16.mxu0 0
        %2417 = vmatpush2.bf16.msra.mxu0 0
        %2418 = vmatprep.subr.bf16.mxu0 0
        %2419 = vmatpush2.bf16.msra.mxu0 0
        %2420 = vmatprep.mubr.bf16.mxu0 0
        %2421 = vmatmul.mubr.bf16.gmra.mxu0 %v976
        %v2422 = vpop.f32.mrf.mxu0
        %v2423 = vadd.f32 %v2383, %v2422
        %v2424 = vpop.f32.mrf.mxu0
        %v2425 = vpop.f32.mrf.mxu0
        %v2426 = vadd.f32 %v2385, %v2425
        %v2427 = vpop.f32.mrf.mxu0
        %2428 = vdwg.mxu0
        %v2429 = vld [vmem:[#allocation5 + $0x70] sm:$0x1]
        %v2430 = vunpack.c.l.bf16 %v2429
        %v2431 = vlaneseq
        %v2432 = vshrl.u32 %v2431, 7
        %v2433 = vsub.s32 0, %v2432
        %v2434 = vrot.slane %v2430, %v2433
        %v2435 = vadd.f32 %v2423, %v2434
        %v2436 = vadd.f32 %v2426, %v2434
        %v2437 = vmax.f32 %v2435, 0.0
        %v2438 = vmax.f32 %v2436, 0.0
        %v2439 = vld [vmem:[#allocation5 + $0x78] sm:$0xf]
        %v2440 = vld [vmem:[#allocation5 + $0x7c] sm:$0xf]
        %v2441 = vld [vmem:[#allocation5 + $0x80] sm:$0xf]
        %v2442 = vld [vmem:[#allocation5 + $0x84] sm:$0xf]
        %v2443 = vpack.c.bf16 %v2438, %v2437
        %v2448 = vunpack.c.l.b16 %v2439
        %v2449 = vunpack.c.l.b16 %v2440
        %v2450 = vunpack.c.l.b16 %v2441
        %v2451 = vunpack.c.l.b16 %v2442
        %v2452 = vpack.c.b16 %v2449, %v2448
        %v2453 = vpack.c.b16 %v2451, %v2450
        %v2457 = vsel %vm1054, %v2443, 0
        %2459 = vmatprep.subr.bf16.mxu0 0
        %2460 = vmatpush1.bf16.msra.mxu0 0
        %2461 = vmatprep.subr.bf16.mxu0 0
        %2462 = vmatpush1.bf16.msra.mxu0 0
        %2463 = vmatprep.subr.bf16.mxu0 0
        %2464 = vmatpush1.bf16.msra.mxu0 0
        %2465 = vmatprep.subr.bf16.mxu0 0
        %2466 = vmatpush1.bf16.msra.mxu0 0
        %2467 = vmatprep.subr.bf16.mxu0 0
        %2468 = vmatpush1.bf16.msra.mxu0 0
        %2469 = vmatprep.subr.bf16.mxu0 0
        %2470 = vmatpush1.bf16.msra.mxu0 0
        %2471 = vmatprep.subr.bf16.mxu0 0
        %2472 = vmatpush1.bf16.msra.mxu0 %v2453
        %2473 = vmatprep.subr.bf16.mxu0 0
        %2474 = vmatpush1.bf16.msra.mxu0 %v2452
        %2475 = vmatprep.subr.bf16.mxu0 0
        %2476 = vmatpush2.bf16.msra.mxu0 0
        %2477 = vmatprep.subr.bf16.mxu0 0
        %2478 = vmatpush2.bf16.msra.mxu0 0
        %2479 = vmatprep.subr.bf16.mxu0 0
        %2480 = vmatpush2.bf16.msra.mxu0 0
        %2481 = vmatprep.subr.bf16.mxu0 0
        %2482 = vmatpush2.bf16.msra.mxu0 0
        %2483 = vmatprep.subr.bf16.mxu0 0
        %2484 = vmatpush2.bf16.msra.mxu0 0
        %2485 = vmatprep.subr.bf16.mxu0 0
        %2486 = vmatpush2.bf16.msra.mxu0 0
        %2487 = vmatprep.subr.bf16.mxu0 0
        %2488 = vmatpush2.bf16.msra.mxu0 0
        %2489 = vmatprep.subr.bf16.mxu0 0
        %2490 = vmatpush2.bf16.msra.mxu0 0
        %2491 = vmatprep.mubr.bf16.mxu0 0
        %2492 = vmatmul.mubr.bf16.gmra.mxu0 %v2457
        %v2493 = vpop.f32.mrf.mxu0
        %v2494 = vadd.f32 0.0, %v2493
        %v2495 = vpop.f32.mrf.mxu0
        %v2496 = vpop.f32.mrf.mxu0
        %v2497 = vadd.f32 0.0, %v2496
        %v2498 = vpop.f32.mrf.mxu0
        %2499 = vdwg.mxu0
        %v2500 = vpack.c.bf16 %v2497, %v2494
        %2501 = vmatprep.subr.bf16.mxu0 0
        %2502 = vmatpush1.bf16.msra.mxu0 0
        %2503 = vmatprep.subr.bf16.mxu0 0
        %2504 = vmatpush1.bf16.msra.mxu0 0
        %2505 = vmatprep.subr.bf16.mxu0 0
        %2506 = vmatpush1.bf16.msra.mxu0 0
        %2507 = vmatprep.subr.bf16.mxu0 0
        %2508 = vmatpush1.bf16.msra.mxu0 0
        %2509 = vmatprep.subr.bf16.mxu0 0
        %2510 = vmatpush1.bf16.msra.mxu0 0
        %2511 = vmatprep.subr.bf16.mxu0 0
        %2512 = vmatpush1.bf16.msra.mxu0 0
        %2513 = vmatprep.subr.bf16.mxu0 0
        %2514 = vmatpush1.bf16.msra.mxu0 0
        %2515 = vmatprep.subr.bf16.mxu0 0
        %2516 = vmatpush1.bf16.msra.mxu0 %v2500
        %2517 = vmatprep.subr.bf16.mxu0 0
        %2518 = vmatpush2.bf16.msra.mxu0 0
        %2519 = vmatprep.subr.bf16.mxu0 0
        %2520 = vmatpush2.bf16.msra.mxu0 0
        %2521 = vmatprep.subr.bf16.mxu0 0
        %2522 = vmatpush2.bf16.msra.mxu0 0
        %2523 = vmatprep.subr.bf16.mxu0 0
        %2524 = vmatpush2.bf16.msra.mxu0 0
        %2525 = vmatprep.subr.bf16.mxu0 0
        %2526 = vmatpush2.bf16.msra.mxu0 0
        %2527 = vmatprep.subr.bf16.mxu0 0
        %2528 = vmatpush2.bf16.msra.mxu0 0
        %2529 = vmatprep.subr.bf16.mxu0 0
        %2530 = vmatpush2.bf16.msra.mxu0 0
        %2531 = vmatprep.subr.bf16.mxu0 0
        %2532 = vmatpush2.bf16.msra.mxu0 0
        %2533 = vmatprep.mubr.bf16.mxu0 0
        %2534 = vmatmul.mubr.bf16.gmra.mxu0 %v746
        %v2535 = vpop.f32.mrf.mxu0
        %v2536 = vadd.f32 0.0, %v2535
        %v2537 = vpop.f32.mrf.mxu0
        %v2538 = vpop.f32.mrf.mxu0
        %v2539 = vadd.f32 0.0, %v2538
        %v2540 = vpop.f32.mrf.mxu0
        %2541 = vmatprep.mubr.bf16.mxu0 0
        %2542 = vmatmul.mubr.bf16.gmra.mxu0 %v749
        %v2543 = vpop.f32.mrf.mxu0
        %v2544 = vadd.f32 0.0, %v2543
        %v2545 = vpop.f32.mrf.mxu0
        %v2546 = vpop.f32.mrf.mxu0
        %v2547 = vadd.f32 0.0, %v2546
        %v2548 = vpop.f32.mrf.mxu0
        %2549 = vmatprep.mubr.bf16.mxu0 0
        %2550 = vmatmul.mubr.bf16.gmra.mxu0 %v752
        %v2551 = vpop.f32.mrf.mxu0
        %v2552 = vadd.f32 0.0, %v2551
        %v2553 = vpop.f32.mrf.mxu0
        %v2554 = vpop.f32.mrf.mxu0
        %v2555 = vadd.f32 0.0, %v2554
        %v2556 = vpop.f32.mrf.mxu0
        %2557 = vmatprep.mubr.bf16.mxu0 0
        %2558 = vmatmul.mubr.bf16.gmra.mxu0 %v755
        %v2559 = vpop.f32.mrf.mxu0
        %v2560 = vadd.f32 0.0, %v2559
        %v2561 = vpop.f32.mrf.mxu0
        %v2562 = vpop.f32.mrf.mxu0
        %v2563 = vadd.f32 0.0, %v2562
        %v2564 = vpop.f32.mrf.mxu0
        %2565 = vmatprep.mubr.bf16.mxu0 0
        %2566 = vmatmul.mubr.bf16.gmra.mxu0 %v758
        %v2567 = vpop.f32.mrf.mxu0
        %v2568 = vadd.f32 0.0, %v2567
        %v2569 = vpop.f32.mrf.mxu0
        %v2570 = vpop.f32.mrf.mxu0
        %v2571 = vadd.f32 0.0, %v2570
        %v2572 = vpop.f32.mrf.mxu0
        %2573 = vmatprep.mubr.bf16.mxu0 0
        %2574 = vmatmul.mubr.bf16.gmra.mxu0 %v761
        %v2575 = vpop.f32.mrf.mxu0
        %v2576 = vadd.f32 0.0, %v2575
        %v2577 = vpop.f32.mrf.mxu0
        %v2578 = vpop.f32.mrf.mxu0
        %v2579 = vadd.f32 0.0, %v2578
        %v2580 = vpop.f32.mrf.mxu0
        %2581 = vmatprep.mubr.bf16.mxu0 0
        %2582 = vmatmul.mubr.bf16.gmra.mxu0 %v764
        %v2583 = vpop.f32.mrf.mxu0
        %v2584 = vadd.f32 0.0, %v2583
        %v2585 = vpop.f32.mrf.mxu0
        %v2586 = vpop.f32.mrf.mxu0
        %v2587 = vadd.f32 0.0, %v2586
        %v2588 = vpop.f32.mrf.mxu0
        %2589 = vmatprep.mubr.bf16.mxu0 0
        %2590 = vmatmul.mubr.bf16.gmra.mxu0 %v767
        %v2591 = vpop.f32.mrf.mxu0
        %v2592 = vadd.f32 0.0, %v2591
        %v2593 = vpop.f32.mrf.mxu0
        %v2594 = vpop.f32.mrf.mxu0
        %v2595 = vadd.f32 0.0, %v2594
        %v2596 = vpop.f32.mrf.mxu0
        %2597 = vdwg.mxu0
        %2598 = vset.pattern.permute.xlu0 3
        %2599 = vperm.xlu0 %2598, %v620
        %v2600 = vpop.permute.xlu0 %2599
        %2602 = vset.pattern.permute.xlu0 3
        %2603 = vperm.xlu0 %2602, %v621
        %v2604 = vpop.permute.xlu0 %2603
        %2606 = vset.pattern.permute.xlu0 3
        %2607 = vperm.xlu0 %2606, %v622
        %v2608 = vpop.permute.xlu0 %2607
        %2610 = vset.pattern.permute.xlu0 3
        %2611 = vperm.xlu0 %2610, %v623
        %v2612 = vpop.permute.xlu0 %2611
        %2614 = vset.pattern.permute.xlu0 3
        %2615 = vperm.xlu0 %2614, %v624
        %v2616 = vpop.permute.xlu0 %2615
        %2618 = vset.pattern.permute.xlu0 3
        %2619 = vperm.xlu0 %2618, %v625
        %v2620 = vpop.permute.xlu0 %2619
        %2622 = vset.pattern.permute.xlu0 3
        %2623 = vperm.xlu0 %2622, %v626
        %v2624 = vpop.permute.xlu0 %2623
        %2626 = vset.pattern.permute.xlu0 3
        %2627 = vperm.xlu0 %2626, %v627
        %v2628 = vpop.permute.xlu0 %2627
        %2630 = vset.pattern.permute.xlu0 3
        %2631 = vperm.xlu0 %2630, %v628
        %v2632 = vpop.permute.xlu0 %2631
        %2634 = vset.pattern.permute.xlu0 3
        %2635 = vperm.xlu0 %2634, %v629
        %v2636 = vpop.permute.xlu0 %2635
        %2638 = vset.pattern.permute.xlu0 3
        %2639 = vperm.xlu0 %2638, %v630
        %v2640 = vpop.permute.xlu0 %2639
        %2642 = vset.pattern.permute.xlu0 3
        %2643 = vperm.xlu0 %2642, %v631
        %v2644 = vpop.permute.xlu0 %2643
        %2646 = vset.pattern.permute.xlu0 3
        %2647 = vperm.xlu0 %2646, %v632
        %v2648 = vpop.permute.xlu0 %2647
        %2650 = vset.pattern.permute.xlu0 3
        %2651 = vperm.xlu0 %2650, %v633
        %v2652 = vpop.permute.xlu0 %2651
        %2654 = vset.pattern.permute.xlu0 3
        %2655 = vperm.xlu0 %2654, %v634
        %v2656 = vpop.permute.xlu0 %2655
        %2658 = vset.pattern.permute.xlu0 3
        %2659 = vperm.xlu0 %2658, %v635
        %v2660 = vpop.permute.xlu0 %2659
        %v2662 = vmul.f32 %v2600, %v2536
        %v2663 = vmul.f32 %v2604, %v2539
        %v2664 = vmul.f32 %v2608, %v2544
        %v2665 = vmul.f32 %v2612, %v2547
        %v2666 = vmul.f32 %v2616, %v2552
        %v2667 = vmul.f32 %v2620, %v2555
        %v2668 = vmul.f32 %v2624, %v2560
        %v2669 = vmul.f32 %v2628, %v2563
        %v2670 = vmul.f32 %v2632, %v2568
        %v2671 = vmul.f32 %v2636, %v2571
        %v2672 = vmul.f32 %v2640, %v2576
        %v2673 = vmul.f32 %v2644, %v2579
        %v2674 = vmul.f32 %v2648, %v2584
        %v2675 = vmul.f32 %v2652, %v2587
        %v2676 = vmul.f32 %v2656, %v2592
        %v2677 = vmul.f32 %v2660, %v2595
        %v2678 = vpack.c.bf16 %v2663, %v2662
        %v2679 = vpack.c.bf16 %v2665, %v2664
        %v2680 = vpack.c.bf16 %v2667, %v2666
        %v2681 = vpack.c.bf16 %v2669, %v2668
        %v2682 = vpack.c.bf16 %v2671, %v2670
        %v2683 = vpack.c.bf16 %v2673, %v2672
        %v2684 = vpack.c.bf16 %v2675, %v2674
        %v2685 = vpack.c.bf16 %v2677, %v2676
        %2688 = vrot.lane.b32.xlu0 %v2494, 96
        %v2689 = vpop.permute.xlu0 %2688
        %2690 = vrot.lane.b32.xlu0 %v2497, 96
        %v2691 = vpop.permute.xlu0 %2690
        %2694 = vmatprep.subr.bf16.mxu0 0
        %2695 = vmatpush1.bf16.msra.mxu0 %v2685
        %2696 = vmatprep.subr.bf16.mxu0 0
        %2697 = vmatpush1.bf16.msra.mxu0 %v2684
        %2698 = vmatprep.subr.bf16.mxu0 0
        %2699 = vmatpush1.bf16.msra.mxu0 %v2683
        %2700 = vmatprep.subr.bf16.mxu0 0
        %2701 = vmatpush1.bf16.msra.mxu0 %v2682
        %2702 = vmatprep.subr.bf16.mxu0 0
        %2703 = vmatpush1.bf16.msra.mxu0 %v2681
        %2704 = vmatprep.subr.bf16.mxu0 0
        %2705 = vmatpush1.bf16.msra.mxu0 %v2680
        %2706 = vmatprep.subr.bf16.mxu0 0
        %2707 = vmatpush1.bf16.msra.mxu0 %v2679
        %2708 = vmatprep.subr.bf16.mxu0 0
        %2709 = vmatpush1.bf16.msra.mxu0 %v2678
        %2710 = vmatprep.subr.bf16.mxu0 0
        %2711 = vmatpush2.bf16.msra.mxu0 0
        %2712 = vmatprep.subr.bf16.mxu0 0
        %2713 = vmatpush2.bf16.msra.mxu0 0
        %2714 = vmatprep.subr.bf16.mxu0 0
        %2715 = vmatpush2.bf16.msra.mxu0 0
        %2716 = vmatprep.subr.bf16.mxu0 0
        %2717 = vmatpush2.bf16.msra.mxu0 0
        %2718 = vmatprep.subr.bf16.mxu0 0
        %2719 = vmatpush2.bf16.msra.mxu0 0
        %2720 = vmatprep.subr.bf16.mxu0 0
        %2721 = vmatpush2.bf16.msra.mxu0 0
        %2722 = vmatprep.subr.bf16.mxu0 0
        %2723 = vmatpush2.bf16.msra.mxu0 0
        %2724 = vmatprep.subr.bf16.mxu0 0
        %2725 = vmatpush2.bf16.msra.mxu0 0
        %2726 = vmatprep.mubr.bf16.mxu0 0
        %2727 = vmatmul.mubr.bf16.gmra.mxu0 %v976
        %v2728 = vpop.f32.mrf.mxu0
        %v2729 = vadd.f32 %v2689, %v2728
        %v2730 = vpop.f32.mrf.mxu0
        %v2731 = vpop.f32.mrf.mxu0
        %v2732 = vadd.f32 %v2691, %v2731
        %v2733 = vpop.f32.mrf.mxu0
        %2734 = vdwg.mxu0
        %v2735 = vld [vmem:[#allocation5 + $0x88] sm:$0x1]
        %v2736 = vunpack.c.l.bf16 %v2735
        %v2737 = vlaneseq
        %v2738 = vshrl.u32 %v2737, 7
        %v2739 = vsub.s32 0, %v2738
        %v2740 = vrot.slane %v2736, %v2739
        %v2741 = vadd.f32 %v2729, %v2740
        %v2742 = vadd.f32 %v2732, %v2740
        %v2743 = vmax.f32 %v2741, 0.0
        %v2744 = vmax.f32 %v2742, 0.0
        %v2745 = vpack.c.bf16 %v2744, %v2743
        %2746 = vmatprep.subr.bf16.mxu0 0
        %2747 = vmatpush1.bf16.msra.mxu0 0
        %2748 = vmatprep.subr.bf16.mxu0 0
        %2749 = vmatpush1.bf16.msra.mxu0 0
        %2750 = vmatprep.subr.bf16.mxu0 0
        %2751 = vmatpush1.bf16.msra.mxu0 0
        %2752 = vmatprep.subr.bf16.mxu0 0
        %2753 = vmatpush1.bf16.msra.mxu0 0
        %2754 = vmatprep.subr.bf16.mxu0 0
        %2755 = vmatpush1.bf16.msra.mxu0 0
        %2756 = vmatprep.subr.bf16.mxu0 0
        %2757 = vmatpush1.bf16.msra.mxu0 0
        %2758 = vmatprep.subr.bf16.mxu0 0
        %2759 = vmatpush1.bf16.msra.mxu0 0
        %2760 = vmatprep.subr.bf16.mxu0 0
        %2761 = vmatpush1.bf16.msra.mxu0 %v2745
        %2762 = vmatprep.subr.bf16.mxu0 0
        %2763 = vmatpush2.bf16.msra.mxu0 0
        %2764 = vmatprep.subr.bf16.mxu0 0
        %2765 = vmatpush2.bf16.msra.mxu0 0
        %2766 = vmatprep.subr.bf16.mxu0 0
        %2767 = vmatpush2.bf16.msra.mxu0 0
        %2768 = vmatprep.subr.bf16.mxu0 0
        %2769 = vmatpush2.bf16.msra.mxu0 0
        %2770 = vmatprep.subr.bf16.mxu0 0
        %2771 = vmatpush2.bf16.msra.mxu0 0
        %2772 = vmatprep.subr.bf16.mxu0 0
        %2773 = vmatpush2.bf16.msra.mxu0 0
        %2774 = vmatprep.subr.bf16.mxu0 0
        %2775 = vmatpush2.bf16.msra.mxu0 0
        %2776 = vmatprep.subr.bf16.mxu0 0
        %2777 = vmatpush2.bf16.msra.mxu0 0
        %2778 = vmatprep.mubr.bf16.mxu0 0
        %2779 = vmatmul.mubr.bf16.gmra.mxu0 %v1354
        %v2780 = vpop.f32.mrf.mxu0
        %v2781 = vadd.f32 0.0, %v2780
        %v2782 = vpop.f32.mrf.mxu0
        %v2783 = vpop.f32.mrf.mxu0
        %v2784 = vadd.f32 0.0, %v2783
        %v2785 = vpop.f32.mrf.mxu0
        %2786 = vmatprep.mubr.bf16.mxu0 0
        %2787 = vmatmul.mubr.bf16.gmra.mxu0 %v1357
        %v2788 = vpop.f32.mrf.mxu0
        %v2789 = vadd.f32 0.0, %v2788
        %v2790 = vpop.f32.mrf.mxu0
        %v2791 = vpop.f32.mrf.mxu0
        %v2792 = vadd.f32 0.0, %v2791
        %v2793 = vpop.f32.mrf.mxu0
        %2794 = vmatprep.mubr.bf16.mxu0 0
        %2795 = vmatmul.mubr.bf16.gmra.mxu0 %v1360
        %v2796 = vpop.f32.mrf.mxu0
        %v2797 = vadd.f32 0.0, %v2796
        %v2798 = vpop.f32.mrf.mxu0
        %v2799 = vpop.f32.mrf.mxu0
        %v2800 = vadd.f32 0.0, %v2799
        %v2801 = vpop.f32.mrf.mxu0
        %2802 = vmatprep.mubr.bf16.mxu0 0
        %2803 = vmatmul.mubr.bf16.gmra.mxu0 %v1363
        %v2804 = vpop.f32.mrf.mxu0
        %v2805 = vadd.f32 0.0, %v2804
        %v2806 = vpop.f32.mrf.mxu0
        %v2807 = vpop.f32.mrf.mxu0
        %v2808 = vadd.f32 0.0, %v2807
        %v2809 = vpop.f32.mrf.mxu0
        %2810 = vmatprep.mubr.bf16.mxu0 0
        %2811 = vmatmul.mubr.bf16.gmra.mxu0 %v1366
        %v2812 = vpop.f32.mrf.mxu0
        %v2813 = vadd.f32 0.0, %v2812
        %v2814 = vpop.f32.mrf.mxu0
        %v2815 = vpop.f32.mrf.mxu0
        %v2816 = vadd.f32 0.0, %v2815
        %v2817 = vpop.f32.mrf.mxu0
        %2818 = vmatprep.mubr.bf16.mxu0 0
        %2819 = vmatmul.mubr.bf16.gmra.mxu0 %v1369
        %v2820 = vpop.f32.mrf.mxu0
        %v2821 = vadd.f32 0.0, %v2820
        %v2822 = vpop.f32.mrf.mxu0
        %v2823 = vpop.f32.mrf.mxu0
        %v2824 = vadd.f32 0.0, %v2823
        %v2825 = vpop.f32.mrf.mxu0
        %2826 = vmatprep.mubr.bf16.mxu0 0
        %2827 = vmatmul.mubr.bf16.gmra.mxu0 %v1372
        %v2828 = vpop.f32.mrf.mxu0
        %v2829 = vadd.f32 0.0, %v2828
        %v2830 = vpop.f32.mrf.mxu0
        %v2831 = vpop.f32.mrf.mxu0
        %v2832 = vadd.f32 0.0, %v2831
        %v2833 = vpop.f32.mrf.mxu0
        %2834 = vmatprep.mubr.bf16.mxu0 0
        %2835 = vmatmul.mubr.bf16.gmra.mxu0 %v1375
        %v2836 = vpop.f32.mrf.mxu0
        %v2837 = vadd.f32 0.0, %v2836
        %v2838 = vpop.f32.mrf.mxu0
        %v2839 = vpop.f32.mrf.mxu0
        %v2840 = vadd.f32 0.0, %v2839
        %v2841 = vpop.f32.mrf.mxu0
        %2842 = vdwg.mxu0
        %2859 = vrot.lane.b32.xlu0 %v2781, 32
        %v2860 = vpop.permute.xlu0 %2859
        %2861 = vrot.lane.b32.xlu0 %v2784, 32
        %v2862 = vpop.permute.xlu0 %2861
        %2863 = vrot.lane.b32.xlu0 %v2789, 32
        %v2864 = vpop.permute.xlu0 %2863
        %2865 = vrot.lane.b32.xlu0 %v2792, 32
        %v2866 = vpop.permute.xlu0 %2865
        %2867 = vrot.lane.b32.xlu0 %v2797, 32
        %v2868 = vpop.permute.xlu0 %2867
        %2869 = vrot.lane.b32.xlu0 %v2800, 32
        %v2870 = vpop.permute.xlu0 %2869
        %2871 = vrot.lane.b32.xlu0 %v2805, 32
        %v2872 = vpop.permute.xlu0 %2871
        %2873 = vrot.lane.b32.xlu0 %v2808, 32
        %v2874 = vpop.permute.xlu0 %2873
        %2875 = vrot.lane.b32.xlu0 %v2813, 32
        %v2876 = vpop.permute.xlu0 %2875
        %2877 = vrot.lane.b32.xlu0 %v2816, 32
        %v2878 = vpop.permute.xlu0 %2877
        %2879 = vrot.lane.b32.xlu0 %v2821, 32
        %v2880 = vpop.permute.xlu0 %2879
        %2881 = vrot.lane.b32.xlu0 %v2824, 32
        %v2882 = vpop.permute.xlu0 %2881
        %2883 = vrot.lane.b32.xlu0 %v2829, 32
        %v2884 = vpop.permute.xlu0 %2883
        %2885 = vrot.lane.b32.xlu0 %v2832, 32
        %v2886 = vpop.permute.xlu0 %2885
        %2887 = vrot.lane.b32.xlu0 %v2837, 32
        %v2888 = vpop.permute.xlu0 %2887
        %2889 = vrot.lane.b32.xlu0 %v2840, 32
        %v2890 = vpop.permute.xlu0 %2889
        %v2907 = vsel %vm1054, %v1970, %v2860
        %v2908 = vsel %vm1054, %v1971, %v2862
        %v2909 = vsel %vm1054, %v1972, %v2864
        %v2910 = vsel %vm1054, %v1973, %v2866
        %v2911 = vsel %vm1054, %v1974, %v2868
        %v2912 = vsel %vm1054, %v1975, %v2870
        %v2913 = vsel %vm1054, %v1976, %v2872
        %v2914 = vsel %vm1054, %v1977, %v2874
        %v2915 = vsel %vm1054, %v1978, %v2876
        %v2916 = vsel %vm1054, %v1979, %v2878
        %v2917 = vsel %vm1054, %v1980, %v2880
        %v2918 = vsel %vm1054, %v1981, %v2882
        %v2919 = vsel %vm1054, %v1982, %v2884
        %v2920 = vsel %vm1054, %v1983, %v2886
        %v2921 = vsel %vm1054, %v1984, %v2888
        %v2922 = vsel %vm1054, %v1985, %v2890
        %v2923 = vld [vmem:[#allocation5 + $0xb8] sm:$0xf]
        %v2924 = vld [vmem:[#allocation5 + $0xbc] sm:$0xf]
        %v2925 = vld [vmem:[#allocation5 + $0xc0] sm:$0xf]
        %v2926 = vld [vmem:[#allocation5 + $0xc4] sm:$0xf]
        %v2927 = vld [vmem:[#allocation5 + $0xc8] sm:$0xf]
        %v2928 = vld [vmem:[#allocation5 + $0xcc] sm:$0xf]
        %v2929 = vld [vmem:[#allocation5 + $0xd0] sm:$0xf]
        %v2930 = vld [vmem:[#allocation5 + $0xd4] sm:$0xf]
        %v2931 = vpack.c.bf16 %v2908, %v2907
        %v2932 = vpack.c.bf16 %v2910, %v2909
        %v2933 = vpack.c.bf16 %v2912, %v2911
        %v2934 = vpack.c.bf16 %v2914, %v2913
        %v2935 = vpack.c.bf16 %v2916, %v2915
        %v2936 = vpack.c.bf16 %v2918, %v2917
        %v2937 = vpack.c.bf16 %v2920, %v2919
        %v2938 = vpack.c.bf16 %v2922, %v2921
        %v2947 = vunpack.c.l.b16 %v2923
        %v2948 = vunpack.c.l.b16 %v2924
        %v2949 = vunpack.c.l.b16 %v2925
        %v2950 = vunpack.c.l.b16 %v2926
        %v2951 = vunpack.c.l.b16 %v2927
        %v2952 = vunpack.c.l.b16 %v2928
        %v2953 = vunpack.c.l.b16 %v2929
        %v2954 = vunpack.c.l.b16 %v2930
        %v2955 = vpack.c.b16 %v2948, %v2947
        %v2956 = vpack.c.b16 %v2950, %v2949
        %v2957 = vpack.c.b16 %v2952, %v2951
        %v2958 = vpack.c.b16 %v2954, %v2953
        %v2964 = vsel %vm418, %v2931, 0
        %v2967 = vsel %vm418, %v2932, 0
        %v2970 = vsel %vm418, %v2933, 0
        %v2973 = vsel %vm418, %v2934, 0
        %v2976 = vsel %vm418, %v2935, 0
        %v2979 = vsel %vm418, %v2936, 0
        %v2982 = vsel %vm418, %v2937, 0
        %v2985 = vsel %vm418, %v2938, 0
        %2987 = vmatprep.subr.bf16.mxu0 0
        %2988 = vmatpush1.bf16.msra.mxu0 0
        %2989 = vmatprep.subr.bf16.mxu0 0
        %2990 = vmatpush1.bf16.msra.mxu0 0
        %2991 = vmatprep.subr.bf16.mxu0 0
        %2992 = vmatpush1.bf16.msra.mxu0 0
        %2993 = vmatprep.subr.bf16.mxu0 0
        %2994 = vmatpush1.bf16.msra.mxu0 0
        %2995 = vmatprep.subr.bf16.mxu0 0
        %2996 = vmatpush1.bf16.msra.mxu0 %v2958
        %2997 = vmatprep.subr.bf16.mxu0 0
        %2998 = vmatpush1.bf16.msra.mxu0 %v2957
        %2999 = vmatprep.subr.bf16.mxu0 0
        %3000 = vmatpush1.bf16.msra.mxu0 %v2956
        %3001 = vmatprep.subr.bf16.mxu0 0
        %3002 = vmatpush1.bf16.msra.mxu0 %v2955
        %3003 = vmatprep.subr.bf16.mxu0 0
        %3004 = vmatpush2.bf16.msra.mxu0 0
        %3005 = vmatprep.subr.bf16.mxu0 0
        %3006 = vmatpush2.bf16.msra.mxu0 0
        %3007 = vmatprep.subr.bf16.mxu0 0
        %3008 = vmatpush2.bf16.msra.mxu0 0
        %3009 = vmatprep.subr.bf16.mxu0 0
        %3010 = vmatpush2.bf16.msra.mxu0 0
        %3011 = vmatprep.subr.bf16.mxu0 0
        %3012 = vmatpush2.bf16.msra.mxu0 0
        %3013 = vmatprep.subr.bf16.mxu0 0
        %3014 = vmatpush2.bf16.msra.mxu0 0
        %3015 = vmatprep.subr.bf16.mxu0 0
        %3016 = vmatpush2.bf16.msra.mxu0 0
        %3017 = vmatprep.subr.bf16.mxu0 0
        %3018 = vmatpush2.bf16.msra.mxu0 0
        %3019 = vmatprep.mubr.bf16.mxu0 0
        %3020 = vmatmul.mubr.bf16.gmra.mxu0 %v2964
        %v3021 = vpop.f32.mrf.mxu0
        %v3022 = vadd.f32 0.0, %v3021
        %v3023 = vpop.f32.mrf.mxu0
        %v3024 = vpop.f32.mrf.mxu0
        %v3025 = vadd.f32 0.0, %v3024
        %v3026 = vpop.f32.mrf.mxu0
        %3027 = vmatprep.mubr.bf16.mxu0 0
        %3028 = vmatmul.mubr.bf16.gmra.mxu0 %v2967
        %v3029 = vpop.f32.mrf.mxu0
        %v3030 = vadd.f32 0.0, %v3029
        %v3031 = vpop.f32.mrf.mxu0
        %v3032 = vpop.f32.mrf.mxu0
        %v3033 = vadd.f32 0.0, %v3032
        %v3034 = vpop.f32.mrf.mxu0
        %3035 = vmatprep.mubr.bf16.mxu0 0
        %3036 = vmatmul.mubr.bf16.gmra.mxu0 %v2970
        %v3037 = vpop.f32.mrf.mxu0
        %v3038 = vadd.f32 0.0, %v3037
        %v3039 = vpop.f32.mrf.mxu0
        %v3040 = vpop.f32.mrf.mxu0
        %v3041 = vadd.f32 0.0, %v3040
        %v3042 = vpop.f32.mrf.mxu0
        %3043 = vmatprep.mubr.bf16.mxu0 0
        %3044 = vmatmul.mubr.bf16.gmra.mxu0 %v2973
        %v3045 = vpop.f32.mrf.mxu0
        %v3046 = vadd.f32 0.0, %v3045
        %v3047 = vpop.f32.mrf.mxu0
        %v3048 = vpop.f32.mrf.mxu0
        %v3049 = vadd.f32 0.0, %v3048
        %v3050 = vpop.f32.mrf.mxu0
        %3051 = vmatprep.mubr.bf16.mxu0 0
        %3052 = vmatmul.mubr.bf16.gmra.mxu0 %v2976
        %v3053 = vpop.f32.mrf.mxu0
        %v3054 = vadd.f32 0.0, %v3053
        %v3055 = vpop.f32.mrf.mxu0
        %v3056 = vpop.f32.mrf.mxu0
        %v3057 = vadd.f32 0.0, %v3056
        %v3058 = vpop.f32.mrf.mxu0
        %3059 = vmatprep.mubr.bf16.mxu0 0
        %3060 = vmatmul.mubr.bf16.gmra.mxu0 %v2979
        %v3061 = vpop.f32.mrf.mxu0
        %v3062 = vadd.f32 0.0, %v3061
        %v3063 = vpop.f32.mrf.mxu0
        %v3064 = vpop.f32.mrf.mxu0
        %v3065 = vadd.f32 0.0, %v3064
        %v3066 = vpop.f32.mrf.mxu0
        %3067 = vmatprep.mubr.bf16.mxu0 0
        %3068 = vmatmul.mubr.bf16.gmra.mxu0 %v2982
        %v3069 = vpop.f32.mrf.mxu0
        %v3070 = vadd.f32 0.0, %v3069
        %v3071 = vpop.f32.mrf.mxu0
        %v3072 = vpop.f32.mrf.mxu0
        %v3073 = vadd.f32 0.0, %v3072
        %v3074 = vpop.f32.mrf.mxu0
        %3075 = vmatprep.mubr.bf16.mxu0 0
        %3076 = vmatmul.mubr.bf16.gmra.mxu0 %v2985
        %v3077 = vpop.f32.mrf.mxu0
        %v3078 = vadd.f32 0.0, %v3077
        %v3079 = vpop.f32.mrf.mxu0
        %v3080 = vpop.f32.mrf.mxu0
        %v3081 = vadd.f32 0.0, %v3080
        %v3082 = vpop.f32.mrf.mxu0
        %3083 = vdwg.mxu0
        %v3084 = vpack.c.bf16 %v3025, %v3022
        %v3085 = vpack.c.bf16 %v3033, %v3030
        %v3086 = vpack.c.bf16 %v3041, %v3038
        %v3087 = vpack.c.bf16 %v3049, %v3046
        %v3088 = vpack.c.bf16 %v3057, %v3054
        %v3089 = vpack.c.bf16 %v3065, %v3062
        %v3090 = vpack.c.bf16 %v3073, %v3070
        %v3091 = vpack.c.bf16 %v3081, %v3078
        %3108 = vrot.lane.b32.xlu0 %v3022, 96
        %v3109 = vpop.permute.xlu0 %3108
        %3110 = vrot.lane.b32.xlu0 %v3025, 96
        %v3111 = vpop.permute.xlu0 %3110
        %3112 = vrot.lane.b32.xlu0 %v3030, 96
        %v3113 = vpop.permute.xlu0 %3112
        %3114 = vrot.lane.b32.xlu0 %v3033, 96
        %v3115 = vpop.permute.xlu0 %3114
        %3116 = vrot.lane.b32.xlu0 %v3038, 96
        %v3117 = vpop.permute.xlu0 %3116
        %3118 = vrot.lane.b32.xlu0 %v3041, 96
        %v3119 = vpop.permute.xlu0 %3118
        %3120 = vrot.lane.b32.xlu0 %v3046, 96
        %v3121 = vpop.permute.xlu0 %3120
        %3122 = vrot.lane.b32.xlu0 %v3049, 96
        %v3123 = vpop.permute.xlu0 %3122
        %3124 = vrot.lane.b32.xlu0 %v3054, 96
        %v3125 = vpop.permute.xlu0 %3124
        %3126 = vrot.lane.b32.xlu0 %v3057, 96
        %v3127 = vpop.permute.xlu0 %3126
        %3128 = vrot.lane.b32.xlu0 %v3062, 96
        %v3129 = vpop.permute.xlu0 %3128
        %3130 = vrot.lane.b32.xlu0 %v3065, 96
        %v3131 = vpop.permute.xlu0 %3130
        %3132 = vrot.lane.b32.xlu0 %v3070, 96
        %v3133 = vpop.permute.xlu0 %3132
        %3134 = vrot.lane.b32.xlu0 %v3073, 96
        %v3135 = vpop.permute.xlu0 %3134
        %3136 = vrot.lane.b32.xlu0 %v3078, 96
        %v3137 = vpop.permute.xlu0 %3136
        %3138 = vrot.lane.b32.xlu0 %v3081, 96
        %v3139 = vpop.permute.xlu0 %3138
        %3156 = vmatprep.subr.bf16.mxu0 0
        %3157 = vmatpush1.bf16.msra.mxu0 %v3091
        %3158 = vmatprep.subr.bf16.mxu0 0
        %3159 = vmatpush1.bf16.msra.mxu0 %v3090
        %3160 = vmatprep.subr.bf16.mxu0 0
        %3161 = vmatpush1.bf16.msra.mxu0 %v3089
        %3162 = vmatprep.subr.bf16.mxu0 0
        %3163 = vmatpush1.bf16.msra.mxu0 %v3088
        %3164 = vmatprep.subr.bf16.mxu0 0
        %3165 = vmatpush1.bf16.msra.mxu0 %v3087
        %3166 = vmatprep.subr.bf16.mxu0 0
        %3167 = vmatpush1.bf16.msra.mxu0 %v3086
        %3168 = vmatprep.subr.bf16.mxu0 0
        %3169 = vmatpush1.bf16.msra.mxu0 %v3085
        %3170 = vmatprep.subr.bf16.mxu0 0
        %3171 = vmatpush1.bf16.msra.mxu0 %v3084
        %3172 = vmatprep.subr.bf16.mxu0 0
        %3173 = vmatpush2.bf16.msra.mxu0 0
        %3174 = vmatprep.subr.bf16.mxu0 0
        %3175 = vmatpush2.bf16.msra.mxu0 0
        %3176 = vmatprep.subr.bf16.mxu0 0
        %3177 = vmatpush2.bf16.msra.mxu0 0
        %3178 = vmatprep.subr.bf16.mxu0 0
        %3179 = vmatpush2.bf16.msra.mxu0 0
        %3180 = vmatprep.subr.bf16.mxu0 0
        %3181 = vmatpush2.bf16.msra.mxu0 0
        %3182 = vmatprep.subr.bf16.mxu0 0
        %3183 = vmatpush2.bf16.msra.mxu0 0
        %3184 = vmatprep.subr.bf16.mxu0 0
        %3185 = vmatpush2.bf16.msra.mxu0 0
        %3186 = vmatprep.subr.bf16.mxu0 0
        %3187 = vmatpush2.bf16.msra.mxu0 0
        %3188 = vmatprep.mubr.bf16.mxu0 0
        %3189 = vmatmul.mubr.bf16.gmra.mxu0 %v1771
        %v3190 = vpop.f32.mrf.mxu0
        %v3191 = vadd.f32 %v3109, %v3190
        %v3192 = vpop.f32.mrf.mxu0
        %v3193 = vpop.f32.mrf.mxu0
        %v3194 = vadd.f32 %v3111, %v3193
        %v3195 = vpop.f32.mrf.mxu0
        %3196 = vmatprep.mubr.bf16.mxu0 0
        %3197 = vmatmul.mubr.bf16.gmra.mxu0 %v1772
        %v3198 = vpop.f32.mrf.mxu0
        %v3199 = vadd.f32 %v3113, %v3198
        %v3200 = vpop.f32.mrf.mxu0
        %v3201 = vpop.f32.mrf.mxu0
        %v3202 = vadd.f32 %v3115, %v3201
        %v3203 = vpop.f32.mrf.mxu0
        %3204 = vmatprep.mubr.bf16.mxu0 0
        %3205 = vmatmul.mubr.bf16.gmra.mxu0 %v1773
        %v3206 = vpop.f32.mrf.mxu0
        %v3207 = vadd.f32 %v3117, %v3206
        %v3208 = vpop.f32.mrf.mxu0
        %v3209 = vpop.f32.mrf.mxu0
        %v3210 = vadd.f32 %v3119, %v3209
        %v3211 = vpop.f32.mrf.mxu0
        %3212 = vmatprep.mubr.bf16.mxu0 0
        %3213 = vmatmul.mubr.bf16.gmra.mxu0 %v1774
        %v3214 = vpop.f32.mrf.mxu0
        %v3215 = vadd.f32 %v3121, %v3214
        %v3216 = vpop.f32.mrf.mxu0
        %v3217 = vpop.f32.mrf.mxu0
        %v3218 = vadd.f32 %v3123, %v3217
        %v3219 = vpop.f32.mrf.mxu0
        %3220 = vmatprep.mubr.bf16.mxu0 0
        %3221 = vmatmul.mubr.bf16.gmra.mxu0 %v1775
        %v3222 = vpop.f32.mrf.mxu0
        %v3223 = vadd.f32 %v3125, %v3222
        %v3224 = vpop.f32.mrf.mxu0
        %v3225 = vpop.f32.mrf.mxu0
        %v3226 = vadd.f32 %v3127, %v3225
        %v3227 = vpop.f32.mrf.mxu0
        %3228 = vmatprep.mubr.bf16.mxu0 0
        %3229 = vmatmul.mubr.bf16.gmra.mxu0 %v1776
        %v3230 = vpop.f32.mrf.mxu0
        %v3231 = vadd.f32 %v3129, %v3230
        %v3232 = vpop.f32.mrf.mxu0
        %v3233 = vpop.f32.mrf.mxu0
        %v3234 = vadd.f32 %v3131, %v3233
        %v3235 = vpop.f32.mrf.mxu0
        %3236 = vmatprep.mubr.bf16.mxu0 0
        %3237 = vmatmul.mubr.bf16.gmra.mxu0 %v1777
        %v3238 = vpop.f32.mrf.mxu0
        %v3239 = vadd.f32 %v3133, %v3238
        %v3240 = vpop.f32.mrf.mxu0
        %v3241 = vpop.f32.mrf.mxu0
        %v3242 = vadd.f32 %v3135, %v3241
        %v3243 = vpop.f32.mrf.mxu0
        %3244 = vmatprep.mubr.bf16.mxu0 0
        %3245 = vmatmul.mubr.bf16.gmra.mxu0 %v1778
        %v3246 = vpop.f32.mrf.mxu0
        %v3247 = vadd.f32 %v3137, %v3246
        %v3248 = vpop.f32.mrf.mxu0
        %v3249 = vpop.f32.mrf.mxu0
        %v3250 = vadd.f32 %v3139, %v3249
        %v3251 = vpop.f32.mrf.mxu0
        %3252 = vdwg.mxu0
        %v3253 = vld [vmem:[#allocation5 + $0xd8] sm:$0x1]
        %v3254 = vunpack.c.l.bf16 %v3253
        %v3255 = vlaneseq
        %v3256 = vshrl.u32 %v3255, 7
        %v3257 = vsub.s32 0, %v3256
        %v3258 = vrot.slane %v3254, %v3257
        %v3259 = vadd.f32 %v3191, %v3258
        %v3260 = vadd.f32 %v3194, %v3258
        %v3261 = vadd.f32 %v3199, %v3258
        %v3262 = vadd.f32 %v3202, %v3258
        %v3263 = vadd.f32 %v3207, %v3258
        %v3264 = vadd.f32 %v3210, %v3258
        %v3265 = vadd.f32 %v3215, %v3258
        %v3266 = vadd.f32 %v3218, %v3258
        %v3267 = vadd.f32 %v3223, %v3258
        %v3268 = vadd.f32 %v3226, %v3258
        %v3269 = vadd.f32 %v3231, %v3258
        %v3270 = vadd.f32 %v3234, %v3258
        %v3271 = vadd.f32 %v3239, %v3258
        %v3272 = vadd.f32 %v3242, %v3258
        %v3273 = vadd.f32 %v3247, %v3258
        %v3274 = vadd.f32 %v3250, %v3258
        %v3275 = vmax.f32 %v3259, 0.0
        %v3276 = vmax.f32 %v3260, 0.0
        %v3277 = vmax.f32 %v3261, 0.0
        %v3278 = vmax.f32 %v3262, 0.0
        %v3279 = vmax.f32 %v3263, 0.0
        %v3280 = vmax.f32 %v3264, 0.0
        %v3281 = vmax.f32 %v3265, 0.0
        %v3282 = vmax.f32 %v3266, 0.0
        %v3283 = vmax.f32 %v3267, 0.0
        %v3284 = vmax.f32 %v3268, 0.0
        %v3285 = vmax.f32 %v3269, 0.0
        %v3286 = vmax.f32 %v3270, 0.0
        %v3287 = vmax.f32 %v3271, 0.0
        %v3288 = vmax.f32 %v3272, 0.0
        %v3289 = vmax.f32 %v3273, 0.0
        %v3290 = vmax.f32 %v3274, 0.0
        %v3291 = vld [vmem:[#allocation5 + $0x1d0] sm:$0x1]
        %v3292 = vpack.c.bf16 %v3276, %v3275
        %v3293 = vpack.c.bf16 %v3278, %v3277
        %v3294 = vpack.c.bf16 %v3280, %v3279
        %v3295 = vpack.c.bf16 %v3282, %v3281
        %v3296 = vpack.c.bf16 %v3284, %v3283
        %v3297 = vpack.c.bf16 %v3286, %v3285
        %v3298 = vpack.c.bf16 %v3288, %v3287
        %v3299 = vpack.c.bf16 %v3290, %v3289
        %3300 = vmatprep.subr.bf16.mxu0 0
        %3301 = vmatpush1.bf16.msra.mxu0 %v3299
        %3302 = vmatprep.subr.bf16.mxu0 0
        %3303 = vmatpush1.bf16.msra.mxu0 %v3298
        %3304 = vmatprep.subr.bf16.mxu0 0
        %3305 = vmatpush1.bf16.msra.mxu0 %v3297
        %3306 = vmatprep.subr.bf16.mxu0 0
        %3307 = vmatpush1.bf16.msra.mxu0 %v3296
        %3308 = vmatprep.subr.bf16.mxu0 0
        %3309 = vmatpush1.bf16.msra.mxu0 %v3295
        %3310 = vmatprep.subr.bf16.mxu0 0
        %3311 = vmatpush1.bf16.msra.mxu0 %v3294
        %3312 = vmatprep.subr.bf16.mxu0 0
        %3313 = vmatpush1.bf16.msra.mxu0 %v3293
        %3314 = vmatprep.subr.bf16.mxu0 0
        %3315 = vmatpush1.bf16.msra.mxu0 %v3292
        %3316 = vmatprep.subr.bf16.mxu0 0
        %3317 = vmatpush2.bf16.msra.mxu0 0
        %3318 = vmatprep.subr.bf16.mxu0 0
        %3319 = vmatpush2.bf16.msra.mxu0 0
        %3320 = vmatprep.subr.bf16.mxu0 0
        %3321 = vmatpush2.bf16.msra.mxu0 0
        %3322 = vmatprep.subr.bf16.mxu0 0
        %3323 = vmatpush2.bf16.msra.mxu0 0
        %3324 = vmatprep.subr.bf16.mxu0 0
        %3325 = vmatpush2.bf16.msra.mxu0 0
        %3326 = vmatprep.subr.bf16.mxu0 0
        %3327 = vmatpush2.bf16.msra.mxu0 0
        %3328 = vmatprep.subr.bf16.mxu0 0
        %3329 = vmatpush2.bf16.msra.mxu0 0
        %3330 = vmatprep.subr.bf16.mxu0 0
        %3331 = vmatpush2.bf16.msra.mxu0 0
        %3332 = vmatprep.mubr.bf16.mxu0 0
        %3333 = vmatmul.mubr.bf16.gmra.mxu0 %v3291
        %v3334 = vpop.f32.mrf.mxu0
        %v3335 = vadd.f32 0.0, %v3334
        %v3336 = vpop.f32.mrf.mxu0
        %v3337 = vpop.f32.mrf.mxu0
        %v3338 = vpop.f32.mrf.mxu0
        %3339 = vdwg.mxu0
        %v3340 = vld [vmem:[#allocation5 + $0x108] sm:$0xf]
        %v3341 = vld [vmem:[#allocation5 + $0x10c] sm:$0xf]
        %v3342 = vld [vmem:[#allocation5 + $0x110] sm:$0xf]
        %v3343 = vld [vmem:[#allocation5 + $0x114] sm:$0xf]
        %v3344 = vpack.c.bf16 %v3335, %v3335
        %v3345 = vld [vmem:[#allocation5 + $0x118] sm:$0x1]
        %v3346 = vunpack.c.l.bf16 %v3345
        %v3347 = vlaneseq
        %v3348 = vshrl.u32 %v3347, 7
        %v3349 = vsub.s32 0, %v3348
        %v3350 = vrot.slane %v3346, %v3349
        %v3355 = vunpack.c.l.b16 %v3340
        %v3356 = vunpack.c.l.b16 %v3341
        %v3357 = vunpack.c.l.b16 %v3342
        %v3358 = vunpack.c.l.b16 %v3343
        %v3359 = vpack.c.b16 %v3356, %v3355
        %v3360 = vpack.c.b16 %v3358, %v3357
        %v3364 = vsel %vm1054, %v3344, 0
        %3366 = vmatprep.subr.bf16.mxu0 0
        %3367 = vmatpush1.bf16.msra.mxu0 0
        %3368 = vmatprep.subr.bf16.mxu0 0
        %3369 = vmatpush1.bf16.msra.mxu0 0
        %3370 = vmatprep.subr.bf16.mxu0 0
        %3371 = vmatpush1.bf16.msra.mxu0 0
        %3372 = vmatprep.subr.bf16.mxu0 0
        %3373 = vmatpush1.bf16.msra.mxu0 0
        %3374 = vmatprep.subr.bf16.mxu0 0
        %3375 = vmatpush1.bf16.msra.mxu0 0
        %3376 = vmatprep.subr.bf16.mxu0 0
        %3377 = vmatpush1.bf16.msra.mxu0 0
        %3378 = vmatprep.subr.bf16.mxu0 0
        %3379 = vmatpush1.bf16.msra.mxu0 %v3360
        %3380 = vmatprep.subr.bf16.mxu0 0
        %3381 = vmatpush1.bf16.msra.mxu0 %v3359
        %3382 = vmatprep.subr.bf16.mxu0 0
        %3383 = vmatpush2.bf16.msra.mxu0 0
        %3384 = vmatprep.subr.bf16.mxu0 0
        %3385 = vmatpush2.bf16.msra.mxu0 0
        %3386 = vmatprep.subr.bf16.mxu0 0
        %3387 = vmatpush2.bf16.msra.mxu0 0
        %3388 = vmatprep.subr.bf16.mxu0 0
        %3389 = vmatpush2.bf16.msra.mxu0 0
        %3390 = vmatprep.subr.bf16.mxu0 0
        %3391 = vmatpush2.bf16.msra.mxu0 0
        %3392 = vmatprep.subr.bf16.mxu0 0
        %3393 = vmatpush2.bf16.msra.mxu0 0
        %3394 = vmatprep.subr.bf16.mxu0 0
        %3395 = vmatpush2.bf16.msra.mxu0 0
        %3396 = vmatprep.subr.bf16.mxu0 0
        %3397 = vmatpush2.bf16.msra.mxu0 0
        %3398 = vmatprep.mubr.bf16.mxu0 0
        %3399 = vmatmul.mubr.bf16.gmra.mxu0 %v3364
        %v3400 = vpop.f32.mrf.mxu0
        %v3401 = vadd.f32 %v3350, %v3400
        %v3402 = vpop.f32.mrf.mxu0
        %v3403 = vpop.f32.mrf.mxu0
        %v3404 = vpop.f32.mrf.mxu0
        %3405 = vdwg.mxu0
        %v3406 = vmax.f32 %v3401, 0.0
        %v3407 = vld [vmem:[#allocation5 + $0x120] sm:$0xf]
        %v3408 = vld [vmem:[#allocation5 + $0x124] sm:$0xf]
        %v3409 = vld [vmem:[#allocation5 + $0x128] sm:$0xf]
        %v3410 = vld [vmem:[#allocation5 + $0x12c] sm:$0xf]
        %v3411 = vld [vmem:[#allocation5 + $0x130] sm:$0xf]
        %v3412 = vld [vmem:[#allocation5 + $0x134] sm:$0xf]
        %v3413 = vld [vmem:[#allocation5 + $0x138] sm:$0xf]
        %v3414 = vld [vmem:[#allocation5 + $0x13c] sm:$0xf]
        %v3415 = vpack.c.bf16 %v3406, %v3406
        %v3416 = vld [vmem:[#allocation5 + $0x140] sm:$0x1]
        %v3417 = vunpack.c.l.bf16 %v3416
        %v3418 = vlaneseq
        %v3419 = vshrl.u32 %v3418, 7
        %v3420 = vsub.s32 0, %v3419
        %v3421 = vrot.slane %v3417, %v3420
        %v3430 = vunpack.c.l.b16 %v3407
        %v3431 = vunpack.c.l.b16 %v3408
        %v3432 = vunpack.c.l.b16 %v3409
        %v3433 = vunpack.c.l.b16 %v3410
        %v3434 = vunpack.c.l.b16 %v3411
        %v3435 = vunpack.c.l.b16 %v3412
        %v3436 = vunpack.c.l.b16 %v3413
        %v3437 = vunpack.c.l.b16 %v3414
        %v3438 = vpack.c.b16 %v3431, %v3430
        %v3439 = vpack.c.b16 %v3433, %v3432
        %v3440 = vpack.c.b16 %v3435, %v3434
        %v3441 = vpack.c.b16 %v3437, %v3436
        %v3447 = vsel %vm418, %v3415, 0
        %3449 = vmatprep.subr.bf16.mxu0 0
        %3450 = vmatpush1.bf16.msra.mxu0 0
        %3451 = vmatprep.subr.bf16.mxu0 0
        %3452 = vmatpush1.bf16.msra.mxu0 0
        %3453 = vmatprep.subr.bf16.mxu0 0
        %3454 = vmatpush1.bf16.msra.mxu0 0
        %3455 = vmatprep.subr.bf16.mxu0 0
        %3456 = vmatpush1.bf16.msra.mxu0 0
        %3457 = vmatprep.subr.bf16.mxu0 0
        %3458 = vmatpush1.bf16.msra.mxu0 %v3441
        %3459 = vmatprep.subr.bf16.mxu0 0
        %3460 = vmatpush1.bf16.msra.mxu0 %v3440
        %3461 = vmatprep.subr.bf16.mxu0 0
        %3462 = vmatpush1.bf16.msra.mxu0 %v3439
        %3463 = vmatprep.subr.bf16.mxu0 0
        %3464 = vmatpush1.bf16.msra.mxu0 %v3438
        %3465 = vmatprep.subr.bf16.mxu0 0
        %3466 = vmatpush2.bf16.msra.mxu0 0
        %3467 = vmatprep.subr.bf16.mxu0 0
        %3468 = vmatpush2.bf16.msra.mxu0 0
        %3469 = vmatprep.subr.bf16.mxu0 0
        %3470 = vmatpush2.bf16.msra.mxu0 0
        %3471 = vmatprep.subr.bf16.mxu0 0
        %3472 = vmatpush2.bf16.msra.mxu0 0
        %3473 = vmatprep.subr.bf16.mxu0 0
        %3474 = vmatpush2.bf16.msra.mxu0 0
        %3475 = vmatprep.subr.bf16.mxu0 0
        %3476 = vmatpush2.bf16.msra.mxu0 0
        %3477 = vmatprep.subr.bf16.mxu0 0
        %3478 = vmatpush2.bf16.msra.mxu0 0
        %3479 = vmatprep.subr.bf16.mxu0 0
        %3480 = vmatpush2.bf16.msra.mxu0 0
        %3481 = vmatprep.mubr.bf16.mxu0 0
        %3482 = vmatmul.mubr.bf16.gmra.mxu0 %v3447
        %v3483 = vpop.f32.mrf.mxu0
        %v3484 = vadd.f32 %v3421, %v3483
        %v3485 = vpop.f32.mrf.mxu0
        %v3486 = vpop.f32.mrf.mxu0
        %v3487 = vpop.f32.mrf.mxu0
        %3488 = vdwg.mxu0
        %v3489 = vmax.f32 %v3484, 0.0
        %3490 = vst [vmem:[%s176] sm:$0x3] %v3489
        %s3491 = sand.u32 %s75, 1
        %s3492 = scalar_lea.sflag [#allocation4], %s3491
        %s3493 = sand.u32 %s75, 1
        %s3494 = smul.addr %s3493, 2
        %s3495 = scalar_lea.vmem [#allocation7], %s3494
        // Predicated region
        $region37: #{tpu_custom_call.1} parent=27 // pred_check
          %p3496 = pneg %p85
        $region38: #{tpu_custom_call.1} parent=27 // pred_check_branch
          %3498 = sbr.rel (%p3496) target = $region40
        $region39: #{tpu_custom_call.1} parent=27 // pred_region
          %s3500 = ssub.s32 32, 32
          %3501 = vsyncadd %s3492, %s3500
          %s3502 = smul.addr %s20, 32
          %s3503 = scalar_lea.hbm %s2, %s3502
          %s3505 = sshll.u32 %s3495, 4
          %s3506 = int_to_ptr.vmem [resolvable:$true] %s3505
          %3508 = dma.vmem_to_hbm [thread:$0]  %s3506, 32, %s3503, %s3492
        $region40: #{tpu_custom_call.1} parent=27 // pred_fallthru
          _
      $region28: #{tpu_custom_call.1} parent=5 // pred_fallthru
        _
      %p3509 = scmp.le.s32.totalorder 2, %s15
      // Predicated region
      $region41: #{tpu_custom_call.1} parent=5 // pred_check
        %p3510 = pneg %p3509
      $region42: #{tpu_custom_call.1} parent=5 // pred_check_branch
        %3512 = sbr.rel (%p3510) target = $region44
      $region43: #{tpu_custom_call.1} parent=5 // pred_region
        %s3513 = ssub.s32 %s15, 2
        // Predicated region
        $region45: #{tpu_custom_call.1} parent=43 // pred_check
          %p3514 = pneg %p91
        $region46: #{tpu_custom_call.1} parent=43 // pred_check_branch
          %3516 = sbr.rel (%p3514) target = $region48
        $region47: #{tpu_custom_call.1} parent=43 // pred_region
          %s3517 = sand.u32 %s76, 1
          %s3518 = scalar_lea.sflag [#allocation4], %s3517
          %s3519 = sand.u32 %s76, 1
          %s3520 = smul.addr %s3519, 2
          %s3521 = scalar_lea.vmem [#allocation7], %s3520
          %3522 = dma.done %s3518, 32
        $region48: #{tpu_custom_call.1} parent=43 // pred_fallthru
          _
      $region44: #{tpu_custom_call.1} parent=5 // pred_fallthru
        _
    $region6: #{tpu_custom_call.1} parent=1 // loop_footer
      %s19 = sadd.s32 1, %s15
    $region7: #{tpu_custom_call.1} parent=1 // loop_footer_branch
      %14 = sbr.rel target = $region3
    $region8: #{tpu_custom_call.1} parent=1 // loop_exit
      _
    %3523 = vsyncpa [#allocation3], 1
    %s3524 = scalar_lea.sflag [#allocation3], 1
    %3525 = vsyncpa %s3524, 1
    %3526 = vsyncpa [#allocation6], 1
    %3527 = vsyncpa [#allocation4], 1
    %s3528 = scalar_lea.sflag [#allocation4], 1
    %3529 = vsyncpa %s3528, 1

</llo_original>
